<compile_context>
chip_gen: v7x
topology: tpu7x:2x2x1
jax: 0.10.0
libtpu: 0.0.40
codegen_flags: <defaults>
</compile_context>

<pallas_src>
import math

import jax
import jax.numpy as jnp
from jax.experimental import pallas as pl
from jax.experimental.pallas import tpu as pltpu

LN_EPS = 1e-5  # torch.nn.LayerNorm default eps

PARAM_ORDER = (
    "cn1_w", "cn1_b", "cn2_w", "cn2_b",      # cross_norm1 / cross_norm2
    "wq", "wk", "wv", "wcp", "bcp",          # cross-attention q / k / v / proj
    "n1_w", "n1_b", "wqkv", "wsp", "bsp",    # norm1 + self-attention qkv / proj
    "n2_w", "n2_b", "w1", "b1", "w2", "b2",  # norm2 + MLP fc1 / fc2
)


# ----------------------------------------------------------------------------------
# Shared math (used inside the Pallas kernels AND by the pure-JAX reference check)
# ----------------------------------------------------------------------------------
def _probe_erf_support():
    """True if jax.lax.erf lowers inside a Pallas TPU kernel (for exact GELU)."""
    def k(x_ref, o_ref):
        o_ref[...] = jax.lax.erf(x_ref[...])
    try:
        out = pl.pallas_call(
            k, out_shape=jax.ShapeDtypeStruct((8, 128), jnp.float32)
        )(jnp.zeros((8, 128), jnp.float32))
        jax.block_until_ready(out)
        return True
    except Exception:
        return False


def make_gelu(exact):
    if exact:
        inv_sqrt2 = 1.0 / math.sqrt(2.0)
        def gelu(x):
            return 0.5 * x * (1.0 + jax.lax.erf(x * inv_sqrt2))
    else:
        # TODO(synk): torch.nn.GELU is erf-exact; tanh-approx GELU is used only if
        # Mosaic cannot lower lax.erf on this JAX version.  Reference uses the same
        # gelu fn, so the correctness check remains valid either way.
        def gelu(x):
            return jax.nn.gelu(x, approximate=True)
    return gelu


def _layernorm(x, w, b):
    mu = jnp.mean(x, axis=-1, keepdims=True)
    xc = x - mu
    var = jnp.mean(xc * xc, axis=-1, keepdims=True)
    return xc * jax.lax.rsqrt(var + LN_EPS) * w + b


def _dot(a, w):
    # bf16 x bf16 on the MXU, f32 accumulation.  Weights are stored bf16.
    return jnp.dot(a.astype(w.dtype), w, preferred_element_type=jnp.float32)


def _split_heads(t, num_heads, head_dim):
    # (T, H*hd) -> (H, T, hd) via static lane slices stacked along a new major dim
    # (avoids lane-dimension reshapes / relayouts inside the kernel).
    return jnp.stack(
        [t[:, h * head_dim:(h + 1) * head_dim] for h in range(num_heads)], axis=0)


def _mha(q, k, v, num_heads, head_dim, recip):
    """Head-batched attention.  q: (N, H*hd) f32 (already scaled), k/v: (M, H*hd) f32."""
    qh = _split_heads(q.astype(jnp.bfloat16), num_heads, head_dim)   # (H, N, hd)
    kh = _split_heads(k.astype(jnp.bfloat16), num_heads, head_dim)   # (H, M, hd)
    vh = _split_heads(v.astype(jnp.bfloat16), num_heads, head_dim)   # (H, M, hd)
    # Batched QK^T: contraction on the last dims -> no materialized transpose.
    s = jnp.einsum("hnd,hmd->hnm", qh, kh, preferred_element_type=jnp.float32)
    s = s - jnp.max(s, axis=-1, keepdims=True)
    e = jnp.exp(s)
    p = e * recip(jnp.sum(e, axis=-1, keepdims=True))
    o = jnp.einsum("hnm,hmd->hnd", p.astype(jnp.bfloat16), vh,
                   preferred_element_type=jnp.float32)               # (H, N, hd)
    return jnp.concatenate([o[h] for h in range(num_heads)], axis=-1)  # (N, H*hd)


def _cs_block_math(x, c, p, num_heads, gelu, recip):
    """One CSBlock on a single batch element.  x: (N, D) f32, c: (M, C) f32."""
    D = x.shape[-1]
    head_dim = D // num_heads
    scale = head_dim ** -0.5

    # --- cross-attention ---
    xn = _layernorm(x, p["cn1_w"], p["cn1_b"])
    cn = _layernorm(c, p["cn2_w"], p["cn2_b"])
    q = _dot(xn, p["wq"]) * scale            # scale applied once, not per head
    k = _dot(cn, p["wk"])
    v = _dot(cn, p["wv"])
    ca = _mha(q, k, v, num_heads, head_dim, recip)
    x = x + _dot(ca, p["wcp"]) + p["bcp"]

    # --- self-attention ---
    xn = _layernorm(x, p["n1_w"], p["n1_b"])
    qkv = _dot(xn, p["wqkv"])
    sa = _mha(qkv[:, :D] * scale, qkv[:, D:2 * D], qkv[:, 2 * D:],
              num_heads, head_dim, recip)
    x = x + _dot(sa, p["wsp"]) + p["bsp"]

    # --- MLP ---
    xn = _layernorm(x, p["n2_w"], p["n2_b"])
    h = gelu(_dot(xn, p["w1"]) + p["b1"])
    x = x + _dot(h, p["w2"]) + p["b2"]
    return x


# ----------------------------------------------------------------------------------
# Pallas kernel + wrapper
# ----------------------------------------------------------------------------------
def _make_cs_block_kernel(names, num_heads, gelu, apply_final_ln):
    n_w = len(names)
    recip = lambda s: pl.reciprocal(s, approx=True)   # EUP slot; frees VALU

    def kernel(*refs):
        x_ref, c_ref = refs[0], refs[1]
        w_hbm = refs[2:2 + n_w]            # HBM refs (memory_space=pl.ANY)
        o_ref = refs[2 + n_w]
        w_vmem = refs[3 + n_w:3 + 2 * n_w]  # single-buffered VMEM weight scratch
        sem = refs[3 + 2 * n_w]

        # Copy all weights HBM -> VMEM (start all DMAs, then wait all).  This keeps a
        # single VMEM copy of each weight instead of the pipeline's double buffers.
        # TODO(synk): at real ViT sizes hoist this behind a per-core first-step guard
        # (or stream the MLP / qkv weights over a K grid axis on v7x's 64 MiB VMEM).
        copies = [pltpu.make_async_copy(h, v, sem.at[i])
                  for i, (h, v) in enumerate(zip(w_hbm, w_vmem))]
        for cp in copies:
            cp.start()
        for cp in copies:
            cp.wait()

        p = {name: r[...] for name, r in zip(names, w_vmem)}
        y = _cs_block_math(x_ref[0], c_ref[0], p, num_heads, gelu, recip)
        if apply_final_ln:
            # Encoder's final LayerNorm fused into the last layer's block kernel.
            y = _layernorm(y, p["fn_w"], p["fn_b"])
        o_ref[0] = y.astype(o_ref.dtype)

    return kernel


def cs_block_pallas(x, ctx, params, num_heads, gelu, final_ln=None):
    """Fused CSBlock: grid over batch; (1, N, D) activation tiles auto-pipelined,
    weights DMA'd into single-buffered VMEM scratch."""
    B, N, D = x.shape
    _, M, C = ctx.shape
    assert D % num_heads == 0, "embed dim must be divisible by num_heads"

    names = list(PARAM_ORDER)
    weights = [params[k] for k in PARAM_ORDER]
    if final_ln is not None:
        names += ["fn_w", "fn_b"]
        weights += list(final_ln)
    n_w = len(weights)

    in_specs = [pl.BlockSpec((1, N, D), lambda b: (b, 0, 0)),
                pl.BlockSpec((1, M, C), lambda b: (b, 0, 0))]
    in_specs += [pl.BlockSpec(memory_space=pl.ANY) for _ in weights]

    scratch_shapes = [pltpu.VMEM(w.shape, w.dtype) for w in weights]
    scratch_shapes.append(pltpu.SemaphoreType.DMA((n_w,)))

    # TODO(synk): for long (video-length) token sequences, tile N and flash-tile the
    # context M so the (N, 4D) MLP hidden and (H, N, M) scores stay bounded; on v7x
    # the two per-layer stream blocks could additionally be sharded across the 2 TCs.
    return pl.pallas_call(
        _make_cs_block_kernel(tuple(names), num_heads, gelu, final_ln is not None),
        out_shape=jax.ShapeDtypeStruct((B, N, D), jnp.float32),
        grid=(B,),
        in_specs=in_specs,
        out_specs=pl.BlockSpec((1, N, D), lambda b: (b, 0, 0)),
        scratch_shapes=scratch_shapes,
        compiler_params=pltpu.CompilerParams(
            dimension_semantics=("parallel",),
            vmem_limit_bytes=64 * 1024 * 1024),
    )(x, ctx, *weights)


# ----------------------------------------------------------------------------------
# Parameter init (matches the module's _init_weights: xavier_uniform weights, zero
# biases, LayerNorm weight=1 / bias=0).  qkv_bias=False (module default).
# ----------------------------------------------------------------------------------
def _xavier_bf16(key, fan_in, fan_out):
    limit = math.sqrt(6.0 / (fan_in + fan_out))
    w = jax.random.uniform(key, (fan_in, fan_out), jnp.float32, -limit, limit)
    return w.astype(jnp.bfloat16)   # bf16 weight storage (MXU-native, half the DMA)


def init_cs_block_params(key, dim, context_dim, mlp_ratio):
    hidden = int(dim * mlp_ratio)
    ks = jax.random.split(key, 8)
    ones = lambda d: jnp.ones((1, d), jnp.float32)
    zeros = lambda d: jnp.zeros((1, d), jnp.float32)
    return dict(
        cn1_w=ones(dim), cn1_b=zeros(dim),
        cn2_w=ones(context_dim), cn2_b=zeros(context_dim),
        wq=_xavier_bf16(ks[0], dim, dim),
        wk=_xavier_bf16(ks[1], context_dim, dim),
        wv=_xavier_bf16(ks[2], context_dim, dim),
        wcp=_xavier_bf16(ks[3], dim, dim), bcp=zeros(dim),
        n1_w=ones(dim), n1_b=zeros(dim),
        wqkv=_xavier_bf16(ks[4], dim, 3 * dim),
        wsp=_xavier_bf16(ks[5], dim, dim), bsp=zeros(dim),
        n2_w=ones(dim), n2_b=zeros(dim),
        w1=_xavier_bf16(ks[6], dim, hidden), b1=zeros(hidden),
        w2=_xavier_bf16(ks[7], hidden, dim), b2=zeros(dim),
    )


def init_fusion_params(key, embed_dim, embed_dim_audio, depth, mlp_ratio,
                       modal_param_sharing=False):
    keys = jax.random.split(key, 2 * depth)
    blocks = [init_cs_block_params(keys[i], embed_dim, embed_dim_audio, mlp_ratio)
              for i in range(depth)]
    if modal_param_sharing:
        blocks_audio = blocks
    else:
        blocks_audio = [init_cs_block_params(keys[depth + i], embed_dim_audio,
                                             embed_dim, mlp_ratio)
                        for i in range(depth)]
    return dict(
        blocks=blocks, blocks_audio=blocks_audio,
        norm_w=jnp.ones((1, embed_dim), jnp.float32),
        norm_b=jnp.zeros((1, embed_dim), jnp.float32),
        norm_audio_w=jnp.ones((1, embed_dim_audio), jnp.float32),
        norm_audio_b=jnp.zeros((1, embed_dim_audio), jnp.float32),
    )


# ----------------------------------------------------------------------------------
# Forward passes
# ----------------------------------------------------------------------------------
def fusion_encoder_forward(x, x_audio, params, num_heads, gelu):
    # Both streams are updated from the *previous* (x, x_audio), exactly as in
    # `x, x_audio = (blk(x, context=x_audio), blk_audio(x_audio, context=x))`.
    blocks, blocks_audio = params["blocks"], params["blocks_audio"]
    depth = len(blocks)
    for i, (p_v, p_a) in enumerate(zip(blocks, blocks_audio)):
        last = i == depth - 1
        fl_v = (params["norm_w"], params["norm_b"]) if last else None
        fl_a = (params["norm_audio_w"], params["norm_audio_b"]) if last else None
        x_new = cs_block_pallas(x, x_audio, p_v, num_heads, gelu, final_ln=fl_v)
        xa_new = cs_block_pallas(x_audio, x, p_a, num_heads, gelu, final_ln=fl_a)
        x, x_audio = x_new, xa_new
    if depth == 0:  # degenerate case: only the final norms (plain JAX)
        x = _layernorm(x, params["norm_w"], params["norm_b"])
        x_audio = _layernorm(x_audio, params["norm_audio_w"], params["norm_audio_b"])
    return x, x_audio


def fusion_encoder_reference(x, x_audio, params, num_heads, gelu):
    recip = lambda s: 1.0 / s
    def block(xb, cb, p):
        return jax.vmap(
            lambda xi, ci: _cs_block_math(xi, ci, p, num_heads, gelu, recip))(xb, cb)
    for p_v, p_a in zip(params["blocks"], params["blocks_audio"]):
        x_new = block(x, x_audio, p_v)
        xa_new = block(x_audio, x, p_a)
        x, x_audio = x_new, xa_new
    x = _layernorm(x, params["norm_w"], params["norm_b"])
    x_audio = _layernorm(x_audio, params["norm_audio_w"], params["norm_audio_b"])
    return x, x_audio


# ----------------------------------------------------------------------------------
if __name__ == "__main__":
    key = jax.random.PRNGKey(0)
    B = 2
    N, M = 8, 8                                  # video tokens, audio tokens
    embed_dim, embed_dim_audio = 128, 128        # lane-dense (multiple of 128)
    num_heads = 4
    depth = 2
    mlp_ratio = 4.0

    k_x, k_a, k_p = jax.random.split(key, 3)
    x = jax.random.normal(k_x, (B, N, embed_dim), jnp.float32)
    x_audio = jax.random.normal(k_a, (B, M, embed_dim_audio), jnp.float32)
    params = init_fusion_params(k_p, embed_dim, embed_dim_audio, depth, mlp_ratio)

    gelu = make_gelu(exact=_probe_erf_support())

    out_x, out_a = fusion_encoder_forward(x, x_audio, params, num_heads, gelu)
    jax.block_until_ready((out_x, out_a))

    ref_x, ref_a = fusion_encoder_reference(x, x_audio, params, num_heads, gelu)
    ok = (bool(jnp.allclose(out_x, ref_x, atol=2e-2, rtol=2e-2))
          and bool(jnp.allclose(out_a, ref_a, atol=2e-2, rtol=2e-2)))
    if not ok:
        raise AssertionError("Pallas output does not match pure-JAX reference")

    print("KERNEL_OK")
</pallas_src>

<mosaic_0001>
module attributes {stable_mosaic.version = 11 : i64} {
  func.func @k(%arg0: memref<8x128xf32, #tpu.memory_space<vmem>>, %arg1: memref<8x128xf32, #tpu.memory_space<vmem>>) attributes {dimension_semantics = [], scalar_prefetch = 0 : i64, scratch_operands = 0 : i64, tpu.core_type = #tpu.core_type<tc>} {
    %c0 = arith.constant 0 : index
    %c0_0 = arith.constant 0 : index
    %0 = vector.load %arg0[%c0, %c0_0] : memref<8x128xf32, #tpu.memory_space<vmem>>, vector<8x128xf32>
    %1 = math.erf %0 : vector<8x128xf32>
    %c0_1 = arith.constant 0 : index
    %c0_2 = arith.constant 0 : index
    %2 = vector.load %arg1[%c0_1, %c0_2] : memref<8x128xf32, #tpu.memory_space<vmem>>, vector<8x128xf32>
    tpu.vector_store %arg1[%c0_1, %c0_2], %1 {strides = array<i32>} : memref<8x128xf32, #tpu.memory_space<vmem>>, vector<8x128xf32>,
    return
  }
}

module attributes {stable_mosaic.version = 11 : i64} {
  func.func @kernel(%arg0: i32, %arg1: memref<1x8x128xf32, #tpu.memory_space<vmem>>, %arg2: memref<1x8x128xf32, #tpu.memory_space<vmem>>, %arg3: memref<1x128xf32, #tpu.memory_space<any>>, %arg4: memref<1x128xf32, #tpu.memory_space<any>>, %arg5: memref<1x128xf32, #tpu.memory_space<any>>, %arg6: memref<1x128xf32, #tpu.memory_space<any>>, %arg7: memref<128x128xbf16, #tpu.memory_space<any>>, %arg8: memref<128x128xbf16, #tpu.memory_space<any>>, %arg9: memref<128x128xbf16, #tpu.memory_space<any>>, %arg10: memref<128x128xbf16, #tpu.memory_space<any>>, %arg11: memref<1x128xf32, #tpu.memory_space<any>>, %arg12: memref<1x128xf32, #tpu.memory_space<any>>, %arg13: memref<1x128xf32, #tpu.memory_space<any>>, %arg14: memref<128x384xbf16, #tpu.memory_space<any>>, %arg15: memref<128x128xbf16, #tpu.memory_space<any>>, %arg16: memref<1x128xf32, #tpu.memory_space<any>>, %arg17: memref<1x128xf32, #tpu.memory_space<any>>, %arg18: memref<1x128xf32, #tpu.memory_space<any>>, %arg19: memref<128x512xbf16, #tpu.memory_space<any>>, %arg20: memref<1x512xf32, #tpu.memory_space<any>>, %arg21: memref<512x128xbf16, #tpu.memory_space<any>>, %arg22: memref<1x128xf32, #tpu.memory_space<any>>, %arg23: memref<1x8x128xf32, #tpu.memory_space<vmem>>, %arg24: memref<1x128xf32, #tpu.memory_space<vmem>>, %arg25: memref<1x128xf32, #tpu.memory_space<vmem>>, %arg26: memref<1x128xf32, #tpu.memory_space<vmem>>, %arg27: memref<1x128xf32, #tpu.memory_space<vmem>>, %arg28: memref<128x128xbf16, #tpu.memory_space<vmem>>, %arg29: memref<128x128xbf16, #tpu.memory_space<vmem>>, %arg30: memref<128x128xbf16, #tpu.memory_space<vmem>>, %arg31: memref<128x128xbf16, #tpu.memory_space<vmem>>, %arg32: memref<1x128xf32, #tpu.memory_space<vmem>>, %arg33: memref<1x128xf32, #tpu.memory_space<vmem>>, %arg34: memref<1x128xf32, #tpu.memory_space<vmem>>, %arg35: memref<128x384xbf16, #tpu.memory_space<vmem>>, %arg36: memref<128x128xbf16, #tpu.memory_space<vmem>>, %arg37: memref<1x128xf32, #tpu.memory_space<vmem>>, %arg38: memref<1x128xf32, #tpu.memory_space<vmem>>, %arg39: memref<1x128xf32, #tpu.memory_space<vmem>>, %arg40: memref<128x512xbf16, #tpu.memory_space<vmem>>, %arg41: memref<1x512xf32, #tpu.memory_space<vmem>>, %arg42: memref<512x128xbf16, #tpu.memory_space<vmem>>, %arg43: memref<1x128xf32, #tpu.memory_space<vmem>>, %arg44: memref<20x!tpu.dma_semaphore, #tpu.memory_space<semaphore_mem>>) attributes {dimension_semantics = [#tpu.dimension_semantics<parallel>], iteration_bounds = array<i64: 2>, scalar_prefetch = 0 : i64, scratch_operands = 21 : i64, tpu.core_type = #tpu.core_type<tc>, window_params = [{transform_indices = @transform_0, window_bounds = array<i64: 1, 8, 128>}, {transform_indices = @transform_1, window_bounds = array<i64: 1, 8, 128>}, {}, {}, {}, {}, {}, {}, {}, {}, {}, {}, {}, {}, {}, {}, {}, {}, {}, {}, {}, {}, {transform_indices = @transform_22, window_bounds = array<i64: 1, 8, 128>}]} {
    %c0_i32 = arith.constant 0 : i32
    %0 = tpu.memref_slice %arg44[%c0_i32] : memref<20x!tpu.dma_semaphore, #tpu.memory_space<semaphore_mem>> -> memref<1x!tpu.dma_semaphore, #tpu.memory_space<semaphore_mem>>
    %1 = tpu.memref_squeeze %0 : memref<1x!tpu.dma_semaphore, #tpu.memory_space<semaphore_mem>> -> memref<!tpu.dma_semaphore, #tpu.memory_space<semaphore_mem>>
    tpu.enqueue_dma source(%arg3 : memref<1x128xf32, #tpu.memory_space<any>>) target(%arg24 : memref<1x128xf32, #tpu.memory_space<vmem>>) target_semaphore(%1 : memref<!tpu.dma_semaphore, #tpu.memory_space<semaphore_mem>>)
    %c1_i32 = arith.constant 1 : i32
    %2 = tpu.memref_slice %arg44[%c1_i32] : memref<20x!tpu.dma_semaphore, #tpu.memory_space<semaphore_mem>> -> memref<1x!tpu.dma_semaphore, #tpu.memory_space<semaphore_mem>>
    %3 = tpu.memref_squeeze %2 : memref<1x!tpu.dma_semaphore, #tpu.memory_space<semaphore_mem>> -> memref<!tpu.dma_semaphore, #tpu.memory_space<semaphore_mem>>
    tpu.enqueue_dma source(%arg4 : memref<1x128xf32, #tpu.memory_space<any>>) target(%arg25 : memref<1x128xf32, #tpu.memory_space<vmem>>) target_semaphore(%3 : memref<!tpu.dma_semaphore, #tpu.memory_space<semaphore_mem>>)
    %c2_i32 = arith.constant 2 : i32
    %4 = tpu.memref_slice %arg44[%c2_i32] : memref<20x!tpu.dma_semaphore, #tpu.memory_space<semaphore_mem>> -> memref<1x!tpu.dma_semaphore, #tpu.memory_space<semaphore_mem>>
    %5 = tpu.memref_squeeze %4 : memref<1x!tpu.dma_semaphore, #tpu.memory_space<semaphore_mem>> -> memref<!tpu.dma_semaphore, #tpu.memory_space<semaphore_mem>>
    tpu.enqueue_dma source(%arg5 : memref<1x128xf32, #tpu.memory_space<any>>) target(%arg26 : memref<1x128xf32, #tpu.memory_space<vmem>>) target_semaphore(%5 : memref<!tpu.dma_semaphore, #tpu.memory_space<semaphore_mem>>)
    %c3_i32 = arith.constant 3 : i32
    %6 = tpu.memref_slice %arg44[%c3_i32] : memref<20x!tpu.dma_semaphore, #tpu.memory_space<semaphore_mem>> -> memref<1x!tpu.dma_semaphore, #tpu.memory_space<semaphore_mem>>
    %7 = tpu.memref_squeeze %6 : memref<1x!tpu.dma_semaphore, #tpu.memory_space<semaphore_mem>> -> memref<!tpu.dma_semaphore, #tpu.memory_space<semaphore_mem>>
    tpu.enqueue_dma source(%arg6 : memref<1x128xf32, #tpu.memory_space<any>>) target(%arg27 : memref<1x128xf32, #tpu.memory_space<vmem>>) target_semaphore(%7 : memref<!tpu.dma_semaphore, #tpu.memory_space<semaphore_mem>>)
    %c4_i32 = arith.constant 4 : i32
    %8 = tpu.memref_slice %arg44[%c4_i32] : memref<20x!tpu.dma_semaphore, #tpu.memory_space<semaphore_mem>> -> memref<1x!tpu.dma_semaphore, #tpu.memory_space<semaphore_mem>>
    %9 = tpu.memref_squeeze %8 : memref<1x!tpu.dma_semaphore, #tpu.memory_space<semaphore_mem>> -> memref<!tpu.dma_semaphore, #tpu.memory_space<semaphore_mem>>
    tpu.enqueue_dma source(%arg7 : memref<128x128xbf16, #tpu.memory_space<any>>) target(%arg28 : memref<128x128xbf16, #tpu.memory_space<vmem>>) target_semaphore(%9 : memref<!tpu.dma_semaphore, #tpu.memory_space<semaphore_mem>>)
    %c5_i32 = arith.constant 5 : i32
    %10 = tpu.memref_slice %arg44[%c5_i32] : memref<20x!tpu.dma_semaphore, #tpu.memory_space<semaphore_mem>> -> memref<1x!tpu.dma_semaphore, #tpu.memory_space<semaphore_mem>>
    %11 = tpu.memref_squeeze %10 : memref<1x!tpu.dma_semaphore, #tpu.memory_space<semaphore_mem>> -> memref<!tpu.dma_semaphore, #tpu.memory_space<semaphore_mem>>
    tpu.enqueue_dma source(%arg8 : memref<128x128xbf16, #tpu.memory_space<any>>) target(%arg29 : memref<128x128xbf16, #tpu.memory_space<vmem>>) target_semaphore(%11 : memref<!tpu.dma_semaphore, #tpu.memory_space<semaphore_mem>>)
    %c6_i32 = arith.constant 6 : i32
    %12 = tpu.memref_slice %arg44[%c6_i32] : memref<20x!tpu.dma_semaphore, #tpu.memory_space<semaphore_mem>> -> memref<1x!tpu.dma_semaphore, #tpu.memory_space<semaphore_mem>>
    %13 = tpu.memref_squeeze %12 : memref<1x!tpu.dma_semaphore, #tpu.memory_space<semaphore_mem>> -> memref<!tpu.dma_semaphore, #tpu.memory_space<semaphore_mem>>
    tpu.enqueue_dma source(%arg9 : memref<128x128xbf16, #tpu.memory_space<any>>) target(%arg30 : memref<128x128xbf16, #tpu.memory_space<vmem>>) target_semaphore(%13 : memref<!tpu.dma_semaphore, #tpu.memory_space<semaphore_mem>>)
    %c7_i32 = arith.constant 7 : i32
    %14 = tpu.memref_slice %arg44[%c7_i32] : memref<20x!tpu.dma_semaphore, #tpu.memory_space<semaphore_mem>> -> memref<1x!tpu.dma_semaphore, #tpu.memory_space<semaphore_mem>>
    %15 = tpu.memref_squeeze %14 : memref<1x!tpu.dma_semaphore, #tpu.memory_space<semaphore_mem>> -> memref<!tpu.dma_semaphore, #tpu.memory_space<semaphore_mem>>
    tpu.enqueue_dma source(%arg10 : memref<128x128xbf16, #tpu.memory_space<any>>) target(%arg31 : memref<128x128xbf16, #tpu.memory_space<vmem>>) target_semaphore(%15 : memref<!tpu.dma_semaphore, #tpu.memory_space<semaphore_mem>>)
    %c8_i32 = arith.constant 8 : i32
    %16 = tpu.memref_slice %arg44[%c8_i32] : memref<20x!tpu.dma_semaphore, #tpu.memory_space<semaphore_mem>> -> memref<1x!tpu.dma_semaphore, #tpu.memory_space<semaphore_mem>>
    %17 = tpu.memref_squeeze %16 : memref<1x!tpu.dma_semaphore, #tpu.memory_space<semaphore_mem>> -> memref<!tpu.dma_semaphore, #tpu.memory_space<semaphore_mem>>
    tpu.enqueue_dma source(%arg11 : memref<1x128xf32, #tpu.memory_space<any>>) target(%arg32 : memref<1x128xf32, #tpu.memory_space<vmem>>) target_semaphore(%17 : memref<!tpu.dma_semaphore, #tpu.memory_space<semaphore_mem>>)
    %c9_i32 = arith.constant 9 : i32
    %18 = tpu.memref_slice %arg44[%c9_i32] : memref<20x!tpu.dma_semaphore, #tpu.memory_space<semaphore_mem>> -> memref<1x!tpu.dma_semaphore, #tpu.memory_space<semaphore_mem>>
    %19 = tpu.memref_squeeze %18 : memref<1x!tpu.dma_semaphore, #tpu.memory_space<semaphore_mem>> -> memref<!tpu.dma_semaphore, #tpu.memory_space<semaphore_mem>>
    tpu.enqueue_dma source(%arg12 : memref<1x128xf32, #tpu.memory_space<any>>) target(%arg33 : memref<1x128xf32, #tpu.memory_space<vmem>>) target_semaphore(%19 : memref<!tpu.dma_semaphore, #tpu.memory_space<semaphore_mem>>)
    %c10_i32 = arith.constant 10 : i32
    %20 = tpu.memref_slice %arg44[%c10_i32] : memref<20x!tpu.dma_semaphore, #tpu.memory_space<semaphore_mem>> -> memref<1x!tpu.dma_semaphore, #tpu.memory_space<semaphore_mem>>
    %21 = tpu.memref_squeeze %20 : memref<1x!tpu.dma_semaphore, #tpu.memory_space<semaphore_mem>> -> memref<!tpu.dma_semaphore, #tpu.memory_space<semaphore_mem>>
    tpu.enqueue_dma source(%arg13 : memref<1x128xf32, #tpu.memory_space<any>>) target(%arg34 : memref<1x128xf32, #tpu.memory_space<vmem>>) target_semaphore(%21 : memref<!tpu.dma_semaphore, #tpu.memory_space<semaphore_mem>>)
    %c11_i32 = arith.constant 11 : i32
    %22 = tpu.memref_slice %arg44[%c11_i32] : memref<20x!tpu.dma_semaphore, #tpu.memory_space<semaphore_mem>> -> memref<1x!tpu.dma_semaphore, #tpu.memory_space<semaphore_mem>>
    %23 = tpu.memref_squeeze %22 : memref<1x!tpu.dma_semaphore, #tpu.memory_space<semaphore_mem>> -> memref<!tpu.dma_semaphore, #tpu.memory_space<semaphore_mem>>
    tpu.enqueue_dma source(%arg14 : memref<128x384xbf16, #tpu.memory_space<any>>) target(%arg35 : memref<128x384xbf16, #tpu.memory_space<vmem>>) target_semaphore(%23 : memref<!tpu.dma_semaphore, #tpu.memory_space<semaphore_mem>>)
    %c12_i32 = arith.constant 12 : i32
    %24 = tpu.memref_slice %arg44[%c12_i32] : memref<20x!tpu.dma_semaphore, #tpu.memory_space<semaphore_mem>> -> memref<1x!tpu.dma_semaphore, #tpu.memory_space<semaphore_mem>>
    %25 = tpu.memref_squeeze %24 : memref<1x!tpu.dma_semaphore, #tpu.memory_space<semaphore_mem>> -> memref<!tpu.dma_semaphore, #tpu.memory_space<semaphore_mem>>
    tpu.enqueue_dma source(%arg15 : memref<128x128xbf16, #tpu.memory_space<any>>) target(%arg36 : memref<128x128xbf16, #tpu.memory_space<vmem>>) target_semaphore(%25 : memref<!tpu.dma_semaphore, #tpu.memory_space<semaphore_mem>>)
    %c13_i32 = arith.constant 13 : i32
    %26 = tpu.memref_slice %arg44[%c13_i32] : memref<20x!tpu.dma_semaphore, #tpu.memory_space<semaphore_mem>> -> memref<1x!tpu.dma_semaphore, #tpu.memory_space<semaphore_mem>>
    %27 = tpu.memref_squeeze %26 : memref<1x!tpu.dma_semaphore, #tpu.memory_space<semaphore_mem>> -> memref<!tpu.dma_semaphore, #tpu.memory_space<semaphore_mem>>
    tpu.enqueue_dma source(%arg16 : memref<1x128xf32, #tpu.memory_space<any>>) target(%arg37 : memref<1x128xf32, #tpu.memory_space<vmem>>) target_semaphore(%27 : memref<!tpu.dma_semaphore, #tpu.memory_space<semaphore_mem>>)
    %c14_i32 = arith.constant 14 : i32
    %28 = tpu.memref_slice %arg44[%c14_i32] : memref<20x!tpu.dma_semaphore, #tpu.memory_space<semaphore_mem>> -> memref<1x!tpu.dma_semaphore, #tpu.memory_space<semaphore_mem>>
    %29 = tpu.memref_squeeze %28 : memref<1x!tpu.dma_semaphore, #tpu.memory_space<semaphore_mem>> -> memref<!tpu.dma_semaphore, #tpu.memory_space<semaphore_mem>>
    tpu.enqueue_dma source(%arg17 : memref<1x128xf32, #tpu.memory_space<any>>) target(%arg38 : memref<1x128xf32, #tpu.memory_space<vmem>>) target_semaphore(%29 : memref<!tpu.dma_semaphore, #tpu.memory_space<semaphore_mem>>)
    %c15_i32 = arith.constant 15 : i32
    %30 = tpu.memref_slice %arg44[%c15_i32] : memref<20x!tpu.dma_semaphore, #tpu.memory_space<semaphore_mem>> -> memref<1x!tpu.dma_semaphore, #tpu.memory_space<semaphore_mem>>
    %31 = tpu.memref_squeeze %30 : memref<1x!tpu.dma_semaphore, #tpu.memory_space<semaphore_mem>> -> memref<!tpu.dma_semaphore, #tpu.memory_space<semaphore_mem>>
    tpu.enqueue_dma source(%arg18 : memref<1x128xf32, #tpu.memory_space<any>>) target(%arg39 : memref<1x128xf32, #tpu.memory_space<vmem>>) target_semaphore(%31 : memref<!tpu.dma_semaphore, #tpu.memory_space<semaphore_mem>>)
    %c16_i32 = arith.constant 16 : i32
    %32 = tpu.memref_slice %arg44[%c16_i32] : memref<20x!tpu.dma_semaphore, #tpu.memory_space<semaphore_mem>> -> memref<1x!tpu.dma_semaphore, #tpu.memory_space<semaphore_mem>>
    %33 = tpu.memref_squeeze %32 : memref<1x!tpu.dma_semaphore, #tpu.memory_space<semaphore_mem>> -> memref<!tpu.dma_semaphore, #tpu.memory_space<semaphore_mem>>
    tpu.enqueue_dma source(%arg19 : memref<128x512xbf16, #tpu.memory_space<any>>) target(%arg40 : memref<128x512xbf16, #tpu.memory_space<vmem>>) target_semaphore(%33 : memref<!tpu.dma_semaphore, #tpu.memory_space<semaphore_mem>>)
    %c17_i32 = arith.constant 17 : i32
    %34 = tpu.memref_slice %arg44[%c17_i32] : memref<20x!tpu.dma_semaphore, #tpu.memory_space<semaphore_mem>> -> memref<1x!tpu.dma_semaphore, #tpu.memory_space<semaphore_mem>>
    %35 = tpu.memref_squeeze %34 : memref<1x!tpu.dma_semaphore, #tpu.memory_space<semaphore_mem>> -> memref<!tpu.dma_semaphore, #tpu.memory_space<semaphore_mem>>
    tpu.enqueue_dma source(%arg20 : memref<1x512xf32, #tpu.memory_space<any>>) target(%arg41 : memref<1x512xf32, #tpu.memory_space<vmem>>) target_semaphore(%35 : memref<!tpu.dma_semaphore, #tpu.memory_space<semaphore_mem>>)
    %c18_i32 = arith.constant 18 : i32
    %36 = tpu.memref_slice %arg44[%c18_i32] : memref<20x!tpu.dma_semaphore, #tpu.memory_space<semaphore_mem>> -> memref<1x!tpu.dma_semaphore, #tpu.memory_space<semaphore_mem>>
    %37 = tpu.memref_squeeze %36 : memref<1x!tpu.dma_semaphore, #tpu.memory_space<semaphore_mem>> -> memref<!tpu.dma_semaphore, #tpu.memory_space<semaphore_mem>>
    tpu.enqueue_dma source(%arg21 : memref<512x128xbf16, #tpu.memory_space<any>>) target(%arg42 : memref<512x128xbf16, #tpu.memory_space<vmem>>) target_semaphore(%37 : memref<!tpu.dma_semaphore, #tpu.memory_space<semaphore_mem>>)
    %c19_i32 = arith.constant 19 : i32
    %38 = tpu.memref_slice %arg44[%c19_i32] : memref<20x!tpu.dma_semaphore, #tpu.memory_space<semaphore_mem>> -> memref<1x!tpu.dma_semaphore, #tpu.memory_space<semaphore_mem>>
    %39 = tpu.memref_squeeze %38 : memref<1x!tpu.dma_semaphore, #tpu.memory_space<semaphore_mem>> -> memref<!tpu.dma_semaphore, #tpu.memory_space<semaphore_mem>>
    tpu.enqueue_dma source(%arg22 : memref<1x128xf32, #tpu.memory_space<any>>) target(%arg43 : memref<1x128xf32, #tpu.memory_space<vmem>>) target_semaphore(%39 : memref<!tpu.dma_semaphore, #tpu.memory_space<semaphore_mem>>)
    %c0_i32_0 = arith.constant 0 : i32
    %40 = tpu.memref_slice %arg44[%c0_i32_0] : memref<20x!tpu.dma_semaphore, #tpu.memory_space<semaphore_mem>> -> memref<1x!tpu.dma_semaphore, #tpu.memory_space<semaphore_mem>>
    %41 = tpu.memref_squeeze %40 : memref<1x!tpu.dma_semaphore, #tpu.memory_space<semaphore_mem>> -> memref<!tpu.dma_semaphore, #tpu.memory_space<semaphore_mem>>
    tpu.wait_dma2 semaphore(%41 : memref<!tpu.dma_semaphore, #tpu.memory_space<semaphore_mem>>) src(%arg3 : memref<1x128xf32, #tpu.memory_space<any>>) dst(%arg24 : memref<1x128xf32, #tpu.memory_space<vmem>>)
    %c1_i32_1 = arith.constant 1 : i32
    %42 = tpu.memref_slice %arg44[%c1_i32_1] : memref<20x!tpu.dma_semaphore, #tpu.memory_space<semaphore_mem>> -> memref<1x!tpu.dma_semaphore, #tpu.memory_space<semaphore_mem>>
    %43 = tpu.memref_squeeze %42 : memref<1x!tpu.dma_semaphore, #tpu.memory_space<semaphore_mem>> -> memref<!tpu.dma_semaphore, #tpu.memory_space<semaphore_mem>>
    tpu.wait_dma2 semaphore(%43 : memref<!tpu.dma_semaphore, #tpu.memory_space<semaphore_mem>>) src(%arg4 : memref<1x128xf32, #tpu.memory_space<any>>) dst(%arg25 : memref<1x128xf32, #tpu.memory_space<vmem>>)
    %c2_i32_2 = arith.constant 2 : i32
    %44 = tpu.memref_slice %arg44[%c2_i32_2] : memref<20x!tpu.dma_semaphore, #tpu.memory_space<semaphore_mem>> -> memref<1x!tpu.dma_semaphore, #tpu.memory_space<semaphore_mem>>
    %45 = tpu.memref_squeeze %44 : memref<1x!tpu.dma_semaphore, #tpu.memory_space<semaphore_mem>> -> memref<!tpu.dma_semaphore, #tpu.memory_space<semaphore_mem>>
    tpu.wait_dma2 semaphore(%45 : memref<!tpu.dma_semaphore, #tpu.memory_space<semaphore_mem>>) src(%arg5 : memref<1x128xf32, #tpu.memory_space<any>>) dst(%arg26 : memref<1x128xf32, #tpu.memory_space<vmem>>)
    %c3_i32_3 = arith.constant 3 : i32
    %46 = tpu.memref_slice %arg44[%c3_i32_3] : memref<20x!tpu.dma_semaphore, #tpu.memory_space<semaphore_mem>> -> memref<1x!tpu.dma_semaphore, #tpu.memory_space<semaphore_mem>>
    %47 = tpu.memref_squeeze %46 : memref<1x!tpu.dma_semaphore, #tpu.memory_space<semaphore_mem>> -> memref<!tpu.dma_semaphore, #tpu.memory_space<semaphore_mem>>
    tpu.wait_dma2 semaphore(%47 : memref<!tpu.dma_semaphore, #tpu.memory_space<semaphore_mem>>) src(%arg6 : memref<1x128xf32, #tpu.memory_space<any>>) dst(%arg27 : memref<1x128xf32, #tpu.memory_space<vmem>>)
    %c4_i32_4 = arith.constant 4 : i32
    %48 = tpu.memref_slice %arg44[%c4_i32_4] : memref<20x!tpu.dma_semaphore, #tpu.memory_space<semaphore_mem>> -> memref<1x!tpu.dma_semaphore, #tpu.memory_space<semaphore_mem>>
    %49 = tpu.memref_squeeze %48 : memref<1x!tpu.dma_semaphore, #tpu.memory_space<semaphore_mem>> -> memref<!tpu.dma_semaphore, #tpu.memory_space<semaphore_mem>>
    tpu.wait_dma2 semaphore(%49 : memref<!tpu.dma_semaphore, #tpu.memory_space<semaphore_mem>>) src(%arg7 : memref<128x128xbf16, #tpu.memory_space<any>>) dst(%arg28 : memref<128x128xbf16, #tpu.memory_space<vmem>>)
    %c5_i32_5 = arith.constant 5 : i32
    %50 = tpu.memref_slice %arg44[%c5_i32_5] : memref<20x!tpu.dma_semaphore, #tpu.memory_space<semaphore_mem>> -> memref<1x!tpu.dma_semaphore, #tpu.memory_space<semaphore_mem>>
    %51 = tpu.memref_squeeze %50 : memref<1x!tpu.dma_semaphore, #tpu.memory_space<semaphore_mem>> -> memref<!tpu.dma_semaphore, #tpu.memory_space<semaphore_mem>>
    tpu.wait_dma2 semaphore(%51 : memref<!tpu.dma_semaphore, #tpu.memory_space<semaphore_mem>>) src(%arg8 : memref<128x128xbf16, #tpu.memory_space<any>>) dst(%arg29 : memref<128x128xbf16, #tpu.memory_space<vmem>>)
    %c6_i32_6 = arith.constant 6 : i32
    %52 = tpu.memref_slice %arg44[%c6_i32_6] : memref<20x!tpu.dma_semaphore, #tpu.memory_space<semaphore_mem>> -> memref<1x!tpu.dma_semaphore, #tpu.memory_space<semaphore_mem>>
    %53 = tpu.memref_squeeze %52 : memref<1x!tpu.dma_semaphore, #tpu.memory_space<semaphore_mem>> -> memref<!tpu.dma_semaphore, #tpu.memory_space<semaphore_mem>>
    tpu.wait_dma2 semaphore(%53 : memref<!tpu.dma_semaphore, #tpu.memory_space<semaphore_mem>>) src(%arg9 : memref<128x128xbf16, #tpu.memory_space<any>>) dst(%arg30 : memref<128x128xbf16, #tpu.memory_space<vmem>>)
    %c7_i32_7 = arith.constant 7 : i32
    %54 = tpu.memref_slice %arg44[%c7_i32_7] : memref<20x!tpu.dma_semaphore, #tpu.memory_space<semaphore_mem>> -> memref<1x!tpu.dma_semaphore, #tpu.memory_space<semaphore_mem>>
    %55 = tpu.memref_squeeze %54 : memref<1x!tpu.dma_semaphore, #tpu.memory_space<semaphore_mem>> -> memref<!tpu.dma_semaphore, #tpu.memory_space<semaphore_mem>>
    tpu.wait_dma2 semaphore(%55 : memref<!tpu.dma_semaphore, #tpu.memory_space<semaphore_mem>>) src(%arg10 : memref<128x128xbf16, #tpu.memory_space<any>>) dst(%arg31 : memref<128x128xbf16, #tpu.memory_space<vmem>>)
    %c8_i32_8 = arith.constant 8 : i32
    %56 = tpu.memref_slice %arg44[%c8_i32_8] : memref<20x!tpu.dma_semaphore, #tpu.memory_space<semaphore_mem>> -> memref<1x!tpu.dma_semaphore, #tpu.memory_space<semaphore_mem>>
    %57 = tpu.memref_squeeze %56 : memref<1x!tpu.dma_semaphore, #tpu.memory_space<semaphore_mem>> -> memref<!tpu.dma_semaphore, #tpu.memory_space<semaphore_mem>>
    tpu.wait_dma2 semaphore(%57 : memref<!tpu.dma_semaphore, #tpu.memory_space<semaphore_mem>>) src(%arg11 : memref<1x128xf32, #tpu.memory_space<any>>) dst(%arg32 : memref<1x128xf32, #tpu.memory_space<vmem>>)
    %c9_i32_9 = arith.constant 9 : i32
    %58 = tpu.memref_slice %arg44[%c9_i32_9] : memref<20x!tpu.dma_semaphore, #tpu.memory_space<semaphore_mem>> -> memref<1x!tpu.dma_semaphore, #tpu.memory_space<semaphore_mem>>
    %59 = tpu.memref_squeeze %58 : memref<1x!tpu.dma_semaphore, #tpu.memory_space<semaphore_mem>> -> memref<!tpu.dma_semaphore, #tpu.memory_space<semaphore_mem>>
    tpu.wait_dma2 semaphore(%59 : memref<!tpu.dma_semaphore, #tpu.memory_space<semaphore_mem>>) src(%arg12 : memref<1x128xf32, #tpu.memory_space<any>>) dst(%arg33 : memref<1x128xf32, #tpu.memory_space<vmem>>)
    %c10_i32_10 = arith.constant 10 : i32
    %60 = tpu.memref_slice %arg44[%c10_i32_10] : memref<20x!tpu.dma_semaphore, #tpu.memory_space<semaphore_mem>> -> memref<1x!tpu.dma_semaphore, #tpu.memory_space<semaphore_mem>>
    %61 = tpu.memref_squeeze %60 : memref<1x!tpu.dma_semaphore, #tpu.memory_space<semaphore_mem>> -> memref<!tpu.dma_semaphore, #tpu.memory_space<semaphore_mem>>
    tpu.wait_dma2 semaphore(%61 : memref<!tpu.dma_semaphore, #tpu.memory_space<semaphore_mem>>) src(%arg13 : memref<1x128xf32, #tpu.memory_space<any>>) dst(%arg34 : memref<1x128xf32, #tpu.memory_space<vmem>>)
    %c11_i32_11 = arith.constant 11 : i32
    %62 = tpu.memref_slice %arg44[%c11_i32_11] : memref<20x!tpu.dma_semaphore, #tpu.memory_space<semaphore_mem>> -> memref<1x!tpu.dma_semaphore, #tpu.memory_space<semaphore_mem>>
    %63 = tpu.memref_squeeze %62 : memref<1x!tpu.dma_semaphore, #tpu.memory_space<semaphore_mem>> -> memref<!tpu.dma_semaphore, #tpu.memory_space<semaphore_mem>>
    tpu.wait_dma2 semaphore(%63 : memref<!tpu.dma_semaphore, #tpu.memory_space<semaphore_mem>>) src(%arg14 : memref<128x384xbf16, #tpu.memory_space<any>>) dst(%arg35 : memref<128x384xbf16, #tpu.memory_space<vmem>>)
    %c12_i32_12 = arith.constant 12 : i32
    %64 = tpu.memref_slice %arg44[%c12_i32_12] : memref<20x!tpu.dma_semaphore, #tpu.memory_space<semaphore_mem>> -> memref<1x!tpu.dma_semaphore, #tpu.memory_space<semaphore_mem>>
    %65 = tpu.memref_squeeze %64 : memref<1x!tpu.dma_semaphore, #tpu.memory_space<semaphore_mem>> -> memref<!tpu.dma_semaphore, #tpu.memory_space<semaphore_mem>>
    tpu.wait_dma2 semaphore(%65 : memref<!tpu.dma_semaphore, #tpu.memory_space<semaphore_mem>>) src(%arg15 : memref<128x128xbf16, #tpu.memory_space<any>>) dst(%arg36 : memref<128x128xbf16, #tpu.memory_space<vmem>>)
    %c13_i32_13 = arith.constant 13 : i32
    %66 = tpu.memref_slice %arg44[%c13_i32_13] : memref<20x!tpu.dma_semaphore, #tpu.memory_space<semaphore_mem>> -> memref<1x!tpu.dma_semaphore, #tpu.memory_space<semaphore_mem>>
    %67 = tpu.memref_squeeze %66 : memref<1x!tpu.dma_semaphore, #tpu.memory_space<semaphore_mem>> -> memref<!tpu.dma_semaphore, #tpu.memory_space<semaphore_mem>>
    tpu.wait_dma2 semaphore(%67 : memref<!tpu.dma_semaphore, #tpu.memory_space<semaphore_mem>>) src(%arg16 : memref<1x128xf32, #tpu.memory_space<any>>) dst(%arg37 : memref<1x128xf32, #tpu.memory_space<vmem>>)
    %c14_i32_14 = arith.constant 14 : i32
    %68 = tpu.memref_slice %arg44[%c14_i32_14] : memref<20x!tpu.dma_semaphore, #tpu.memory_space<semaphore_mem>> -> memref<1x!tpu.dma_semaphore, #tpu.memory_space<semaphore_mem>>
    %69 = tpu.memref_squeeze %68 : memref<1x!tpu.dma_semaphore, #tpu.memory_space<semaphore_mem>> -> memref<!tpu.dma_semaphore, #tpu.memory_space<semaphore_mem>>
    tpu.wait_dma2 semaphore(%69 : memref<!tpu.dma_semaphore, #tpu.memory_space<semaphore_mem>>) src(%arg17 : memref<1x128xf32, #tpu.memory_space<any>>) dst(%arg38 : memref<1x128xf32, #tpu.memory_space<vmem>>)
    %c15_i32_15 = arith.constant 15 : i32
    %70 = tpu.memref_slice %arg44[%c15_i32_15] : memref<20x!tpu.dma_semaphore, #tpu.memory_space<semaphore_mem>> -> memref<1x!tpu.dma_semaphore, #tpu.memory_space<semaphore_mem>>
    %71 = tpu.memref_squeeze %70 : memref<1x!tpu.dma_semaphore, #tpu.memory_space<semaphore_mem>> -> memref<!tpu.dma_semaphore, #tpu.memory_space<semaphore_mem>>
    tpu.wait_dma2 semaphore(%71 : memref<!tpu.dma_semaphore, #tpu.memory_space<semaphore_mem>>) src(%arg18 : memref<1x128xf32, #tpu.memory_space<any>>) dst(%arg39 : memref<1x128xf32, #tpu.memory_space<vmem>>)
    %c16_i32_16 = arith.constant 16 : i32
    %72 = tpu.memref_slice %arg44[%c16_i32_16] : memref<20x!tpu.dma_semaphore, #tpu.memory_space<semaphore_mem>> -> memref<1x!tpu.dma_semaphore, #tpu.memory_space<semaphore_mem>>
    %73 = tpu.memref_squeeze %72 : memref<1x!tpu.dma_semaphore, #tpu.memory_space<semaphore_mem>> -> memref<!tpu.dma_semaphore, #tpu.memory_space<semaphore_mem>>
    tpu.wait_dma2 semaphore(%73 : memref<!tpu.dma_semaphore, #tpu.memory_space<semaphore_mem>>) src(%arg19 : memref<128x512xbf16, #tpu.memory_space<any>>) dst(%arg40 : memref<128x512xbf16, #tpu.memory_space<vmem>>)
    %c17_i32_17 = arith.constant 17 : i32
    %74 = tpu.memref_slice %arg44[%c17_i32_17] : memref<20x!tpu.dma_semaphore, #tpu.memory_space<semaphore_mem>> -> memref<1x!tpu.dma_semaphore, #tpu.memory_space<semaphore_mem>>
    %75 = tpu.memref_squeeze %74 : memref<1x!tpu.dma_semaphore, #tpu.memory_space<semaphore_mem>> -> memref<!tpu.dma_semaphore, #tpu.memory_space<semaphore_mem>>
    tpu.wait_dma2 semaphore(%75 : memref<!tpu.dma_semaphore, #tpu.memory_space<semaphore_mem>>) src(%arg20 : memref<1x512xf32, #tpu.memory_space<any>>) dst(%arg41 : memref<1x512xf32, #tpu.memory_space<vmem>>)
    %c18_i32_18 = arith.constant 18 : i32
    %76 = tpu.memref_slice %arg44[%c18_i32_18] : memref<20x!tpu.dma_semaphore, #tpu.memory_space<semaphore_mem>> -> memref<1x!tpu.dma_semaphore, #tpu.memory_space<semaphore_mem>>
    %77 = tpu.memref_squeeze %76 : memref<1x!tpu.dma_semaphore, #tpu.memory_space<semaphore_mem>> -> memref<!tpu.dma_semaphore, #tpu.memory_space<semaphore_mem>>
    tpu.wait_dma2 semaphore(%77 : memref<!tpu.dma_semaphore, #tpu.memory_space<semaphore_mem>>) src(%arg21 : memref<512x128xbf16, #tpu.memory_space<any>>) dst(%arg42 : memref<512x128xbf16, #tpu.memory_space<vmem>>)
    %c19_i32_19 = arith.constant 19 : i32
    %78 = tpu.memref_slice %arg44[%c19_i32_19] : memref<20x!tpu.dma_semaphore, #tpu.memory_space<semaphore_mem>> -> memref<1x!tpu.dma_semaphore, #tpu.memory_space<semaphore_mem>>
    %79 = tpu.memref_squeeze %78 : memref<1x!tpu.dma_semaphore, #tpu.memory_space<semaphore_mem>> -> memref<!tpu.dma_semaphore, #tpu.memory_space<semaphore_mem>>
    tpu.wait_dma2 semaphore(%79 : memref<!tpu.dma_semaphore, #tpu.memory_space<semaphore_mem>>) src(%arg22 : memref<1x128xf32, #tpu.memory_space<any>>) dst(%arg43 : memref<1x128xf32, #tpu.memory_space<vmem>>)
    %c0 = arith.constant 0 : index
    %c0_20 = arith.constant 0 : index
    %80 = vector.load %arg24[%c0, %c0_20] : memref<1x128xf32, #tpu.memory_space<vmem>>, vector<1x128xf32>
    %c0_21 = arith.constant 0 : index
    %c0_22 = arith.constant 0 : index
    %81 = vector.load %arg25[%c0_21, %c0_22] : memref<1x128xf32, #tpu.memory_space<vmem>>, vector<1x128xf32>
    %c0_23 = arith.constant 0 : index
    %c0_24 = arith.constant 0 : index
    %82 = vector.load %arg26[%c0_23, %c0_24] : memref<1x128xf32, #tpu.memory_space<vmem>>, vector<1x128xf32>
    %c0_25 = arith.constant 0 : index
    %c0_26 = arith.constant 0 : index
    %83 = vector.load %arg27[%c0_25, %c0_26] : memref<1x128xf32, #tpu.memory_space<vmem>>, vector<1x128xf32>
    %c0_27 = arith.constant 0 : index
    %c0_28 = arith.constant 0 : index
    %84 = vector.load %arg28[%c0_27, %c0_28] : memref<128x128xbf16, #tpu.memory_space<vmem>>, vector<128x128xbf16>
    %c0_29 = arith.constant 0 : index
    %c0_30 = arith.constant 0 : index
    %85 = vector.load %arg29[%c0_29, %c0_30] : memref<128x128xbf16, #tpu.memory_space<vmem>>, vector<128x128xbf16>
    %c0_31 = arith.constant 0 : index
    %c0_32 = arith.constant 0 : index
    %86 = vector.load %arg30[%c0_31, %c0_32] : memref<128x128xbf16, #tpu.memory_space<vmem>>, vector<128x128xbf16>
    %c0_33 = arith.constant 0 : index
    %c0_34 = arith.constant 0 : index
    %87 = vector.load %arg31[%c0_33, %c0_34] : memref<128x128xbf16, #tpu.memory_space<vmem>>, vector<128x128xbf16>
    %c0_35 = arith.constant 0 : index
    %c0_36 = arith.constant 0 : index
    %88 = vector.load %arg32[%c0_35, %c0_36] : memref<1x128xf32, #tpu.memory_space<vmem>>, vector<1x128xf32>
    %c0_37 = arith.constant 0 : index
    %c0_38 = arith.constant 0 : index
    %89 = vector.load %arg33[%c0_37, %c0_38] : memref<1x128xf32, #tpu.memory_space<vmem>>, vector<1x128xf32>
    %c0_39 = arith.constant 0 : index
    %c0_40 = arith.constant 0 : index
    %90 = vector.load %arg34[%c0_39, %c0_40] : memref<1x128xf32, #tpu.memory_space<vmem>>, vector<1x128xf32>
    %c0_41 = arith.constant 0 : index
    %c0_42 = arith.constant 0 : index
    %91 = vector.load %arg35[%c0_41, %c0_42] : memref<128x384xbf16, #tpu.memory_space<vmem>>, vector<128x384xbf16>
    %c0_43 = arith.constant 0 : index
    %c0_44 = arith.constant 0 : index
    %92 = vector.load %arg36[%c0_43, %c0_44] : memref<128x128xbf16, #tpu.memory_space<vmem>>, vector<128x128xbf16>
    %c0_45 = arith.constant 0 : index
    %c0_46 = arith.constant 0 : index
    %93 = vector.load %arg37[%c0_45, %c0_46] : memref<1x128xf32, #tpu.memory_space<vmem>>, vector<1x128xf32>
    %c0_47 = arith.constant 0 : index
    %c0_48 = arith.constant 0 : index
    %94 = vector.load %arg38[%c0_47, %c0_48] : memref<1x128xf32, #tpu.memory_space<vmem>>, vector<1x128xf32>
    %c0_49 = arith.constant 0 : index
    %c0_50 = arith.constant 0 : index
    %95 = vector.load %arg39[%c0_49, %c0_50] : memref<1x128xf32, #tpu.memory_space<vmem>>, vector<1x128xf32>
    %c0_51 = arith.constant 0 : index
    %c0_52 = arith.constant 0 : index
    %96 = vector.load %arg40[%c0_51, %c0_52] : memref<128x512xbf16, #tpu.memory_space<vmem>>, vector<128x512xbf16>
    %c0_53 = arith.constant 0 : index
    %c0_54 = arith.constant 0 : index
    %97 = vector.load %arg41[%c0_53, %c0_54] : memref<1x512xf32, #tpu.memory_space<vmem>>, vector<1x512xf32>
    %c0_55 = arith.constant 0 : index
    %c0_56 = arith.constant 0 : index
    %98 = vector.load %arg42[%c0_55, %c0_56] : memref<512x128xbf16, #tpu.memory_space<vmem>>, vector<512x128xbf16>
    %c0_57 = arith.constant 0 : index
    %c0_58 = arith.constant 0 : index
    %99 = vector.load %arg43[%c0_57, %c0_58] : memref<1x128xf32, #tpu.memory_space<vmem>>, vector<1x128xf32>
    %c0_59 = arith.constant 0 : index
    %c0_60 = arith.constant 0 : index
    %c0_61 = arith.constant 0 : index
    %100 = vector.load %arg1[%c0_59, %c0_60, %c0_61] : memref<1x8x128xf32, #tpu.memory_space<vmem>>, vector<1x8x128xf32>
    %101 = vector.shape_cast %100 : vector<1x8x128xf32> to vector<8x128xf32>
    %c0_62 = arith.constant 0 : index
    %c0_63 = arith.constant 0 : index
    %c0_64 = arith.constant 0 : index
    %102 = vector.load %arg2[%c0_62, %c0_63, %c0_64] : memref<1x8x128xf32, #tpu.memory_space<vmem>>, vector<1x8x128xf32>
    %103 = vector.shape_cast %102 : vector<1x8x128xf32> to vector<8x128xf32>
    %cst = arith.constant dense<0.000000e+00> : vector<8xf32>
    %104 = vector.multi_reduction <add>, %101, %cst [1] : vector<8x128xf32> to vector<8xf32>
    %105 = vector.shape_cast %104 : vector<8xf32> to vector<8x1xf32>
    %cst_65 = arith.constant 1.280000e+02 : f32
    %106 = vector.broadcast %cst_65 : f32 to vector<8x1xf32>
    %107 = arith.divf %105, %106 : vector<8x1xf32>
    %108 = vector.broadcast %107 : vector<8x1xf32> to vector<8x128xf32>
    %109 = arith.subf %101, %108 : vector<8x128xf32>
    %110 = arith.mulf %109, %109 : vector<8x128xf32>
    %cst_66 = arith.constant dense<0.000000e+00> : vector<8xf32>
    %111 = vector.multi_reduction <add>, %110, %cst_66 [1] : vector<8x128xf32> to vector<8xf32>
    %112 = vector.shape_cast %111 : vector<8xf32> to vector<8x1xf32>
    %cst_67 = arith.constant 1.280000e+02 : f32
    %113 = vector.broadcast %cst_67 : f32 to vector<8x1xf32>
    %114 = arith.divf %112, %113 : vector<8x1xf32>
    %cst_68 = arith.constant 9.99999974E-6 : f32
    %115 = vector.broadcast %cst_68 : f32 to vector<8x1xf32>
    %116 = arith.addf %114, %115 : vector<8x1xf32>
    %117 = math.rsqrt %116 : vector<8x1xf32>
    %118 = vector.broadcast %117 : vector<8x1xf32> to vector<8x128xf32>
    %119 = arith.mulf %109, %118 : vector<8x128xf32>
    %120 = vector.broadcast %80 : vector<1x128xf32> to vector<8x128xf32>
    %121 = arith.mulf %119, %120 : vector<8x128xf32>
    %122 = vector.broadcast %81 : vector<1x128xf32> to vector<8x128xf32>
    %123 = arith.addf %121, %122 : vector<8x128xf32>
    %cst_69 = arith.constant dense<0.000000e+00> : vector<8xf32>
    %124 = vector.multi_reduction <add>, %103, %cst_69 [1] : vector<8x128xf32> to vector<8xf32>
    %125 = vector.shape_cast %124 : vector<8xf32> to vector<8x1xf32>
    %cst_70 = arith.constant 1.280000e+02 : f32
    %126 = vector.broadcast %cst_70 : f32 to vector<8x1xf32>
    %127 = arith.divf %125, %126 : vector<8x1xf32>
    %128 = vector.broadcast %127 : vector<8x1xf32> to vector<8x128xf32>
    %129 = arith.subf %103, %128 : vector<8x128xf32>
    %130 = arith.mulf %129, %129 : vector<8x128xf32>
    %cst_71 = arith.constant dense<0.000000e+00> : vector<8xf32>
    %131 = vector.multi_reduction <add>, %130, %cst_71 [1] : vector<8x128xf32> to vector<8xf32>
    %132 = vector.shape_cast %131 : vector<8xf32> to vector<8x1xf32>
    %cst_72 = arith.constant 1.280000e+02 : f32
    %133 = vector.broadcast %cst_72 : f32 to vector<8x1xf32>
    %134 = arith.divf %132, %133 : vector<8x1xf32>
    %cst_73 = arith.constant 9.99999974E-6 : f32
    %135 = vector.broadcast %cst_73 : f32 to vector<8x1xf32>
    %136 = arith.addf %134, %135 : vector<8x1xf32>
    %137 = math.rsqrt %136 : vector<8x1xf32>
    %138 = vector.broadcast %137 : vector<8x1xf32> to vector<8x128xf32>
    %139 = arith.mulf %129, %138 : vector<8x128xf32>
    %140 = vector.broadcast %82 : vector<1x128xf32> to vector<8x128xf32>
    %141 = arith.mulf %139, %140 : vector<8x128xf32>
    %142 = vector.broadcast %83 : vector<1x128xf32> to vector<8x128xf32>
    %143 = arith.addf %141, %142 : vector<8x128xf32>
    %144 = arith.truncf %123 : vector<8x128xf32> to vector<8x128xbf16>
    %cst_74 = arith.constant dense<0.000000e+00> : vector<8x128xf32>
    %145 = tpu.matmul %144, %84, %cst_74 {dimension_numbers = #tpu.dot_dimension_numbers<[1], [0], [0], [1], [0, 0, 1, 1], [], []>} : vector<8x128xbf16>, vector<128x128xbf16>, vector<8x128xf32> -> vector<8x128xf32>
    %cst_75 = arith.constant 0.176776692 : f32
    %146 = vector.broadcast %cst_75 : f32 to vector<8x128xf32>
    %147 = arith.mulf %145, %146 : vector<8x128xf32>
    %148 = arith.truncf %143 : vector<8x128xf32> to vector<8x128xbf16>
    %cst_76 = arith.constant dense<0.000000e+00> : vector<8x128xf32>
    %149 = tpu.matmul %148, %85, %cst_76 {dimension_numbers = #tpu.dot_dimension_numbers<[1], [0], [0], [1], [0, 0, 1, 1], [], []>} : vector<8x128xbf16>, vector<128x128xbf16>, vector<8x128xf32> -> vector<8x128xf32>
    %150 = arith.truncf %143 : vector<8x128xf32> to vector<8x128xbf16>
    %cst_77 = arith.constant dense<0.000000e+00> : vector<8x128xf32>
    %151 = tpu.matmul %150, %86, %cst_77 {dimension_numbers = #tpu.dot_dimension_numbers<[1], [0], [0], [1], [0, 0, 1, 1], [], []>} : vector<8x128xbf16>, vector<128x128xbf16>, vector<8x128xf32> -> vector<8x128xf32>
    %152 = arith.truncf %147 : vector<8x128xf32> to vector<8x128xbf16>
    %153 = vector.extract_strided_slice %152 {offsets = [0, 0], sizes = [8, 32], strides = [1, 1]} : vector<8x128xbf16> to vector<8x32xbf16>
    %154 = vector.extract_strided_slice %152 {offsets = [0, 32], sizes = [8, 32], strides = [1, 1]} : vector<8x128xbf16> to vector<8x32xbf16>
    %155 = vector.extract_strided_slice %152 {offsets = [0, 64], sizes = [8, 32], strides = [1, 1]} : vector<8x128xbf16> to vector<8x32xbf16>
    %156 = vector.extract_strided_slice %152 {offsets = [0, 96], sizes = [8, 32], strides = [1, 1]} : vector<8x128xbf16> to vector<8x32xbf16>
    %157 = vector.shape_cast %153 : vector<8x32xbf16> to vector<1x8x32xbf16>
    %158 = vector.shape_cast %154 : vector<8x32xbf16> to vector<1x8x32xbf16>
    %159 = vector.shape_cast %155 : vector<8x32xbf16> to vector<1x8x32xbf16>
    %160 = vector.shape_cast %156 : vector<8x32xbf16> to vector<1x8x32xbf16>
    %161 = tpu.concatenate %157, %158, %159, %160 in 0 : vector<1x8x32xbf16>, vector<1x8x32xbf16>, vector<1x8x32xbf16>, vector<1x8x32xbf16> -> vector<4x8x32xbf16>
    %162 = arith.truncf %149 : vector<8x128xf32> to vector<8x128xbf16>
    %163 = vector.extract_strided_slice %162 {offsets = [0, 0], sizes = [8, 32], strides = [1, 1]} : vector<8x128xbf16> to vector<8x32xbf16>
    %164 = vector.extract_strided_slice %162 {offsets = [0, 32], sizes = [8, 32], strides = [1, 1]} : vector<8x128xbf16> to vector<8x32xbf16>
    %165 = vector.extract_strided_slice %162 {offsets = [0, 64], sizes = [8, 32], strides = [1, 1]} : vector<8x128xbf16> to vector<8x32xbf16>
    %166 = vector.extract_strided_slice %162 {offsets = [0, 96], sizes = [8, 32], strides = [1, 1]} : vector<8x128xbf16> to vector<8x32xbf16>
    %167 = vector.shape_cast %163 : vector<8x32xbf16> to vector<1x8x32xbf16>
    %168 = vector.shape_cast %164 : vector<8x32xbf16> to vector<1x8x32xbf16>
    %169 = vector.shape_cast %165 : vector<8x32xbf16> to vector<1x8x32xbf16>
    %170 = vector.shape_cast %166 : vector<8x32xbf16> to vector<1x8x32xbf16>
    %171 = tpu.concatenate %167, %168, %169, %170 in 0 : vector<1x8x32xbf16>, vector<1x8x32xbf16>, vector<1x8x32xbf16>, vector<1x8x32xbf16> -> vector<4x8x32xbf16>
    %172 = arith.truncf %151 : vector<8x128xf32> to vector<8x128xbf16>
    %173 = vector.extract_strided_slice %172 {offsets = [0, 0], sizes = [8, 32], strides = [1, 1]} : vector<8x128xbf16> to vector<8x32xbf16>
    %174 = vector.extract_strided_slice %172 {offsets = [0, 32], sizes = [8, 32], strides = [1, 1]} : vector<8x128xbf16> to vector<8x32xbf16>
    %175 = vector.extract_strided_slice %172 {offsets = [0, 64], sizes = [8, 32], strides = [1, 1]} : vector<8x128xbf16> to vector<8x32xbf16>
    %176 = vector.extract_strided_slice %172 {offsets = [0, 96], sizes = [8, 32], strides = [1, 1]} : vector<8x128xbf16> to vector<8x32xbf16>
    %177 = vector.shape_cast %173 : vector<8x32xbf16> to vector<1x8x32xbf16>
    %178 = vector.shape_cast %174 : vector<8x32xbf16> to vector<1x8x32xbf16>
    %179 = vector.shape_cast %175 : vector<8x32xbf16> to vector<1x8x32xbf16>
    %180 = vector.shape_cast %176 : vector<8x32xbf16> to vector<1x8x32xbf16>
    %181 = tpu.concatenate %177, %178, %179, %180 in 0 : vector<1x8x32xbf16>, vector<1x8x32xbf16>, vector<1x8x32xbf16>, vector<1x8x32xbf16> -> vector<4x8x32xbf16>
    "tpu.trace_start"() <{level = 10 : i32, message = "hnd,hmd->hnm"}> : () -> ()
    %cst_78 = arith.constant dense<0.000000e+00> : vector<4x8x8xf32>
    %182 = tpu.matmul %161, %171, %cst_78 {dimension_numbers = #tpu.dot_dimension_numbers<[2], [2], [1], [1], [0, 0, 0, 1, 1, 1], [0], [0]>} : vector<4x8x32xbf16>, vector<4x8x32xbf16>, vector<4x8x8xf32> -> vector<4x8x8xf32>
    "tpu.trace_stop"() : () -> ()
    %cst_79 = arith.constant dense<0xFF800000> : vector<4x8xf32>
    %183 = vector.multi_reduction <maximumf>, %182, %cst_79 [2] : vector<4x8x8xf32> to vector<4x8xf32>
    %184 = vector.shape_cast %183 : vector<4x8xf32> to vector<4x8x1xf32>
    %185 = vector.broadcast %184 : vector<4x8x1xf32> to vector<4x8x8xf32>
    %186 = arith.subf %182, %185 : vector<4x8x8xf32>
    %187 = math.exp %186 : vector<4x8x8xf32>
    %cst_80 = arith.constant dense<0.000000e+00> : vector<4x8xf32>
    %188 = vector.multi_reduction <add>, %187, %cst_80 [2] : vector<4x8x8xf32> to vector<4x8xf32>
    %189 = vector.shape_cast %188 : vector<4x8xf32> to vector<4x8x1xf32>
    %190 = tpu.reciprocal %189 {approx = true} : vector<4x8x1xf32> -> vector<4x8x1xf32>
    %191 = vector.broadcast %190 : vector<4x8x1xf32> to vector<4x8x8xf32>
    %192 = arith.mulf %187, %191 : vector<4x8x8xf32>
    %193 = arith.truncf %192 : vector<4x8x8xf32> to vector<4x8x8xbf16>
    "tpu.trace_start"() <{level = 10 : i32, message = "hnm,hmd->hnd"}> : () -> ()
    %cst_81 = arith.constant dense<0.000000e+00> : vector<4x8x32xf32>
    %194 = tpu.matmul %193, %181, %cst_81 {dimension_numbers = #tpu.dot_dimension_numbers<[2], [1], [1], [2], [0, 0, 0, 1, 1, 2], [0], [0]>} : vector<4x8x8xbf16>, vector<4x8x32xbf16>, vector<4x8x32xf32> -> vector<4x8x32xf32>
    "tpu.trace_stop"() : () -> ()
    %195 = vector.extract_strided_slice %194 {offsets = [0, 0, 0], sizes = [1, 8, 32], strides = [1, 1, 1]} : vector<4x8x32xf32> to vector<1x8x32xf32>
    %196 = vector.shape_cast %195 : vector<1x8x32xf32> to vector<8x32xf32>
    %197 = vector.extract_strided_slice %194 {offsets = [1, 0, 0], sizes = [1, 8, 32], strides = [1, 1, 1]} : vector<4x8x32xf32> to vector<1x8x32xf32>
    %198 = vector.shape_cast %197 : vector<1x8x32xf32> to vector<8x32xf32>
    %199 = vector.extract_strided_slice %194 {offsets = [2, 0, 0], sizes = [1, 8, 32], strides = [1, 1, 1]} : vector<4x8x32xf32> to vector<1x8x32xf32>
    %200 = vector.shape_cast %199 : vector<1x8x32xf32> to vector<8x32xf32>
    %201 = vector.extract_strided_slice %194 {offsets = [3, 0, 0], sizes = [1, 8, 32], strides = [1, 1, 1]} : vector<4x8x32xf32> to vector<1x8x32xf32>
    %202 = vector.shape_cast %201 : vector<1x8x32xf32> to vector<8x32xf32>
    %203 = tpu.concatenate %196, %198, %200, %202 in 1 : vector<8x32xf32>, vector<8x32xf32>, vector<8x32xf32>, vector<8x32xf32> -> vector<8x128xf32>
    %204 = arith.truncf %203 : vector<8x128xf32> to vector<8x128xbf16>
    %cst_82 = arith.constant dense<0.000000e+00> : vector<8x128xf32>
    %205 = tpu.matmul %204, %87, %cst_82 {dimension_numbers = #tpu.dot_dimension_numbers<[1], [0], [0], [1], [0, 0, 1, 1], [], []>} : vector<8x128xbf16>, vector<128x128xbf16>, vector<8x128xf32> -> vector<8x128xf32>
    %206 = arith.addf %101, %205 : vector<8x128xf32>
    %207 = vector.broadcast %88 : vector<1x128xf32> to vector<8x128xf32>
    %208 = arith.addf %206, %207 : vector<8x128xf32>
    %cst_83 = arith.constant dense<0.000000e+00> : vector<8xf32>
    %209 = vector.multi_reduction <add>, %208, %cst_83 [1] : vector<8x128xf32> to vector<8xf32>
    %210 = vector.shape_cast %209 : vector<8xf32> to vector<8x1xf32>
    %cst_84 = arith.constant 1.280000e+02 : f32
    %211 = vector.broadcast %cst_84 : f32 to vector<8x1xf32>
    %212 = arith.divf %210, %211 : vector<8x1xf32>
    %213 = vector.broadcast %212 : vector<8x1xf32> to vector<8x128xf32>
    %214 = arith.subf %208, %213 : vector<8x128xf32>
    %215 = arith.mulf %214, %214 : vector<8x128xf32>
    %cst_85 = arith.constant dense<0.000000e+00> : vector<8xf32>
    %216 = vector.multi_reduction <add>, %215, %cst_85 [1] : vector<8x128xf32> to vector<8xf32>
    %217 = vector.shape_cast %216 : vector<8xf32> to vector<8x1xf32>
    %cst_86 = arith.constant 1.280000e+02 : f32
    %218 = vector.broadcast %cst_86 : f32 to vector<8x1xf32>
    %219 = arith.divf %217, %218 : vector<8x1xf32>
    %cst_87 = arith.constant 9.99999974E-6 : f32
    %220 = vector.broadcast %cst_87 : f32 to vector<8x1xf32>
    %221 = arith.addf %219, %220 : vector<8x1xf32>
    %222 = math.rsqrt %221 : vector<8x1xf32>
    %223 = vector.broadcast %222 : vector<8x1xf32> to vector<8x128xf32>
    %224 = arith.mulf %214, %223 : vector<8x128xf32>
    %225 = vector.broadcast %89 : vector<1x128xf32> to vector<8x128xf32>
    %226 = arith.mulf %224, %225 : vector<8x128xf32>
    %227 = vector.broadcast %90 : vector<1x128xf32> to vector<8x128xf32>
    %228 = arith.addf %226, %227 : vector<8x128xf32>
    %229 = arith.truncf %228 : vector<8x128xf32> to vector<8x128xbf16>
    %cst_88 = arith.constant dense<0.000000e+00> : vector<8x384xf32>
    %230 = tpu.matmul %229, %91, %cst_88 {dimension_numbers = #tpu.dot_dimension_numbers<[1], [0], [0], [1], [0, 0, 1, 1], [], []>} : vector<8x128xbf16>, vector<128x384xbf16>, vector<8x384xf32> -> vector<8x384xf32>
    %231 = vector.extract_strided_slice %230 {offsets = [0, 0], sizes = [8, 128], strides = [1, 1]} : vector<8x384xf32> to vector<8x128xf32>
    %cst_89 = arith.constant 0.176776692 : f32
    %232 = vector.broadcast %cst_89 : f32 to vector<8x128xf32>
    %233 = arith.mulf %231, %232 : vector<8x128xf32>
    %234 = vector.extract_strided_slice %230 {offsets = [0, 128], sizes = [8, 128], strides = [1, 1]} : vector<8x384xf32> to vector<8x128xf32>
    %235 = vector.extract_strided_slice %230 {offsets = [0, 256], sizes = [8, 128], strides = [1, 1]} : vector<8x384xf32> to vector<8x128xf32>
    %236 = arith.truncf %233 : vector<8x128xf32> to vector<8x128xbf16>
    %237 = vector.extract_strided_slice %236 {offsets = [0, 0], sizes = [8, 32], strides = [1, 1]} : vector<8x128xbf16> to vector<8x32xbf16>
    %238 = vector.extract_strided_slice %236 {offsets = [0, 32], sizes = [8, 32], strides = [1, 1]} : vector<8x128xbf16> to vector<8x32xbf16>
    %239 = vector.extract_strided_slice %236 {offsets = [0, 64], sizes = [8, 32], strides = [1, 1]} : vector<8x128xbf16> to vector<8x32xbf16>
    %240 = vector.extract_strided_slice %236 {offsets = [0, 96], sizes = [8, 32], strides = [1, 1]} : vector<8x128xbf16> to vector<8x32xbf16>
    %241 = vector.shape_cast %237 : vector<8x32xbf16> to vector<1x8x32xbf16>
    %242 = vector.shape_cast %238 : vector<8x32xbf16> to vector<1x8x32xbf16>
    %243 = vector.shape_cast %239 : vector<8x32xbf16> to vector<1x8x32xbf16>
    %244 = vector.shape_cast %240 : vector<8x32xbf16> to vector<1x8x32xbf16>
    %245 = tpu.concatenate %241, %242, %243, %244 in 0 : vector<1x8x32xbf16>, vector<1x8x32xbf16>, vector<1x8x32xbf16>, vector<1x8x32xbf16> -> vector<4x8x32xbf16>
    %246 = arith.truncf %234 : vector<8x128xf32> to vector<8x128xbf16>
    %247 = vector.extract_strided_slice %246 {offsets = [0, 0], sizes = [8, 32], strides = [1, 1]} : vector<8x128xbf16> to vector<8x32xbf16>
    %248 = vector.extract_strided_slice %246 {offsets = [0, 32], sizes = [8, 32], strides = [1, 1]} : vector<8x128xbf16> to vector<8x32xbf16>
    %249 = vector.extract_strided_slice %246 {offsets = [0, 64], sizes = [8, 32], strides = [1, 1]} : vector<8x128xbf16> to vector<8x32xbf16>
    %250 = vector.extract_strided_slice %246 {offsets = [0, 96], sizes = [8, 32], strides = [1, 1]} : vector<8x128xbf16> to vector<8x32xbf16>
    %251 = vector.shape_cast %247 : vector<8x32xbf16> to vector<1x8x32xbf16>
    %252 = vector.shape_cast %248 : vector<8x32xbf16> to vector<1x8x32xbf16>
    %253 = vector.shape_cast %249 : vector<8x32xbf16> to vector<1x8x32xbf16>
    %254 = vector.shape_cast %250 : vector<8x32xbf16> to vector<1x8x32xbf16>
    %255 = tpu.concatenate %251, %252, %253, %254 in 0 : vector<1x8x32xbf16>, vector<1x8x32xbf16>, vector<1x8x32xbf16>, vector<1x8x32xbf16> -> vector<4x8x32xbf16>
    %256 = arith.truncf %235 : vector<8x128xf32> to vector<8x128xbf16>
    %257 = vector.extract_strided_slice %256 {offsets = [0, 0], sizes = [8, 32], strides = [1, 1]} : vector<8x128xbf16> to vector<8x32xbf16>
    %258 = vector.extract_strided_slice %256 {offsets = [0, 32], sizes = [8, 32], strides = [1, 1]} : vector<8x128xbf16> to vector<8x32xbf16>
    %259 = vector.extract_strided_slice %256 {offsets = [0, 64], sizes = [8, 32], strides = [1, 1]} : vector<8x128xbf16> to vector<8x32xbf16>
    %260 = vector.extract_strided_slice %256 {offsets = [0, 96], sizes = [8, 32], strides = [1, 1]} : vector<8x128xbf16> to vector<8x32xbf16>
    %261 = vector.shape_cast %257 : vector<8x32xbf16> to vector<1x8x32xbf16>
    %262 = vector.shape_cast %258 : vector<8x32xbf16> to vector<1x8x32xbf16>
    %263 = vector.shape_cast %259 : vector<8x32xbf16> to vector<1x8x32xbf16>
    %264 = vector.shape_cast %260 : vector<8x32xbf16> to vector<1x8x32xbf16>
    %265 = tpu.concatenate %261, %262, %263, %264 in 0 : vector<1x8x32xbf16>, vector<1x8x32xbf16>, vector<1x8x32xbf16>, vector<1x8x32xbf16> -> vector<4x8x32xbf16>
    "tpu.trace_start"() <{level = 10 : i32, message = "hnd,hmd->hnm"}> : () -> ()
    %cst_90 = arith.constant dense<0.000000e+00> : vector<4x8x8xf32>
    %266 = tpu.matmul %245, %255, %cst_90 {dimension_numbers = #tpu.dot_dimension_numbers<[2], [2], [1], [1], [0, 0, 0, 1, 1, 1], [0], [0]>} : vector<4x8x32xbf16>, vector<4x8x32xbf16>, vector<4x8x8xf32> -> vector<4x8x8xf32>
    "tpu.trace_stop"() : () -> ()
    %cst_91 = arith.constant dense<0xFF800000> : vector<4x8xf32>
    %267 = vector.multi_reduction <maximumf>, %266, %cst_91 [2] : vector<4x8x8xf32> to vector<4x8xf32>
    %268 = vector.shape_cast %267 : vector<4x8xf32> to vector<4x8x1xf32>
    %269 = vector.broadcast %268 : vector<4x8x1xf32> to vector<4x8x8xf32>
    %270 = arith.subf %266, %269 : vector<4x8x8xf32>
    %271 = math.exp %270 : vector<4x8x8xf32>
    %cst_92 = arith.constant dense<0.000000e+00> : vector<4x8xf32>
    %272 = vector.multi_reduction <add>, %271, %cst_92 [2] : vector<4x8x8xf32> to vector<4x8xf32>
    %273 = vector.shape_cast %272 : vector<4x8xf32> to vector<4x8x1xf32>
    %274 = tpu.reciprocal %273 {approx = true} : vector<4x8x1xf32> -> vector<4x8x1xf32>
    %275 = vector.broadcast %274 : vector<4x8x1xf32> to vector<4x8x8xf32>
    %276 = arith.mulf %271, %275 : vector<4x8x8xf32>
    %277 = arith.truncf %276 : vector<4x8x8xf32> to vector<4x8x8xbf16>
    "tpu.trace_start"() <{level = 10 : i32, message = "hnm,hmd->hnd"}> : () -> ()
    %cst_93 = arith.constant dense<0.000000e+00> : vector<4x8x32xf32>
    %278 = tpu.matmul %277, %265, %cst_93 {dimension_numbers = #tpu.dot_dimension_numbers<[2], [1], [1], [2], [0, 0, 0, 1, 1, 2], [0], [0]>} : vector<4x8x8xbf16>, vector<4x8x32xbf16>, vector<4x8x32xf32> -> vector<4x8x32xf32>
    "tpu.trace_stop"() : () -> ()
    %279 = vector.extract_strided_slice %278 {offsets = [0, 0, 0], sizes = [1, 8, 32], strides = [1, 1, 1]} : vector<4x8x32xf32> to vector<1x8x32xf32>
    %280 = vector.shape_cast %279 : vector<1x8x32xf32> to vector<8x32xf32>
    %281 = vector.extract_strided_slice %278 {offsets = [1, 0, 0], sizes = [1, 8, 32], strides = [1, 1, 1]} : vector<4x8x32xf32> to vector<1x8x32xf32>
    %282 = vector.shape_cast %281 : vector<1x8x32xf32> to vector<8x32xf32>
    %283 = vector.extract_strided_slice %278 {offsets = [2, 0, 0], sizes = [1, 8, 32], strides = [1, 1, 1]} : vector<4x8x32xf32> to vector<1x8x32xf32>
    %284 = vector.shape_cast %283 : vector<1x8x32xf32> to vector<8x32xf32>
    %285 = vector.extract_strided_slice %278 {offsets = [3, 0, 0], sizes = [1, 8, 32], strides = [1, 1, 1]} : vector<4x8x32xf32> to vector<1x8x32xf32>
    %286 = vector.shape_cast %285 : vector<1x8x32xf32> to vector<8x32xf32>
    %287 = tpu.concatenate %280, %282, %284, %286 in 1 : vector<8x32xf32>, vector<8x32xf32>, vector<8x32xf32>, vector<8x32xf32> -> vector<8x128xf32>
    %288 = arith.truncf %287 : vector<8x128xf32> to vector<8x128xbf16>
    %cst_94 = arith.constant dense<0.000000e+00> : vector<8x128xf32>
    %289 = tpu.matmul %288, %92, %cst_94 {dimension_numbers = #tpu.dot_dimension_numbers<[1], [0], [0], [1], [0, 0, 1, 1], [], []>} : vector<8x128xbf16>, vector<128x128xbf16>, vector<8x128xf32> -> vector<8x128xf32>
    %290 = arith.addf %208, %289 : vector<8x128xf32>
    %291 = vector.broadcast %93 : vector<1x128xf32> to vector<8x128xf32>
    %292 = arith.addf %290, %291 : vector<8x128xf32>
    %cst_95 = arith.constant dense<0.000000e+00> : vector<8xf32>
    %293 = vector.multi_reduction <add>, %292, %cst_95 [1] : vector<8x128xf32> to vector<8xf32>
    %294 = vector.shape_cast %293 : vector<8xf32> to vector<8x1xf32>
    %cst_96 = arith.constant 1.280000e+02 : f32
    %295 = vector.broadcast %cst_96 : f32 to vector<8x1xf32>
    %296 = arith.divf %294, %295 : vector<8x1xf32>
    %297 = vector.broadcast %296 : vector<8x1xf32> to vector<8x128xf32>
    %298 = arith.subf %292, %297 : vector<8x128xf32>
    %299 = arith.mulf %298, %298 : vector<8x128xf32>
    %cst_97 = arith.constant dense<0.000000e+00> : vector<8xf32>
    %300 = vector.multi_reduction <add>, %299, %cst_97 [1] : vector<8x128xf32> to vector<8xf32>
    %301 = vector.shape_cast %300 : vector<8xf32> to vector<8x1xf32>
    %cst_98 = arith.constant 1.280000e+02 : f32
    %302 = vector.broadcast %cst_98 : f32 to vector<8x1xf32>
    %303 = arith.divf %301, %302 : vector<8x1xf32>
    %cst_99 = arith.constant 9.99999974E-6 : f32
    %304 = vector.broadcast %cst_99 : f32 to vector<8x1xf32>
    %305 = arith.addf %303, %304 : vector<8x1xf32>
    %306 = math.rsqrt %305 : vector<8x1xf32>
    %307 = vector.broadcast %306 : vector<8x1xf32> to vector<8x128xf32>
    %308 = arith.mulf %298, %307 : vector<8x128xf32>
    %309 = vector.broadcast %94 : vector<1x128xf32> to vector<8x128xf32>
    %310 = arith.mulf %308, %309 : vector<8x128xf32>
    %311 = vector.broadcast %95 : vector<1x128xf32> to vector<8x128xf32>
    %312 = arith.addf %310, %311 : vector<8x128xf32>
    %313 = arith.truncf %312 : vector<8x128xf32> to vector<8x128xbf16>
    %cst_100 = arith.constant dense<0.000000e+00> : vector<8x512xf32>
    %314 = tpu.matmul %313, %96, %cst_100 {dimension_numbers = #tpu.dot_dimension_numbers<[1], [0], [0], [1], [0, 0, 1, 1], [], []>} : vector<8x128xbf16>, vector<128x512xbf16>, vector<8x512xf32> -> vector<8x512xf32>
    %315 = vector.broadcast %97 : vector<1x512xf32> to vector<8x512xf32>
    %316 = arith.addf %314, %315 : vector<8x512xf32>
    %317 = arith.mulf %316, %316 : vector<8x512xf32>
    %318 = arith.mulf %316, %317 : vector<8x512xf32>
    %cst_101 = arith.constant 4.471500e-02 : f32
    %319 = vector.broadcast %cst_101 : f32 to vector<8x512xf32>
    %320 = arith.mulf %319, %318 : vector<8x512xf32>
    %321 = arith.addf %316, %320 : vector<8x512xf32>
    %cst_102 = arith.constant 0.797884583 : f32
    %322 = vector.broadcast %cst_102 : f32 to vector<8x512xf32>
    %323 = arith.mulf %322, %321 : vector<8x512xf32>
    %324 = math.tanh %323 : vector<8x512xf32>
    %cst_103 = arith.constant 1.000000e+00 : f32
    %325 = vector.broadcast %cst_103 : f32 to vector<8x512xf32>
    %326 = arith.addf %325, %324 : vector<8x512xf32>
    %cst_104 = arith.constant 5.000000e-01 : f32
    %327 = vector.broadcast %cst_104 : f32 to vector<8x512xf32>
    %328 = arith.mulf %327, %326 : vector<8x512xf32>
    %329 = arith.mulf %316, %328 : vector<8x512xf32>
    %330 = arith.truncf %329 : vector<8x512xf32> to vector<8x512xbf16>
    %cst_105 = arith.constant dense<0.000000e+00> : vector<8x128xf32>
    %331 = tpu.matmul %330, %98, %cst_105 {dimension_numbers = #tpu.dot_dimension_numbers<[1], [0], [0], [1], [0, 0, 1, 1], [], []>} : vector<8x512xbf16>, vector<512x128xbf16>, vector<8x128xf32> -> vector<8x128xf32>
    %332 = arith.addf %292, %331 : vector<8x128xf32>
    %333 = vector.broadcast %99 : vector<1x128xf32> to vector<8x128xf32>
    %334 = arith.addf %332, %333 : vector<8x128xf32>
    %c0_106 = arith.constant 0 : index
    %c0_107 = arith.constant 0 : index
    %c0_108 = arith.constant 0 : index
    %335 = vector.load %arg23[%c0_106, %c0_107, %c0_108] : memref<1x8x128xf32, #tpu.memory_space<vmem>>, vector<1x8x128xf32>
    %336 = vector.shape_cast %335 : vector<1x8x128xf32> to vector<8x128xf32>
    %337 = vector.shape_cast %334 : vector<8x128xf32> to vector<1x8x128xf32>
    tpu.vector_store %arg23[%c0_106, %c0_107, %c0_108], %337 {strides = array<i32>} : memref<1x8x128xf32, #tpu.memory_space<vmem>>, vector<1x8x128xf32>,
    return
  }
  func.func @transform_0(%arg0: i32) -> (i32, i32, i32) {
    %c0_i32 = arith.constant 0 : i32
    %c0_i32_0 = arith.constant 0 : i32
    %c0_i32_1 = arith.constant 0 : i32
    return %arg0, %c0_i32, %c0_i32_0 : i32, i32, i32
  }
  func.func @transform_1(%arg0: i32) -> (i32, i32, i32) {
    %c0_i32 = arith.constant 0 : i32
    %c0_i32_0 = arith.constant 0 : i32
    %c0_i32_1 = arith.constant 0 : i32
    return %arg0, %c0_i32, %c0_i32_0 : i32, i32, i32
  }
  func.func @transform_22(%arg0: i32) -> (i32, i32, i32) {
    %c0_i32 = arith.constant 0 : i32
    %c0_i32_0 = arith.constant 0 : i32
    %c0_i32_1 = arith.constant 0 : i32
    return %arg0, %c0_i32, %c0_i32_0 : i32, i32, i32
  }
}

</mosaic_0001>

<llo_original>
// kernel: tpu_custom_call.1
$region0: #{tpu_custom_call.1}
  #allocation0 [shape = 'u32[]', space=smem, size = 0x4, offset = 0x4, fixed_abs, tag = 'smem constant byte address 0x4 - core index']
  #allocation1 [shape = 'u32[144,128]{1,0:T(1,128)}', space=vmem, size = 0x12000, scoped, tag = 'internal scratch']
  %s0 = inlined_call_operand.hbm [shape: f32[8,128], index: 0, kind: input, shape index: {}]
  %s1 = inlined_call_operand.hbm [shape: f32[8,128], index: 1, kind: output, shape index: {}]
  %s2 = sld [smem:[#allocation0]]
  $region18: #{tpu_custom_call.1} parent=0
    _
  %s4 = ssub.s32 1, %s2
  %s5 = scalar_select 0, %s4, %s2
  $region1: #{tpu_custom_call.1} parent=0
    #allocation2 [shape = 'u8[4096]{0}', space=vmem, size = 0x1000, scoped, tag = 'input window, operand 0, single buffered']
    #allocation3 [shape = 's32[1]{0}', space=sflag, size = 0x4, scoped, tag = 'scoped memory for tpu_custom_call.1']
    #allocation4 [shape = 's32[1]{0}', space=sflag, size = 0x4, scoped, tag = 'scoped memory for tpu_custom_call.1']
    #allocation5 [shape = 'u8[4096]{0}', space=vmem, size = 0x1000, scoped, tag = 'output window, operand 0, single buffered']
    %6 = vsyncpa [#allocation3], 0
    %7 = vsyncpa [#allocation4], 0
    // Predicated region
    $region2: #{tpu_custom_call.1} parent=1 // pred_check
      _
    $region3: #{tpu_custom_call.1} parent=1 // pred_check_branch
      %9 = sbr.rel (0) target = $region5
    $region4: #{tpu_custom_call.1} parent=1 // pred_region
      %s11 = ssub.s32 128, 128
      %12 = vsyncadd [#allocation3], %s11
      %s14 = sshll.u32 [#allocation2], 4
      %s15 = int_to_ptr.vmem [resolvable:$true] %s14
      %17 = dma.hbm_to_vmem [thread:$0]  %s0, 128, %s15, [#allocation3]
    $region5: #{tpu_custom_call.1} parent=1 // pred_fallthru
      _
    // Predicated region
    $region6: #{tpu_custom_call.1} parent=1 // pred_check
      _
    $region7: #{tpu_custom_call.1} parent=1 // pred_check_branch
      %19 = sbr.rel (0) target = $region9
    $region8: #{tpu_custom_call.1} parent=1 // pred_region
      %20 = dma.done [#allocation3], 128
    $region9: #{tpu_custom_call.1} parent=1 // pred_fallthru
      _
    %v21 = vld [vmem:[#allocation2] sm:$0xff]
    %v22 = verf.f32.pop %v21
    %23 = vst [vmem:[#allocation5] sm:$0xff] %v22
    // Predicated region
    $region10: #{tpu_custom_call.1} parent=1 // pred_check
      _
    $region11: #{tpu_custom_call.1} parent=1 // pred_check_branch
      %25 = sbr.rel (0) target = $region13
    $region12: #{tpu_custom_call.1} parent=1 // pred_region
      %s27 = ssub.s32 128, 128
      %28 = vsyncadd [#allocation4], %s27
      %s30 = sshll.u32 [#allocation5], 4
      %s31 = int_to_ptr.vmem [resolvable:$true] %s30
      %33 = dma.vmem_to_hbm [thread:$0]  %s31, 128, %s1, [#allocation4]
    $region13: #{tpu_custom_call.1} parent=1 // pred_fallthru
      _
    // Predicated region
    $region14: #{tpu_custom_call.1} parent=1 // pred_check
      _
    $region15: #{tpu_custom_call.1} parent=1 // pred_check_branch
      %35 = sbr.rel (0) target = $region17
    $region16: #{tpu_custom_call.1} parent=1 // pred_region
      %36 = dma.done [#allocation4], 128
    $region17: #{tpu_custom_call.1} parent=1 // pred_fallthru
      _
    %37 = vsyncpa [#allocation3], 1
    %38 = vsyncpa [#allocation4], 1

// kernel: tpu_custom_call.1
$region0: #{tpu_custom_call.1}
  #allocation0 [shape = 'u32[]', space=smem, size = 0x4, offset = 0x4, fixed_abs, tag = 'smem constant byte address 0x4 - core index']
  #allocation1 [shape = 'u32[144,128]{1,0:T(1,128)}', space=vmem, size = 0x12000, scoped, tag = 'internal scratch']
  #allocation2 [shape = 'f32[1,128]{1,0:T(1,128)}', space=vmem, size = 0x200, scoped, tag = 'scratch operand']
  #allocation3 [shape = 'f32[1,128]{1,0:T(1,128)}', space=vmem, size = 0x200, scoped, tag = 'scratch operand']
  #allocation4 [shape = 'f32[1,128]{1,0:T(1,128)}', space=vmem, size = 0x200, scoped, tag = 'scratch operand']
  #allocation5 [shape = 'f32[1,128]{1,0:T(1,128)}', space=vmem, size = 0x200, scoped, tag = 'scratch operand']
  #allocation6 [shape = 'bf16[128,128]{1,0:T(16,128)(2,1)}', space=vmem, size = 0x8000, scoped, tag = 'scratch operand']
  #allocation7 [shape = 'bf16[128,128]{1,0:T(16,128)(2,1)}', space=vmem, size = 0x8000, scoped, tag = 'scratch operand']
  #allocation8 [shape = 'bf16[128,128]{1,0:T(16,128)(2,1)}', space=vmem, size = 0x8000, scoped, tag = 'scratch operand']
  #allocation9 [shape = 'bf16[128,128]{1,0:T(16,128)(2,1)}', space=vmem, size = 0x8000, scoped, tag = 'scratch operand']
  #allocation10 [shape = 'f32[1,128]{1,0:T(1,128)}', space=vmem, size = 0x200, scoped, tag = 'scratch operand']
  #allocation11 [shape = 'f32[1,128]{1,0:T(1,128)}', space=vmem, size = 0x200, scoped, tag = 'scratch operand']
  #allocation12 [shape = 'f32[1,128]{1,0:T(1,128)}', space=vmem, size = 0x200, scoped, tag = 'scratch operand']
  #allocation13 [shape = 'bf16[128,384]{1,0:T(16,128)(2,1)}', space=vmem, size = 0x18000, scoped, tag = 'scratch operand']
  #allocation14 [shape = 'bf16[128,128]{1,0:T(16,128)(2,1)}', space=vmem, size = 0x8000, scoped, tag = 'scratch operand']
  #allocation15 [shape = 'f32[1,128]{1,0:T(1,128)}', space=vmem, size = 0x200, scoped, tag = 'scratch operand']
  #allocation16 [shape = 'f32[1,128]{1,0:T(1,128)}', space=vmem, size = 0x200, scoped, tag = 'scratch operand']
  #allocation17 [shape = 'f32[1,128]{1,0:T(1,128)}', space=vmem, size = 0x200, scoped, tag = 'scratch operand']
  #allocation18 [shape = 'bf16[128,512]{1,0:T(16,128)(2,1)}', space=vmem, size = 0x20000, scoped, tag = 'scratch operand']
  #allocation19 [shape = 'f32[1,512]{1,0:T(1,128)}', space=vmem, size = 0x800, scoped, tag = 'scratch operand']
  #allocation20 [shape = 'bf16[512,128]{1,0:T(16,128)(2,1)}', space=vmem, size = 0x20000, scoped, tag = 'scratch operand']
  #allocation21 [shape = 'f32[1,128]{1,0:T(1,128)}', space=vmem, size = 0x200, scoped, tag = 'scratch operand']
  #allocation22 [shape = 's32[20]{0}', space=sflag, size = 0x50, scoped, tag = 'scratch operand']
  #allocation29 [shape = 's32[]', space=sflag, size = 0x4, offset = 0, fixed_abs, tag = 'sflag constant byte address 0x0 - dummy sync flag']
  #allocation30 [shape = 's32[]', space=sflag, size = 0x4, offset = 0, fixed_abs, tag = 'sflag constant byte address 0x0 - dummy sync flag']
  #allocation31 [shape = 'u32[]', space=smem, size = 0x4, offset = 0x44, fixed_abs, tag = 'smem constant byte address 0x44 - assertion arg 0']
  #allocation32 [shape = 'u32[]', space=smem, size = 0x4, offset = 0x48, fixed_abs, tag = 'smem constant byte address 0x48 - assertion arg 1']
  #allocation33 [shape = 's32[]', space=sflag, size = 0x4, offset = 0, fixed_abs, tag = 'sflag constant byte address 0x0 - dummy sync flag']
  #allocation34 [shape = 's32[]', space=sflag, size = 0x4, offset = 0, fixed_abs, tag = 'sflag constant byte address 0x0 - dummy sync flag']
  #allocation35 [shape = 's32[]', space=sflag, size = 0x4, offset = 0, fixed_abs, tag = 'sflag constant byte address 0x0 - dummy sync flag']
  #allocation36 [shape = 's32[]', space=sflag, size = 0x4, offset = 0, fixed_abs, tag = 'sflag constant byte address 0x0 - dummy sync flag']
  #allocation37 [shape = 's32[]', space=sflag, size = 0x4, offset = 0, fixed_abs, tag = 'sflag constant byte address 0x0 - dummy sync flag']
  #allocation38 [shape = 's32[]', space=sflag, size = 0x4, offset = 0, fixed_abs, tag = 'sflag constant byte address 0x0 - dummy sync flag']
  #allocation39 [shape = 's32[]', space=sflag, size = 0x4, offset = 0, fixed_abs, tag = 'sflag constant byte address 0x0 - dummy sync flag']
  #allocation40 [shape = 's32[]', space=sflag, size = 0x4, offset = 0, fixed_abs, tag = 'sflag constant byte address 0x0 - dummy sync flag']
  #allocation41 [shape = 's32[]', space=sflag, size = 0x4, offset = 0, fixed_abs, tag = 'sflag constant byte address 0x0 - dummy sync flag']
  #allocation42 [shape = 's32[]', space=sflag, size = 0x4, offset = 0, fixed_abs, tag = 'sflag constant byte address 0x0 - dummy sync flag']
  #allocation43 [shape = 's32[]', space=sflag, size = 0x4, offset = 0, fixed_abs, tag = 'sflag constant byte address 0x0 - dummy sync flag']
  #allocation44 [shape = 's32[]', space=sflag, size = 0x4, offset = 0, fixed_abs, tag = 'sflag constant byte address 0x0 - dummy sync flag']
  #allocation45 [shape = 's32[]', space=sflag, size = 0x4, offset = 0, fixed_abs, tag = 'sflag constant byte address 0x0 - dummy sync flag']
  #allocation46 [shape = 's32[]', space=sflag, size = 0x4, offset = 0, fixed_abs, tag = 'sflag constant byte address 0x0 - dummy sync flag']
  #allocation47 [shape = 's32[]', space=sflag, size = 0x4, offset = 0, fixed_abs, tag = 'sflag constant byte address 0x0 - dummy sync flag']
  #allocation48 [shape = 's32[]', space=sflag, size = 0x4, offset = 0, fixed_abs, tag = 'sflag constant byte address 0x0 - dummy sync flag']
  #allocation49 [shape = 's32[]', space=sflag, size = 0x4, offset = 0, fixed_abs, tag = 'sflag constant byte address 0x0 - dummy sync flag']
  #allocation50 [shape = 's32[]', space=sflag, size = 0x4, offset = 0, fixed_abs, tag = 'sflag constant byte address 0x0 - dummy sync flag']
  #allocation51 [shape = 's32[]', space=sflag, size = 0x4, offset = 0, fixed_abs, tag = 'sflag constant byte address 0x0 - dummy sync flag']
  #allocation52 [shape = 's32[]', space=sflag, size = 0x4, offset = 0, fixed_abs, tag = 'sflag constant byte address 0x0 - dummy sync flag']
  #allocation53 [shape = 's32[]', space=sflag, size = 0x4, offset = 0, fixed_abs, tag = 'sflag constant byte address 0x0 - dummy sync flag']
  #allocation55 [shape = 's32[]', space=sflag, size = 0x4, offset = 0, fixed_abs, tag = 'sflag constant byte address 0x0 - dummy sync flag']
  #allocation56 [shape = 's32[]', space=sflag, size = 0x4, offset = 0, fixed_abs, tag = 'sflag constant byte address 0x0 - dummy sync flag']
  #allocation57 [shape = 's32[]', space=sflag, size = 0x4, offset = 0, fixed_abs, tag = 'sflag constant byte address 0x0 - dummy sync flag']
  #allocation58 [shape = 's32[]', space=sflag, size = 0x4, offset = 0, fixed_abs, tag = 'sflag constant byte address 0x0 - dummy sync flag']
  #allocation59 [shape = 's32[]', space=sflag, size = 0x4, offset = 0, fixed_abs, tag = 'sflag constant byte address 0x0 - dummy sync flag']
  #allocation60 [shape = 's32[]', space=sflag, size = 0x4, offset = 0, fixed_abs, tag = 'sflag constant byte address 0x0 - dummy sync flag']
  #allocation61 [shape = 's32[]', space=sflag, size = 0x4, offset = 0, fixed_abs, tag = 'sflag constant byte address 0x0 - dummy sync flag']
  #allocation62 [shape = 's32[]', space=sflag, size = 0x4, offset = 0, fixed_abs, tag = 'sflag constant byte address 0x0 - dummy sync flag']
  #allocation63 [shape = 's32[]', space=sflag, size = 0x4, offset = 0, fixed_abs, tag = 'sflag constant byte address 0x0 - dummy sync flag']
  #allocation65 [shape = 's32[]', space=sflag, size = 0x4, offset = 0, fixed_abs, tag = 'sflag constant byte address 0x0 - dummy sync flag']
  #allocation66 [shape = 's32[]', space=sflag, size = 0x4, offset = 0, fixed_abs, tag = 'sflag constant byte address 0x0 - dummy sync flag']
  #allocation67 [shape = 's32[]', space=sflag, size = 0x4, offset = 0, fixed_abs, tag = 'sflag constant byte address 0x0 - dummy sync flag']
  #allocation68 [shape = 's32[]', space=sflag, size = 0x4, offset = 0, fixed_abs, tag = 'sflag constant byte address 0x0 - dummy sync flag']
  #allocation69 [shape = 's32[]', space=sflag, size = 0x4, offset = 0, fixed_abs, tag = 'sflag constant byte address 0x0 - dummy sync flag']
  #allocation70 [shape = 's32[]', space=sflag, size = 0x4, offset = 0, fixed_abs, tag = 'sflag constant byte address 0x0 - dummy sync flag']
  %s0 = inlined_call_operand.hbm [shape: f32[2,8,128], index: 0, kind: input, shape index: {}]
  %s1 = inlined_call_operand.hbm [shape: f32[2,8,128], index: 1, kind: input, shape index: {}]
  %s2 = inlined_call_operand.hbm [shape: f32[1,128], index: 2, kind: input, shape index: {}]
  %s3 = inlined_call_operand.hbm [shape: f32[1,128], index: 3, kind: input, shape index: {}]
  %s4 = inlined_call_operand.hbm [shape: f32[1,128], index: 4, kind: input, shape index: {}]
  %s5 = inlined_call_operand.hbm [shape: f32[1,128], index: 5, kind: input, shape index: {}]
  %s6 = inlined_call_operand.hbm [shape: bf16[128,128], index: 6, kind: input, shape index: {}]
  %s7 = inlined_call_operand.hbm [shape: bf16[128,128], index: 7, kind: input, shape index: {}]
  %s8 = inlined_call_operand.hbm [shape: bf16[128,128], index: 8, kind: input, shape index: {}]
  %s9 = inlined_call_operand.hbm [shape: bf16[128,128], index: 9, kind: input, shape index: {}]
  %s10 = inlined_call_operand.hbm [shape: f32[1,128], index: 10, kind: input, shape index: {}]
  %s11 = inlined_call_operand.hbm [shape: f32[1,128], index: 11, kind: input, shape index: {}]
  %s12 = inlined_call_operand.hbm [shape: f32[1,128], index: 12, kind: input, shape index: {}]
  %s13 = inlined_call_operand.hbm [shape: bf16[128,384], index: 13, kind: input, shape index: {}]
  %s14 = inlined_call_operand.hbm [shape: bf16[128,128], index: 14, kind: input, shape index: {}]
  %s15 = inlined_call_operand.hbm [shape: f32[1,128], index: 15, kind: input, shape index: {}]
  %s16 = inlined_call_operand.hbm [shape: f32[1,128], index: 16, kind: input, shape index: {}]
  %s17 = inlined_call_operand.hbm [shape: f32[1,128], index: 17, kind: input, shape index: {}]
  %s18 = inlined_call_operand.hbm [shape: bf16[128,512], index: 18, kind: input, shape index: {}]
  %s19 = inlined_call_operand.hbm [shape: f32[1,512], index: 19, kind: input, shape index: {}]
  %s20 = inlined_call_operand.hbm [shape: bf16[512,128], index: 20, kind: input, shape index: {}]
  %s21 = inlined_call_operand.hbm [shape: f32[1,128], index: 21, kind: input, shape index: {}]
  %s22 = inlined_call_operand.hbm [shape: f32[2,8,128], index: 22, kind: output, shape index: {}]
  %s23 = sld [smem:[#allocation0]]
  $region121: #{tpu_custom_call.1} parent=0
    _
  %s25 = ssub.s32 1, %s23
  %s26 = scalar_select 0, %s25, %s23
  $region1: #{tpu_custom_call.1} parent=0
    #allocation23 [shape = 'u8[8192]{0}', space=vmem, size = 0x2000, scoped, tag = 'input window, operand 0']
    #allocation24 [shape = 's32[2]{0}', space=sflag, size = 0x8, scoped, tag = 'scoped memory for tpu_custom_call.1']
    #allocation25 [shape = 's32[2]{0}', space=sflag, size = 0x8, scoped, tag = 'scoped memory for tpu_custom_call.1']
    #allocation26 [shape = 'u8[8192]{0}', space=vmem, size = 0x2000, scoped, tag = 'input window, operand 1']
    #allocation27 [shape = 's32[2]{0}', space=sflag, size = 0x8, scoped, tag = 'scoped memory for tpu_custom_call.1']
    #allocation28 [shape = 'u8[8192]{0}', space=vmem, size = 0x2000, scoped, tag = 'output window, operand 0']
    %27 = vsyncpa [#allocation24], 0
    %s28 = scalar_lea.sflag [#allocation24], 1
    %29 = vsyncpa %s28, 0
    %30 = vsyncpa [#allocation27], 0
    %s31 = scalar_lea.sflag [#allocation27], 1
    %32 = vsyncpa %s31, 0
    %33 = vsyncpa [#allocation25], 0
    %s34 = scalar_lea.sflag [#allocation25], 1
    %35 = vsyncpa %s34, 0
    loop: start=0, step=1, limit=4
    $region2: #{tpu_custom_call.1} parent=1 // loop_pre_header
      _
    $region3: #{tpu_custom_call.1} parent=1 // loop_header
      %s37 = sphi 0, %s41
      %p38 = scmp.ge.s32.totalorder %s37, 4
      %s47 = sphi 0, %s49
      %s50 = sphi 0, %s47
      %s51 = sphi 0, %s50
      %s67 = sphi 0, %s51
      %s73 = sphi 0, %s75
      %s76 = sphi 0, %s73
      %s77 = sphi 0, %s76
      %s93 = sphi 0, %s77
      %s99 = sphi 0, %s101
      %s102 = sphi 0, %s99
      %s103 = sphi 0, %s102
      %s119 = sphi 0, %s103
    $region4: #{tpu_custom_call.1} parent=1 // loop_header_branch
      %40 = sbr.rel (%p38) target = $region8
    $region5: #{tpu_custom_call.1} parent=1 // loop_body
      %s42 = ssub.s32 %s37, 1
      %s43 = ssub.s32 %s37, 2
      %s44 = sadd.s32 %s37, 1
      %s45 = ssub.s32 %s37, %s44
      %p46 = scmp.eq.s32.totalorder %s45, 0
      %s48 = sadd.s32 %s47, 1
      %s49 = scalar_select %p46, %s47, %s48
      %p52 = pneg %p46
      %p53 = scmp.eq.s32.totalorder %s37, 1
      %p54 = por %p52, %p53
      %p55 = scmp.ne.s32.totalorder %s47, %s50
      %p56 = scmp.eq.s32.totalorder %s37, 0
      %p57 = por %p55, %p56
      %p58 = scmp.ne.s32.totalorder %s47, %s50
      %p59 = scmp.eq.s32.totalorder %s42, 1
      %p60 = por %p58, %p59
      %p61 = scmp.ne.s32.totalorder %s50, %s51
      %p62 = scmp.eq.s32.totalorder %s42, 0
      %p63 = por %p61, %p62
      %p64 = scmp.ne.s32.totalorder %s50, %s51
      %p65 = scmp.eq.s32.totalorder %s43, 1
      %p66 = por %p64, %p65
      %p68 = scmp.ne.s32.totalorder %s51, %s67
      %p69 = scmp.eq.s32.totalorder %s43, 0
      %p70 = por %p68, %p69
      %s71 = ssub.s32 %s37, %s44
      %p72 = scmp.eq.s32.totalorder %s71, 0
      %s74 = sadd.s32 %s73, 1
      %s75 = scalar_select %p72, %s73, %s74
      %p78 = pneg %p72
      %p79 = scmp.eq.s32.totalorder %s37, 1
      %p80 = por %p78, %p79
      %p81 = scmp.ne.s32.totalorder %s73, %s76
      %p82 = scmp.eq.s32.totalorder %s37, 0
      %p83 = por %p81, %p82
      %p84 = scmp.ne.s32.totalorder %s73, %s76
      %p85 = scmp.eq.s32.totalorder %s42, 1
      %p86 = por %p84, %p85
      %p87 = scmp.ne.s32.totalorder %s76, %s77
      %p88 = scmp.eq.s32.totalorder %s42, 0
      %p89 = por %p87, %p88
      %p90 = scmp.ne.s32.totalorder %s76, %s77
      %p91 = scmp.eq.s32.totalorder %s43, 1
      %p92 = por %p90, %p91
      %p94 = scmp.ne.s32.totalorder %s77, %s93
      %p95 = scmp.eq.s32.totalorder %s43, 0
      %p96 = por %p94, %p95
      %s97 = ssub.s32 %s37, %s44
      %p98 = scmp.eq.s32.totalorder %s97, 0
      %s100 = sadd.s32 %s99, 1
      %s101 = scalar_select %p98, %s99, %s100
      %p104 = pneg %p98
      %p105 = scmp.eq.s32.totalorder %s37, 1
      %p106 = por %p104, %p105
      %p107 = scmp.ne.s32.totalorder %s99, %s102
      %p108 = scmp.eq.s32.totalorder %s37, 0
      %p109 = por %p107, %p108
      %p110 = scmp.ne.s32.totalorder %s99, %s102
      %p111 = scmp.eq.s32.totalorder %s42, 1
      %p112 = por %p110, %p111
      %p113 = scmp.ne.s32.totalorder %s102, %s103
      %p114 = scmp.eq.s32.totalorder %s42, 0
      %p115 = por %p113, %p114
      %p116 = scmp.ne.s32.totalorder %s102, %s103
      %p117 = scmp.eq.s32.totalorder %s43, 1
      %p118 = por %p116, %p117
      %p120 = scmp.ne.s32.totalorder %s103, %s119
      %p121 = scmp.eq.s32.totalorder %s43, 0
      %p122 = por %p120, %p121
      %p123 = scmp.le.s32.totalorder 1, %s37
      %p124 = scmp.lt.s32.totalorder %s37, 3
      %p125 = pnand %p123, %p124
      %p126 = pneg %p125
      // Predicated region
      $region9: #{tpu_custom_call.1} parent=5 // pred_check
        _
      $region10: #{tpu_custom_call.1} parent=5 // pred_check_branch
        %128 = sbr.rel (%p125) target = $region12
      $region11: #{tpu_custom_call.1} parent=5 // pred_region
        %s129 = ssub.s32 %s37, 1
      $region12: #{tpu_custom_call.1} parent=5 // pred_fallthru
        _
      %p130 = scmp.lt.s32.totalorder %s37, 2
      // Predicated region
      $region13: #{tpu_custom_call.1} parent=5 // pred_check
        %p131 = pneg %p130
      $region14: #{tpu_custom_call.1} parent=5 // pred_check_branch
        %133 = sbr.rel (%p131) target = $region16
      $region15: #{tpu_custom_call.1} parent=5 // pred_region
        // Predicated region
        $region17: #{tpu_custom_call.1} parent=15 // pred_check
          %p134 = pneg %p57
        $region18: #{tpu_custom_call.1} parent=15 // pred_check_branch
          %136 = sbr.rel (%p134) target = $region20
        $region19: #{tpu_custom_call.1} parent=15 // pred_region
          %s137 = sand.u32 %s47, 1
          %s138 = scalar_lea.sflag [#allocation24], %s137
          %s139 = sand.u32 %s47, 1
          %s140 = smul.addr %s139, 8
          %s141 = scalar_lea.vmem [#allocation23], %s140
          %s143 = ssub.s32 128, 128
          %144 = vsyncadd %s138, %s143
          %s145 = smul.addr %s37, 128
          %s146 = scalar_lea.hbm %s0, %s145
          %s148 = sshll.u32 %s141, 4
          %s149 = int_to_ptr.vmem [resolvable:$true] %s148
          %151 = dma.hbm_to_vmem [thread:$0]  %s146, 128, %s149, %s138
        $region20: #{tpu_custom_call.1} parent=15 // pred_fallthru
          _
        // Predicated region
        $region21: #{tpu_custom_call.1} parent=15 // pred_check
          %p152 = pneg %p83
        $region22: #{tpu_custom_call.1} parent=15 // pred_check_branch
          %154 = sbr.rel (%p152) target = $region24
        $region23: #{tpu_custom_call.1} parent=15 // pred_region
          %s155 = sand.u32 %s73, 1
          %s156 = scalar_lea.sflag [#allocation27], %s155
          %s157 = sand.u32 %s73, 1
          %s158 = smul.addr %s157, 8
          %s159 = scalar_lea.vmem [#allocation26], %s158
          %s161 = ssub.s32 128, 128
          %162 = vsyncadd %s156, %s161
          %s163 = smul.addr %s37, 128
          %s164 = scalar_lea.hbm %s1, %s163
          %s166 = sshll.u32 %s159, 4
          %s167 = int_to_ptr.vmem [resolvable:$true] %s166
          %169 = dma.hbm_to_vmem [thread:$0]  %s164, 128, %s167, %s156
        $region24: #{tpu_custom_call.1} parent=15 // pred_fallthru
          _
      $region16: #{tpu_custom_call.1} parent=5 // pred_fallthru
        _
      %p170 = scmp.le.s32.totalorder 1, %s37
      %p171 = scmp.lt.s32.totalorder %s37, 3
      %p172 = pnand %p170, %p171
      %p173 = pneg %p172
      // Predicated region
      $region25: #{tpu_custom_call.1} parent=5 // pred_check
        _
      $region26: #{tpu_custom_call.1} parent=5 // pred_check_branch
        %175 = sbr.rel (%p172) target = $region28
      $region27: #{tpu_custom_call.1} parent=5 // pred_region
        #allocation54 [shape = 'u32[9]{0}', space=smem, size = 0x24, scoped, tag = 'DMA stride descriptor']
        #allocation64 [shape = 'u32[9]{0}', space=smem, size = 0x24, scoped, tag = 'DMA stride descriptor']
        %s176 = ssub.s32 %s37, 1
        %s177 = sand.u32 %s50, 1
        %s178 = scalar_lea.sflag [#allocation24], %s177
        %s179 = sand.u32 %s50, 1
        %s180 = smul.addr %s179, 8
        %s181 = scalar_lea.vmem [#allocation23], %s180
        // Predicated region
        $region29: #{tpu_custom_call.1} parent=27 // pred_check
          %p182 = pneg %p63
        $region30: #{tpu_custom_call.1} parent=27 // pred_check_branch
          %184 = sbr.rel (%p182) target = $region32
        $region31: #{tpu_custom_call.1} parent=27 // pred_region
          %185 = dma.done %s178, 128
        $region32: #{tpu_custom_call.1} parent=27 // pred_fallthru
          _
        %s186 = sand.u32 %s76, 1
        %s187 = scalar_lea.sflag [#allocation27], %s186
        %s188 = sand.u32 %s76, 1
        %s189 = smul.addr %s188, 8
        %s190 = scalar_lea.vmem [#allocation26], %s189
        // Predicated region
        $region33: #{tpu_custom_call.1} parent=27 // pred_check
          %p191 = pneg %p89
        $region34: #{tpu_custom_call.1} parent=27 // pred_check_branch
          %193 = sbr.rel (%p191) target = $region36
        $region35: #{tpu_custom_call.1} parent=27 // pred_region
          %194 = dma.done %s187, 128
        $region36: #{tpu_custom_call.1} parent=27 // pred_fallthru
          _
        %s195 = sand.u32 %s50, 1
        %s196 = scalar_lea.sflag [#allocation24], %s195
        %s197 = sand.u32 %s50, 1
        %s198 = smul.addr %s197, 8
        %s199 = scalar_lea.vmem [#allocation23], %s198
        %p200 = pneg %p63
        %p201 = pneg %p60
        %s202 = sand.u32 %s76, 1
        %s203 = scalar_lea.sflag [#allocation27], %s202
        %s204 = sand.u32 %s76, 1
        %s205 = smul.addr %s204, 8
        %s206 = scalar_lea.vmem [#allocation26], %s205
        %p207 = pneg %p89
        %p208 = pneg %p86
        %p209 = pneg %p115
        %p210 = pneg %p112
        %s211 = sand.u32 %s102, 1
        %s212 = scalar_lea.sflag [#allocation25], %s211
        %s213 = sand.u32 %s102, 1
        %s214 = smul.addr %s213, 8
        %s215 = scalar_lea.vmem [#allocation28], %s214
        // Predicated region
        $region37: #{tpu_custom_call.1} parent=27 // pred_check
          _
        $region38: #{tpu_custom_call.1} parent=27 // pred_check_branch
          %218 = sbr.rel target = $region40
        $region39: #{tpu_custom_call.1} parent=27 // pred_region
          %219 = sst [smem:[#allocation31]] [#allocation30]
          %220 = sst [smem:[#allocation32]] [#allocation29]
        $region40: #{tpu_custom_call.1} parent=27 // pred_fallthru
          _
        %222 = shalt.err (0)
        %s224 = sshll.u32 [#allocation2], 4
        %s225 = int_to_ptr.vmem [resolvable:$true] %s224
        %227 = dma.hbm_to_vmem [thread:$0]  %s2, 16, %s225, [#allocation22]
        %s228 = scalar_lea.sflag [#allocation22], 1
        // Predicated region
        $region41: #{tpu_custom_call.1} parent=27 // pred_check
          _
        $region42: #{tpu_custom_call.1} parent=27 // pred_check_branch
          %230 = sbr.rel target = $region44
        $region43: #{tpu_custom_call.1} parent=27 // pred_region
          %231 = sst [smem:[#allocation31]] [#allocation34]
          %232 = sst [smem:[#allocation32]] [#allocation33]
        $region44: #{tpu_custom_call.1} parent=27 // pred_fallthru
          _
        %234 = shalt.err (0)
        %s236 = sshll.u32 [#allocation3], 4
        %s237 = int_to_ptr.vmem [resolvable:$true] %s236
        %239 = dma.hbm_to_vmem [thread:$0]  %s3, 16, %s237, %s228
        %s240 = scalar_lea.sflag [#allocation22], 2
        // Predicated region
        $region45: #{tpu_custom_call.1} parent=27 // pred_check
          _
        $region46: #{tpu_custom_call.1} parent=27 // pred_check_branch
          %242 = sbr.rel target = $region48
        $region47: #{tpu_custom_call.1} parent=27 // pred_region
          %243 = sst [smem:[#allocation31]] [#allocation36]
          %244 = sst [smem:[#allocation32]] [#allocation35]
        $region48: #{tpu_custom_call.1} parent=27 // pred_fallthru
          _
        %246 = shalt.err (0)
        %s248 = sshll.u32 [#allocation4], 4
        %s249 = int_to_ptr.vmem [resolvable:$true] %s248
        %251 = dma.hbm_to_vmem [thread:$0]  %s4, 16, %s249, %s240
        %s252 = scalar_lea.sflag [#allocation22], 3
        // Predicated region
        $region49: #{tpu_custom_call.1} parent=27 // pred_check
          _
        $region50: #{tpu_custom_call.1} parent=27 // pred_check_branch
          %254 = sbr.rel target = $region52
        $region51: #{tpu_custom_call.1} parent=27 // pred_region
          %255 = sst [smem:[#allocation31]] [#allocation38]
          %256 = sst [smem:[#allocation32]] [#allocation37]
        $region52: #{tpu_custom_call.1} parent=27 // pred_fallthru
          _
        %258 = shalt.err (0)
        %s260 = sshll.u32 [#allocation5], 4
        %s261 = int_to_ptr.vmem [resolvable:$true] %s260
        %263 = dma.hbm_to_vmem [thread:$0]  %s5, 16, %s261, %s252
        %s264 = scalar_lea.sflag [#allocation22], 4
        // Predicated region
        $region53: #{tpu_custom_call.1} parent=27 // pred_check
          _
        $region54: #{tpu_custom_call.1} parent=27 // pred_check_branch
          %266 = sbr.rel target = $region56
        $region55: #{tpu_custom_call.1} parent=27 // pred_region
          %267 = sst [smem:[#allocation31]] [#allocation40]
          %268 = sst [smem:[#allocation32]] [#allocation39]
        $region56: #{tpu_custom_call.1} parent=27 // pred_fallthru
          _
        %270 = shalt.err (0)
        %s272 = sshll.u32 [#allocation6], 4
        %s273 = int_to_ptr.vmem [resolvable:$true] %s272
        %275 = dma.hbm_to_vmem [thread:$0]  %s6, 1024, %s273, %s264
        %s276 = scalar_lea.sflag [#allocation22], 5
        // Predicated region
        $region57: #{tpu_custom_call.1} parent=27 // pred_check
          _
        $region58: #{tpu_custom_call.1} parent=27 // pred_check_branch
          %278 = sbr.rel target = $region60
        $region59: #{tpu_custom_call.1} parent=27 // pred_region
          %279 = sst [smem:[#allocation31]] [#allocation42]
          %280 = sst [smem:[#allocation32]] [#allocation41]
        $region60: #{tpu_custom_call.1} parent=27 // pred_fallthru
          _
        %282 = shalt.err (0)
        %s284 = sshll.u32 [#allocation7], 4
        %s285 = int_to_ptr.vmem [resolvable:$true] %s284
        %287 = dma.hbm_to_vmem [thread:$0]  %s7, 1024, %s285, %s276
        %s288 = scalar_lea.sflag [#allocation22], 6
        // Predicated region
        $region61: #{tpu_custom_call.1} parent=27 // pred_check
          _
        $region62: #{tpu_custom_call.1} parent=27 // pred_check_branch
          %290 = sbr.rel target = $region64
        $region63: #{tpu_custom_call.1} parent=27 // pred_region
          %291 = sst [smem:[#allocation31]] [#allocation44]
          %292 = sst [smem:[#allocation32]] [#allocation43]
        $region64: #{tpu_custom_call.1} parent=27 // pred_fallthru
          _
        %294 = shalt.err (0)
        %s296 = sshll.u32 [#allocation8], 4
        %s297 = int_to_ptr.vmem [resolvable:$true] %s296
        %299 = dma.hbm_to_vmem [thread:$0]  %s8, 1024, %s297, %s288
        %s300 = scalar_lea.sflag [#allocation22], 7
        // Predicated region
        $region65: #{tpu_custom_call.1} parent=27 // pred_check
          _
        $region66: #{tpu_custom_call.1} parent=27 // pred_check_branch
          %302 = sbr.rel target = $region68
        $region67: #{tpu_custom_call.1} parent=27 // pred_region
          %303 = sst [smem:[#allocation31]] [#allocation46]
          %304 = sst [smem:[#allocation32]] [#allocation45]
        $region68: #{tpu_custom_call.1} parent=27 // pred_fallthru
          _
        %306 = shalt.err (0)
        %s308 = sshll.u32 [#allocation9], 4
        %s309 = int_to_ptr.vmem [resolvable:$true] %s308
        %311 = dma.hbm_to_vmem [thread:$0]  %s9, 1024, %s309, %s300
        %s312 = scalar_lea.sflag [#allocation22], 8
        // Predicated region
        $region69: #{tpu_custom_call.1} parent=27 // pred_check
          _
        $region70: #{tpu_custom_call.1} parent=27 // pred_check_branch
          %314 = sbr.rel target = $region72
        $region71: #{tpu_custom_call.1} parent=27 // pred_region
          %315 = sst [smem:[#allocation31]] [#allocation48]
          %316 = sst [smem:[#allocation32]] [#allocation47]
        $region72: #{tpu_custom_call.1} parent=27 // pred_fallthru
          _
        %318 = shalt.err (0)
        %s320 = sshll.u32 [#allocation10], 4
        %s321 = int_to_ptr.vmem [resolvable:$true] %s320
        %323 = dma.hbm_to_vmem [thread:$0]  %s10, 16, %s321, %s312
        %s324 = scalar_lea.sflag [#allocation22], 9
        // Predicated region
        $region73: #{tpu_custom_call.1} parent=27 // pred_check
          _
        $region74: #{tpu_custom_call.1} parent=27 // pred_check_branch
          %326 = sbr.rel target = $region76
        $region75: #{tpu_custom_call.1} parent=27 // pred_region
          %327 = sst [smem:[#allocation31]] [#allocation50]
          %328 = sst [smem:[#allocation32]] [#allocation49]
        $region76: #{tpu_custom_call.1} parent=27 // pred_fallthru
          _
        %330 = shalt.err (0)
        %s332 = sshll.u32 [#allocation11], 4
        %s333 = int_to_ptr.vmem [resolvable:$true] %s332
        %335 = dma.hbm_to_vmem [thread:$0]  %s11, 16, %s333, %s324
        %s336 = scalar_lea.sflag [#allocation22], 10
        // Predicated region
        $region77: #{tpu_custom_call.1} parent=27 // pred_check
          _
        $region78: #{tpu_custom_call.1} parent=27 // pred_check_branch
          %338 = sbr.rel target = $region80
        $region79: #{tpu_custom_call.1} parent=27 // pred_region
          %339 = sst [smem:[#allocation31]] [#allocation52]
          %340 = sst [smem:[#allocation32]] [#allocation51]
        $region80: #{tpu_custom_call.1} parent=27 // pred_fallthru
          _
        %342 = shalt.err (0)
        %s344 = sshll.u32 [#allocation12], 4
        %s345 = int_to_ptr.vmem [resolvable:$true] %s344
        %347 = dma.hbm_to_vmem [thread:$0]  %s12, 16, %s345, %s336
        %s348 = scalar_lea.sflag [#allocation22], 11
        %s350 = sshll.u32 1, 14
        %s351 = sxor.u32 4294967295, %s350
        %s353 = sld [smem:[#allocation0]]
        %s354 = sadd.s32 2, %s353
        %s356 = sshll.u32 7, 26
        %s357 = sxor.u32 4294967295, %s356
        %s358 = sand.u32 0, %s357
        %s359 = sshll.u32 %s354, 26
        %s360 = sor.u32 %s358, %s359
        %s361 = sshll.u32 [#allocation13], 4
        %s362 = int_to_ptr.vmem [resolvable:$true] %s361
        %365 = sst [smem:[#allocation54]] 384
        %s366 = scalar_lea.smem [#allocation54], 1
        %367 = sst [smem:[%s366]] 384
        %s368 = scalar_lea.smem [#allocation54], 2
        %369 = sst [smem:[%s368]] 3
        %s370 = scalar_lea.smem [#allocation54], 3
        %371 = sst [smem:[%s370]] 64
        %s372 = scalar_lea.smem [#allocation54], 4
        %373 = sst [smem:[%s372]] 128
        %s374 = scalar_lea.smem [#allocation54], 5
        %375 = sst [smem:[%s374]] 2
        %s376 = scalar_lea.smem [#allocation54], 6
        %377 = sst [smem:[%s376]] 192
        %s378 = scalar_lea.smem [#allocation54], 7
        %379 = sst [smem:[%s378]] 64
        %s380 = scalar_lea.smem [#allocation54], 8
        %381 = sst [smem:[%s380]] 4
        %383 = dma.general %s13, 3072, %s362, %s348, [#allocation53], [#allocation54], %s360, 0
        %s384 = scalar_lea.sflag [#allocation22], 12
        // Predicated region
        $region81: #{tpu_custom_call.1} parent=27 // pred_check
          _
        $region82: #{tpu_custom_call.1} parent=27 // pred_check_branch
          %386 = sbr.rel target = $region84
        $region83: #{tpu_custom_call.1} parent=27 // pred_region
          %387 = sst [smem:[#allocation31]] [#allocation56]
          %388 = sst [smem:[#allocation32]] [#allocation55]
        $region84: #{tpu_custom_call.1} parent=27 // pred_fallthru
          _
        %390 = shalt.err (0)
        %s392 = sshll.u32 [#allocation14], 4
        %s393 = int_to_ptr.vmem [resolvable:$true] %s392
        %395 = dma.hbm_to_vmem [thread:$0]  %s14, 1024, %s393, %s384
        %s396 = scalar_lea.sflag [#allocation22], 13
        // Predicated region
        $region85: #{tpu_custom_call.1} parent=27 // pred_check
          _
        $region86: #{tpu_custom_call.1} parent=27 // pred_check_branch
          %398 = sbr.rel target = $region88
        $region87: #{tpu_custom_call.1} parent=27 // pred_region
          %399 = sst [smem:[#allocation31]] [#allocation58]
          %400 = sst [smem:[#allocation32]] [#allocation57]
        $region88: #{tpu_custom_call.1} parent=27 // pred_fallthru
          _
        %402 = shalt.err (0)
        %s404 = sshll.u32 [#allocation15], 4
        %s405 = int_to_ptr.vmem [resolvable:$true] %s404
        %407 = dma.hbm_to_vmem [thread:$0]  %s15, 16, %s405, %s396
        %s408 = scalar_lea.sflag [#allocation22], 14
        // Predicated region
        $region89: #{tpu_custom_call.1} parent=27 // pred_check
          _
        $region90: #{tpu_custom_call.1} parent=27 // pred_check_branch
          %410 = sbr.rel target = $region92
        $region91: #{tpu_custom_call.1} parent=27 // pred_region
          %411 = sst [smem:[#allocation31]] [#allocation60]
          %412 = sst [smem:[#allocation32]] [#allocation59]
        $region92: #{tpu_custom_call.1} parent=27 // pred_fallthru
          _
        %414 = shalt.err (0)
        %s416 = sshll.u32 [#allocation16], 4
        %s417 = int_to_ptr.vmem [resolvable:$true] %s416
        %419 = dma.hbm_to_vmem [thread:$0]  %s16, 16, %s417, %s408
        %s420 = scalar_lea.sflag [#allocation22], 15
        // Predicated region
        $region93: #{tpu_custom_call.1} parent=27 // pred_check
          _
        $region94: #{tpu_custom_call.1} parent=27 // pred_check_branch
          %422 = sbr.rel target = $region96
        $region95: #{tpu_custom_call.1} parent=27 // pred_region
          %423 = sst [smem:[#allocation31]] [#allocation62]
          %424 = sst [smem:[#allocation32]] [#allocation61]
        $region96: #{tpu_custom_call.1} parent=27 // pred_fallthru
          _
        %426 = shalt.err (0)
        %s428 = sshll.u32 [#allocation17], 4
        %s429 = int_to_ptr.vmem [resolvable:$true] %s428
        %431 = dma.hbm_to_vmem [thread:$0]  %s17, 16, %s429, %s420
        %s432 = scalar_lea.sflag [#allocation22], 16
        %s434 = sshll.u32 1, 14
        %s435 = sxor.u32 4294967295, %s434
        %s437 = sadd.s32 2, %s353
        %s439 = sshll.u32 7, 26
        %s440 = sxor.u32 4294967295, %s439
        %s441 = sand.u32 0, %s440
        %s442 = sshll.u32 %s437, 26
        %s443 = sor.u32 %s441, %s442
        %s444 = sshll.u32 [#allocation18], 4
        %s445 = int_to_ptr.vmem [resolvable:$true] %s444
        %448 = sst [smem:[#allocation64]] 512
        %s449 = scalar_lea.smem [#allocation64], 1
        %450 = sst [smem:[%s449]] 512
        %s451 = scalar_lea.smem [#allocation64], 2
        %452 = sst [smem:[%s451]] 4
        %s453 = scalar_lea.smem [#allocation64], 3
        %454 = sst [smem:[%s453]] 64
        %s455 = scalar_lea.smem [#allocation64], 4
        %456 = sst [smem:[%s455]] 128
        %s457 = scalar_lea.smem [#allocation64], 5
        %458 = sst [smem:[%s457]] 2
        %s459 = scalar_lea.smem [#allocation64], 6
        %460 = sst [smem:[%s459]] 256
        %s461 = scalar_lea.smem [#allocation64], 7
        %462 = sst [smem:[%s461]] 64
        %s463 = scalar_lea.smem [#allocation64], 8
        %464 = sst [smem:[%s463]] 4
        %466 = dma.general %s18, 4096, %s445, %s432, [#allocation63], [#allocation64], %s443, 0
        %s467 = scalar_lea.sflag [#allocation22], 17
        // Predicated region
        $region97: #{tpu_custom_call.1} parent=27 // pred_check
          _
        $region98: #{tpu_custom_call.1} parent=27 // pred_check_branch
          %469 = sbr.rel target = $region100
        $region99: #{tpu_custom_call.1} parent=27 // pred_region
          %470 = sst [smem:[#allocation31]] [#allocation66]
          %471 = sst [smem:[#allocation32]] [#allocation65]
        $region100: #{tpu_custom_call.1} parent=27 // pred_fallthru
          _
        %473 = shalt.err (0)
        %s475 = sshll.u32 [#allocation19], 4
        %s476 = int_to_ptr.vmem [resolvable:$true] %s475
        %478 = dma.hbm_to_vmem [thread:$0]  %s19, 64, %s476, %s467
        %s479 = scalar_lea.sflag [#allocation22], 18
        // Predicated region
        $region101: #{tpu_custom_call.1} parent=27 // pred_check
          _
        $region102: #{tpu_custom_call.1} parent=27 // pred_check_branch
          %481 = sbr.rel target = $region104
        $region103: #{tpu_custom_call.1} parent=27 // pred_region
          %482 = sst [smem:[#allocation31]] [#allocation68]
          %483 = sst [smem:[#allocation32]] [#allocation67]
        $region104: #{tpu_custom_call.1} parent=27 // pred_fallthru
          _
        %485 = shalt.err (0)
        %s487 = sshll.u32 [#allocation20], 4
        %s488 = int_to_ptr.vmem [resolvable:$true] %s487
        %490 = dma.hbm_to_vmem [thread:$0]  %s20, 4096, %s488, %s479
        %s491 = scalar_lea.sflag [#allocation22], 19
        // Predicated region
        $region105: #{tpu_custom_call.1} parent=27 // pred_check
          _
        $region106: #{tpu_custom_call.1} parent=27 // pred_check_branch
          %493 = sbr.rel target = $region108
        $region107: #{tpu_custom_call.1} parent=27 // pred_region
          %494 = sst [smem:[#allocation31]] [#allocation70]
          %495 = sst [smem:[#allocation32]] [#allocation69]
        $region108: #{tpu_custom_call.1} parent=27 // pred_fallthru
          _
        %497 = shalt.err (0)
        %s499 = sshll.u32 [#allocation21], 4
        %s500 = int_to_ptr.vmem [resolvable:$true] %s499
        %502 = dma.hbm_to_vmem [thread:$0]  %s21, 16, %s500, %s491
        %s503 = smul.u32 1, 1
        %s504 = sshll.u32 %s503, 4
        %505 = dma.done [#allocation22], %s504
        %s506 = sshll.u32 %s503, 4
        %507 = dma.done %s228, %s506
        %s508 = sshll.u32 %s503, 4
        %509 = dma.done %s240, %s508
        %s510 = sshll.u32 %s503, 4
        %511 = dma.done %s252, %s510
        %s512 = smul.u32 4, 16
        %s513 = smul.u32 %s512, 1
        %s514 = sshll.u32 %s513, 4
        %515 = dma.done %s264, %s514
        %s516 = sshll.u32 %s513, 4
        %517 = dma.done %s276, %s516
        %s518 = sshll.u32 %s513, 4
        %519 = dma.done %s288, %s518
        %s520 = sshll.u32 %s513, 4
        %521 = dma.done %s300, %s520
        %s522 = sshll.u32 %s503, 4
        %523 = dma.done %s312, %s522
        %s524 = sshll.u32 %s503, 4
        %525 = dma.done %s324, %s524
        %s526 = sshll.u32 %s503, 4
        %527 = dma.done %s336, %s526
        %s528 = smul.u32 %s512, 3
        %s529 = sshll.u32 %s528, 4
        %530 = dma.done %s348, %s529
        %s531 = sshll.u32 %s513, 4
        %532 = dma.done %s384, %s531
        %s533 = sshll.u32 %s503, 4
        %534 = dma.done %s396, %s533
        %s535 = sshll.u32 %s503, 4
        %536 = dma.done %s408, %s535
        %s537 = sshll.u32 %s503, 4
        %538 = dma.done %s420, %s537
        %s539 = smul.u32 %s512, 4
        %s540 = sshll.u32 %s539, 4
        %541 = dma.done %s432, %s540
        %s542 = smul.u32 1, 4
        %s543 = sshll.u32 %s542, 4
        %544 = dma.done %s467, %s543
        %s545 = smul.u32 4, 64
        %s546 = smul.u32 %s545, 1
        %s547 = sshll.u32 %s546, 4
        %548 = dma.done %s479, %s547
        %s549 = sshll.u32 %s503, 4
        %550 = dma.done %s491, %s549
        %v551 = vld [vmem:[#allocation2] sm:$0x1]
        %v552 = vld [vmem:[#allocation3] sm:$0x1]
        %v553 = vld [vmem:[#allocation4] sm:$0x1]
        %v554 = vld [vmem:[#allocation5] sm:$0x1]
        %v555 = vld [vmem:[#allocation6] sm:$0xff]
        %v556 = vld [vmem:[#allocation6 + $0x8] sm:$0xff]
        %v557 = vld [vmem:[#allocation6 + $0x10] sm:$0xff]
        %v558 = vld [vmem:[#allocation6 + $0x18] sm:$0xff]
        %v559 = vld [vmem:[#allocation6 + $0x20] sm:$0xff]
        %v560 = vld [vmem:[#allocation6 + $0x28] sm:$0xff]
        %v561 = vld [vmem:[#allocation6 + $0x30] sm:$0xff]
        %v562 = vld [vmem:[#allocation6 + $0x38] sm:$0xff]
        %v563 = vld [vmem:[#allocation7] sm:$0xff]
        %v564 = vld [vmem:[#allocation7 + $0x8] sm:$0xff]
        %v565 = vld [vmem:[#allocation7 + $0x10] sm:$0xff]
        %v566 = vld [vmem:[#allocation7 + $0x18] sm:$0xff]
        %v567 = vld [vmem:[#allocation7 + $0x20] sm:$0xff]
        %v568 = vld [vmem:[#allocation7 + $0x28] sm:$0xff]
        %v569 = vld [vmem:[#allocation7 + $0x30] sm:$0xff]
        %v570 = vld [vmem:[#allocation7 + $0x38] sm:$0xff]
        %v571 = vld [vmem:[#allocation8] sm:$0xff]
        %v572 = vld [vmem:[#allocation8 + $0x8] sm:$0xff]
        %v573 = vld [vmem:[#allocation8 + $0x10] sm:$0xff]
        %v574 = vld [vmem:[#allocation8 + $0x18] sm:$0xff]
        %v575 = vld [vmem:[#allocation8 + $0x20] sm:$0xff]
        %v576 = vld [vmem:[#allocation8 + $0x28] sm:$0xff]
        %v577 = vld [vmem:[#allocation8 + $0x30] sm:$0xff]
        %v578 = vld [vmem:[#allocation8 + $0x38] sm:$0xff]
        %v579 = vld [vmem:[#allocation9] sm:$0xff]
        %v580 = vld [vmem:[#allocation9 + $0x8] sm:$0xff]
        %v581 = vld [vmem:[#allocation9 + $0x10] sm:$0xff]
        %v582 = vld [vmem:[#allocation9 + $0x18] sm:$0xff]
        %v583 = vld [vmem:[#allocation9 + $0x20] sm:$0xff]
        %v584 = vld [vmem:[#allocation9 + $0x28] sm:$0xff]
        %v585 = vld [vmem:[#allocation9 + $0x30] sm:$0xff]
        %v586 = vld [vmem:[#allocation9 + $0x38] sm:$0xff]
        %v587 = vld [vmem:[#allocation10] sm:$0x1]
        %v588 = vld [vmem:[#allocation11] sm:$0x1]
        %v589 = vld [vmem:[#allocation12] sm:$0x1]
        %v590 = vld [vmem:[#allocation13] sm:$0xff]
        %v591 = vld [vmem:[#allocation13 + $0x8] sm:$0xff]
        %v592 = vld [vmem:[#allocation13 + $0x10] sm:$0xff]
        %v593 = vld [vmem:[#allocation13 + $0x18] sm:$0xff]
        %v594 = vld [vmem:[#allocation13 + $0x20] sm:$0xff]
        %v595 = vld [vmem:[#allocation13 + $0x28] sm:$0xff]
        %v596 = vld [vmem:[#allocation13 + $0x30] sm:$0xff]
        %v597 = vld [vmem:[#allocation13 + $0x38] sm:$0xff]
        %v598 = vld [vmem:[#allocation13 + $0x40] sm:$0xff]
        %v599 = vld [vmem:[#allocation13 + $0x48] sm:$0xff]
        %v600 = vld [vmem:[#allocation13 + $0x50] sm:$0xff]
        %v601 = vld [vmem:[#allocation13 + $0x58] sm:$0xff]
        %v602 = vld [vmem:[#allocation13 + $0x60] sm:$0xff]
        %v603 = vld [vmem:[#allocation13 + $0x68] sm:$0xff]
        %v604 = vld [vmem:[#allocation13 + $0x70] sm:$0xff]
        %v605 = vld [vmem:[#allocation13 + $0x78] sm:$0xff]
        %v606 = vld [vmem:[#allocation13 + $0x80] sm:$0xff]
        %v607 = vld [vmem:[#allocation13 + $0x88] sm:$0xff]
        %v608 = vld [vmem:[#allocation13 + $0x90] sm:$0xff]
        %v609 = vld [vmem:[#allocation13 + $0x98] sm:$0xff]
        %v610 = vld [vmem:[#allocation13 + $0xa0] sm:$0xff]
        %v611 = vld [vmem:[#allocation13 + $0xa8] sm:$0xff]
        %v612 = vld [vmem:[#allocation13 + $0xb0] sm:$0xff]
        %v613 = vld [vmem:[#allocation13 + $0xb8] sm:$0xff]
        %v614 = vld [vmem:[#allocation14] sm:$0xff]
        %v615 = vld [vmem:[#allocation14 + $0x8] sm:$0xff]
        %v616 = vld [vmem:[#allocation14 + $0x10] sm:$0xff]
        %v617 = vld [vmem:[#allocation14 + $0x18] sm:$0xff]
        %v618 = vld [vmem:[#allocation14 + $0x20] sm:$0xff]
        %v619 = vld [vmem:[#allocation14 + $0x28] sm:$0xff]
        %v620 = vld [vmem:[#allocation14 + $0x30] sm:$0xff]
        %v621 = vld [vmem:[#allocation14 + $0x38] sm:$0xff]
        %v622 = vld [vmem:[#allocation15] sm:$0x1]
        %v623 = vld [vmem:[#allocation16] sm:$0x1]
        %v624 = vld [vmem:[#allocation17] sm:$0x1]
        %v625 = vld [vmem:[#allocation18] sm:$0xff]
        %v626 = vld [vmem:[#allocation18 + $0x8] sm:$0xff]
        %v627 = vld [vmem:[#allocation18 + $0x10] sm:$0xff]
        %v628 = vld [vmem:[#allocation18 + $0x18] sm:$0xff]
        %v629 = vld [vmem:[#allocation18 + $0x20] sm:$0xff]
        %v630 = vld [vmem:[#allocation18 + $0x28] sm:$0xff]
        %v631 = vld [vmem:[#allocation18 + $0x30] sm:$0xff]
        %v632 = vld [vmem:[#allocation18 + $0x38] sm:$0xff]
        %v633 = vld [vmem:[#allocation18 + $0x40] sm:$0xff]
        %v634 = vld [vmem:[#allocation18 + $0x48] sm:$0xff]
        %v635 = vld [vmem:[#allocation18 + $0x50] sm:$0xff]
        %v636 = vld [vmem:[#allocation18 + $0x58] sm:$0xff]
        %v637 = vld [vmem:[#allocation18 + $0x60] sm:$0xff]
        %v638 = vld [vmem:[#allocation18 + $0x68] sm:$0xff]
        %v639 = vld [vmem:[#allocation18 + $0x70] sm:$0xff]
        %v640 = vld [vmem:[#allocation18 + $0x78] sm:$0xff]
        %v641 = vld [vmem:[#allocation18 + $0x80] sm:$0xff]
        %v642 = vld [vmem:[#allocation18 + $0x88] sm:$0xff]
        %v643 = vld [vmem:[#allocation18 + $0x90] sm:$0xff]
        %v644 = vld [vmem:[#allocation18 + $0x98] sm:$0xff]
        %v645 = vld [vmem:[#allocation18 + $0xa0] sm:$0xff]
        %v646 = vld [vmem:[#allocation18 + $0xa8] sm:$0xff]
        %v647 = vld [vmem:[#allocation18 + $0xb0] sm:$0xff]
        %v648 = vld [vmem:[#allocation18 + $0xb8] sm:$0xff]
        %v649 = vld [vmem:[#allocation18 + $0xc0] sm:$0xff]
        %v650 = vld [vmem:[#allocation18 + $0xc8] sm:$0xff]
        %v651 = vld [vmem:[#allocation18 + $0xd0] sm:$0xff]
        %v652 = vld [vmem:[#allocation18 + $0xd8] sm:$0xff]
        %v653 = vld [vmem:[#allocation18 + $0xe0] sm:$0xff]
        %v654 = vld [vmem:[#allocation18 + $0xe8] sm:$0xff]
        %v655 = vld [vmem:[#allocation18 + $0xf0] sm:$0xff]
        %v656 = vld [vmem:[#allocation18 + $0xf8] sm:$0xff]
        %v657 = vld [vmem:[#allocation19] sm:$0xf]
        %v658 = vld [vmem:[#allocation20] sm:$0xff]
        %v659 = vld [vmem:[#allocation20 + $0x8] sm:$0xff]
        %v660 = vld [vmem:[#allocation20 + $0x10] sm:$0xff]
        %v661 = vld [vmem:[#allocation20 + $0x18] sm:$0xff]
        %v662 = vld [vmem:[#allocation20 + $0x20] sm:$0xff]
        %v663 = vld [vmem:[#allocation20 + $0x28] sm:$0xff]
        %v664 = vld [vmem:[#allocation20 + $0x30] sm:$0xff]
        %v665 = vld [vmem:[#allocation20 + $0x38] sm:$0xff]
        %v666 = vld [vmem:[#allocation20 + $0x40] sm:$0xff]
        %v667 = vld [vmem:[#allocation20 + $0x48] sm:$0xff]
        %v668 = vld [vmem:[#allocation20 + $0x50] sm:$0xff]
        %v669 = vld [vmem:[#allocation20 + $0x58] sm:$0xff]
        %v670 = vld [vmem:[#allocation20 + $0x60] sm:$0xff]
        %v671 = vld [vmem:[#allocation20 + $0x68] sm:$0xff]
        %v672 = vld [vmem:[#allocation20 + $0x70] sm:$0xff]
        %v673 = vld [vmem:[#allocation20 + $0x78] sm:$0xff]
        %v674 = vld [vmem:[#allocation20 + $0x80] sm:$0xff]
        %v675 = vld [vmem:[#allocation20 + $0x88] sm:$0xff]
        %v676 = vld [vmem:[#allocation20 + $0x90] sm:$0xff]
        %v677 = vld [vmem:[#allocation20 + $0x98] sm:$0xff]
        %v678 = vld [vmem:[#allocation20 + $0xa0] sm:$0xff]
        %v679 = vld [vmem:[#allocation20 + $0xa8] sm:$0xff]
        %v680 = vld [vmem:[#allocation20 + $0xb0] sm:$0xff]
        %v681 = vld [vmem:[#allocation20 + $0xb8] sm:$0xff]
        %v682 = vld [vmem:[#allocation20 + $0xc0] sm:$0xff]
        %v683 = vld [vmem:[#allocation20 + $0xc8] sm:$0xff]
        %v684 = vld [vmem:[#allocation20 + $0xd0] sm:$0xff]
        %v685 = vld [vmem:[#allocation20 + $0xd8] sm:$0xff]
        %v686 = vld [vmem:[#allocation20 + $0xe0] sm:$0xff]
        %v687 = vld [vmem:[#allocation20 + $0xe8] sm:$0xff]
        %v688 = vld [vmem:[#allocation20 + $0xf0] sm:$0xff]
        %v689 = vld [vmem:[#allocation20 + $0xf8] sm:$0xff]
        %v690 = vld [vmem:[#allocation21] sm:$0x1]
        %v691 = vld [vmem:[%s181] sm:$0xff]
        %v692 = vld [vmem:[%s190] sm:$0xff]
        %693 = vadd.xlane.f32.xlu0 %v691
        %v694 = vpop.xlane.xlu0 %693
        %v695 = vrcp.pop 128.0
        %v696 = vmul.f32 %v694, %v695
        %v697 = vsub.f32 %v691, %v696
        %v698 = vmul.f32 %v697, %v697
        %699 = vadd.xlane.f32.xlu0 %v698
        %v700 = vpop.xlane.xlu0 %699
        %v701 = vmul.f32 %v700, %v695
        %v702 = vadd.f32 %v701, 1e-05
        %v703 = vrsqrt.pop %v702
        %v704 = vmul.f32 %v697, %v703
        %v706 = vlaneseq
        %v707 = vshrl.u32 %v706, 7
        %v708 = vsub.s32 0, %v707
        %v709 = vrot.slane %v551, %v708
        %v711 = vmul.f32 %v704, %v709
        %v713 = vlaneseq
        %v714 = vshrl.u32 %v713, 7
        %v715 = vsub.s32 0, %v714
        %v716 = vrot.slane %v552, %v715
        %v718 = vadd.f32 %v711, %v716
        %719 = vadd.xlane.f32.xlu0 %v692
        %v720 = vpop.xlane.xlu0 %719
        %v721 = vmul.f32 %v720, %v695
        %v722 = vsub.f32 %v692, %v721
        %v723 = vmul.f32 %v722, %v722
        %724 = vadd.xlane.f32.xlu0 %v723
        %v725 = vpop.xlane.xlu0 %724
        %v726 = vmul.f32 %v725, %v695
        %v727 = vadd.f32 %v726, 1e-05
        %v728 = vrsqrt.pop %v727
        %v729 = vmul.f32 %v722, %v728
        %v731 = vlaneseq
        %v732 = vshrl.u32 %v731, 7
        %v733 = vsub.s32 0, %v732
        %v734 = vrot.slane %v553, %v733
        %v736 = vmul.f32 %v729, %v734
        %v738 = vlaneseq
        %v739 = vshrl.u32 %v738, 7
        %v740 = vsub.s32 0, %v739
        %v741 = vrot.slane %v554, %v740
        %v743 = vadd.f32 %v736, %v741
        %v744 = vpack.c.bf16 %v718, %v718
        %745 = vmatprep.subr.bf16.mxu0 0
        %746 = vmatpush1.bf16.msra.mxu0 %v555
        %747 = vmatprep.subr.bf16.mxu0 0
        %748 = vmatpush1.bf16.msra.mxu0 %v556
        %749 = vmatprep.subr.bf16.mxu0 0
        %750 = vmatpush1.bf16.msra.mxu0 %v557
        %751 = vmatprep.subr.bf16.mxu0 0
        %752 = vmatpush1.bf16.msra.mxu0 %v558
        %753 = vmatprep.subr.bf16.mxu0 0
        %754 = vmatpush1.bf16.msra.mxu0 %v559
        %755 = vmatprep.subr.bf16.mxu0 0
        %756 = vmatpush1.bf16.msra.mxu0 %v560
        %757 = vmatprep.subr.bf16.mxu0 0
        %758 = vmatpush1.bf16.msra.mxu0 %v561
        %759 = vmatprep.subr.bf16.mxu0 0
        %760 = vmatpush1.bf16.msra.mxu0 %v562
        %761 = vmatprep.subr.bf16.mxu0 0
        %762 = vmatpush1.bf16.msra.mxu0 0
        %763 = vmatprep.subr.bf16.mxu0 0
        %764 = vmatpush1.bf16.msra.mxu0 0
        %765 = vmatprep.subr.bf16.mxu0 0
        %766 = vmatpush1.bf16.msra.mxu0 0
        %767 = vmatprep.subr.bf16.mxu0 0
        %768 = vmatpush1.bf16.msra.mxu0 0
        %769 = vmatprep.subr.bf16.mxu0 0
        %770 = vmatpush1.bf16.msra.mxu0 0
        %771 = vmatprep.subr.bf16.mxu0 0
        %772 = vmatpush1.bf16.msra.mxu0 0
        %773 = vmatprep.subr.bf16.mxu0 0
        %774 = vmatpush1.bf16.msra.mxu0 0
        %775 = vmatprep.subr.bf16.mxu0 0
        %776 = vmatpush1.bf16.msra.mxu0 0
        %777 = vmatprep.mubr.bf16.mxu0 0
        %778 = vmatmul.mubr.bf16.gmra.mrb[0].mxu0 %v744
        %v779 = vpop.f32.mrb[0].mxu0
        %v780 = vadd.f32 0.0, %v779
        %v781 = vpop.f32.mrb[0].mxu0
        %v782 = vpop.f32.mrb[0].mxu0
        %v783 = vpop.f32.mrb[0].mxu0
        %784 = vdwg.mxu0
        %v785 = vmul.f32 %v780, 0.17677669
        %v786 = vpack.c.bf16 %v743, %v743
        %787 = vmatprep.subr.bf16.mxu0 0
        %788 = vmatpush1.bf16.msra.mxu0 %v563
        %789 = vmatprep.subr.bf16.mxu0 0
        %790 = vmatpush1.bf16.msra.mxu0 %v564
        %791 = vmatprep.subr.bf16.mxu0 0
        %792 = vmatpush1.bf16.msra.mxu0 %v565
        %793 = vmatprep.subr.bf16.mxu0 0
        %794 = vmatpush1.bf16.msra.mxu0 %v566
        %795 = vmatprep.subr.bf16.mxu0 0
        %796 = vmatpush1.bf16.msra.mxu0 %v567
        %797 = vmatprep.subr.bf16.mxu0 0
        %798 = vmatpush1.bf16.msra.mxu0 %v568
        %799 = vmatprep.subr.bf16.mxu0 0
        %800 = vmatpush1.bf16.msra.mxu0 %v569
        %801 = vmatprep.subr.bf16.mxu0 0
        %802 = vmatpush1.bf16.msra.mxu0 %v570
        %803 = vmatprep.subr.bf16.mxu0 0
        %804 = vmatpush1.bf16.msra.mxu0 0
        %805 = vmatprep.subr.bf16.mxu0 0
        %806 = vmatpush1.bf16.msra.mxu0 0
        %807 = vmatprep.subr.bf16.mxu0 0
        %808 = vmatpush1.bf16.msra.mxu0 0
        %809 = vmatprep.subr.bf16.mxu0 0
        %810 = vmatpush1.bf16.msra.mxu0 0
        %811 = vmatprep.subr.bf16.mxu0 0
        %812 = vmatpush1.bf16.msra.mxu0 0
        %813 = vmatprep.subr.bf16.mxu0 0
        %814 = vmatpush1.bf16.msra.mxu0 0
        %815 = vmatprep.subr.bf16.mxu0 0
        %816 = vmatpush1.bf16.msra.mxu0 0
        %817 = vmatprep.subr.bf16.mxu0 0
        %818 = vmatpush1.bf16.msra.mxu0 0
        %819 = vmatprep.mubr.bf16.mxu0 0
        %820 = vmatmul.mubr.bf16.gmra.mrb[0].mxu0 %v786
        %v821 = vpop.f32.mrb[0].mxu0
        %v822 = vadd.f32 0.0, %v821
        %v823 = vpop.f32.mrb[0].mxu0
        %v824 = vpop.f32.mrb[0].mxu0
        %v825 = vpop.f32.mrb[0].mxu0
        %826 = vdwg.mxu0
        %827 = vmatprep.subr.bf16.mxu0 0
        %828 = vmatpush1.bf16.msra.mxu0 %v571
        %829 = vmatprep.subr.bf16.mxu0 0
        %830 = vmatpush1.bf16.msra.mxu0 %v572
        %831 = vmatprep.subr.bf16.mxu0 0
        %832 = vmatpush1.bf16.msra.mxu0 %v573
        %833 = vmatprep.subr.bf16.mxu0 0
        %834 = vmatpush1.bf16.msra.mxu0 %v574
        %835 = vmatprep.subr.bf16.mxu0 0
        %836 = vmatpush1.bf16.msra.mxu0 %v575
        %837 = vmatprep.subr.bf16.mxu0 0
        %838 = vmatpush1.bf16.msra.mxu0 %v576
        %839 = vmatprep.subr.bf16.mxu0 0
        %840 = vmatpush1.bf16.msra.mxu0 %v577
        %841 = vmatprep.subr.bf16.mxu0 0
        %842 = vmatpush1.bf16.msra.mxu0 %v578
        %843 = vmatprep.subr.bf16.mxu0 0
        %844 = vmatpush1.bf16.msra.mxu0 0
        %845 = vmatprep.subr.bf16.mxu0 0
        %846 = vmatpush1.bf16.msra.mxu0 0
        %847 = vmatprep.subr.bf16.mxu0 0
        %848 = vmatpush1.bf16.msra.mxu0 0
        %849 = vmatprep.subr.bf16.mxu0 0
        %850 = vmatpush1.bf16.msra.mxu0 0
        %851 = vmatprep.subr.bf16.mxu0 0
        %852 = vmatpush1.bf16.msra.mxu0 0
        %853 = vmatprep.subr.bf16.mxu0 0
        %854 = vmatpush1.bf16.msra.mxu0 0
        %855 = vmatprep.subr.bf16.mxu0 0
        %856 = vmatpush1.bf16.msra.mxu0 0
        %857 = vmatprep.subr.bf16.mxu0 0
        %858 = vmatpush1.bf16.msra.mxu0 0
        %859 = vmatprep.mubr.bf16.mxu0 0
        %860 = vmatmul.mubr.bf16.gmra.mrb[0].mxu0 %v786
        %v861 = vpop.f32.mrb[0].mxu0
        %v862 = vadd.f32 0.0, %v861
        %v863 = vpop.f32.mrb[0].mxu0
        %v864 = vpop.f32.mrb[0].mxu0
        %v865 = vpop.f32.mrb[0].mxu0
        %866 = vdwg.mxu0
        %v867 = vpack.c.bf16 %v785, %v785
        %869 = vrot.lane.b32.xlu0 %v867, 96
        %v870 = vpop.permute.xlu0 %869
        %871 = vrot.lane.b32.xlu0 %v867, 64
        %v872 = vpop.permute.xlu0 %871
        %873 = vrot.lane.b32.xlu0 %v867, 32
        %v874 = vpop.permute.xlu0 %873
        %v875 = vpack.c.bf16 %v822, %v822
        %877 = vrot.lane.b32.xlu0 %v875, 96
        %v878 = vpop.permute.xlu0 %877
        %879 = vrot.lane.b32.xlu0 %v875, 64
        %v880 = vpop.permute.xlu0 %879
        %881 = vrot.lane.b32.xlu0 %v875, 32
        %v882 = vpop.permute.xlu0 %881
        %v883 = vpack.c.bf16 %v862, %v862
        %885 = vrot.lane.b32.xlu0 %v883, 96
        %v886 = vpop.permute.xlu0 %885
        %887 = vrot.lane.b32.xlu0 %v883, 64
        %v888 = vpop.permute.xlu0 %887
        %889 = vrot.lane.b32.xlu0 %v883, 32
        %v890 = vpop.permute.xlu0 %889
        %vm891 = vcmask 261120
        %v893 = vsel %vm891, %v867, 0
        %v896 = vsel %vm891, %v875, 0
        %898 = vmatprep.subr.bf16.mxu0 0
        %899 = vmatpush1.bf16.xpose.msra.mxu0 %v896
        %900 = vmatprep.subr.bf16.mxu0 0
        %901 = vmatpush1.bf16.xpose.msra.mxu0 0
        %902 = vmatprep.subr.bf16.mxu0 0
        %903 = vmatpush1.bf16.xpose.msra.mxu0 0
        %904 = vmatprep.subr.bf16.mxu0 0
        %905 = vmatpush1.bf16.xpose.msra.mxu0 0
        %906 = vmatprep.subr.bf16.mxu0 0
        %907 = vmatpush1.bf16.xpose.msra.mxu0 0
        %908 = vmatprep.subr.bf16.mxu0 0
        %909 = vmatpush1.bf16.xpose.msra.mxu0 0
        %910 = vmatprep.subr.bf16.mxu0 0
        %911 = vmatpush1.bf16.xpose.msra.mxu0 0
        %912 = vmatprep.subr.bf16.mxu0 0
        %913 = vmatpush1.bf16.xpose.msra.mxu0 0
        %914 = vmatprep.subr.bf16.mxu0 0
        %915 = vmatpush1.bf16.xpose.msra.mxu0 0
        %916 = vmatprep.subr.bf16.mxu0 0
        %917 = vmatpush1.bf16.xpose.msra.mxu0 0
        %918 = vmatprep.subr.bf16.mxu0 0
        %919 = vmatpush1.bf16.xpose.msra.mxu0 0
        %920 = vmatprep.subr.bf16.mxu0 0
        %921 = vmatpush1.bf16.xpose.msra.mxu0 0
        %922 = vmatprep.subr.bf16.mxu0 0
        %923 = vmatpush1.bf16.xpose.msra.mxu0 0
        %924 = vmatprep.subr.bf16.mxu0 0
        %925 = vmatpush1.bf16.xpose.msra.mxu0 0
        %926 = vmatprep.subr.bf16.mxu0 0
        %927 = vmatpush1.bf16.xpose.msra.mxu0 0
        %928 = vmatprep.subr.bf16.mxu0 0
        %929 = vmatpush1.bf16.xpose.msra.mxu0 0
        %930 = vmatprep.mubr.bf16.mxu0 0
        %931 = vmatmul.mubr.bf16.gmra.mrb[0].mxu0 %v893
        %v932 = vpop.f32.mrb[0].mxu0
        %v933 = vadd.f32 0.0, %v932
        %v934 = vpop.f32.mrb[0].mxu0
        %v935 = vpop.f32.mrb[0].mxu0
        %v936 = vpop.f32.mrb[0].mxu0
        %937 = vdwg.mxu0
        %v939 = vsel %vm891, %v870, 0
        %v942 = vsel %vm891, %v878, 0
        %944 = vmatprep.subr.bf16.mxu0 0
        %945 = vmatpush1.bf16.xpose.msra.mxu0 %v942
        %946 = vmatprep.subr.bf16.mxu0 0
        %947 = vmatpush1.bf16.xpose.msra.mxu0 0
        %948 = vmatprep.subr.bf16.mxu0 0
        %949 = vmatpush1.bf16.xpose.msra.mxu0 0
        %950 = vmatprep.subr.bf16.mxu0 0
        %951 = vmatpush1.bf16.xpose.msra.mxu0 0
        %952 = vmatprep.subr.bf16.mxu0 0
        %953 = vmatpush1.bf16.xpose.msra.mxu0 0
        %954 = vmatprep.subr.bf16.mxu0 0
        %955 = vmatpush1.bf16.xpose.msra.mxu0 0
        %956 = vmatprep.subr.bf16.mxu0 0
        %957 = vmatpush1.bf16.xpose.msra.mxu0 0
        %958 = vmatprep.subr.bf16.mxu0 0
        %959 = vmatpush1.bf16.xpose.msra.mxu0 0
        %960 = vmatprep.subr.bf16.mxu0 0
        %961 = vmatpush1.bf16.xpose.msra.mxu0 0
        %962 = vmatprep.subr.bf16.mxu0 0
        %963 = vmatpush1.bf16.xpose.msra.mxu0 0
        %964 = vmatprep.subr.bf16.mxu0 0
        %965 = vmatpush1.bf16.xpose.msra.mxu0 0
        %966 = vmatprep.subr.bf16.mxu0 0
        %967 = vmatpush1.bf16.xpose.msra.mxu0 0
        %968 = vmatprep.subr.bf16.mxu0 0
        %969 = vmatpush1.bf16.xpose.msra.mxu0 0
        %970 = vmatprep.subr.bf16.mxu0 0
        %971 = vmatpush1.bf16.xpose.msra.mxu0 0
        %972 = vmatprep.subr.bf16.mxu0 0
        %973 = vmatpush1.bf16.xpose.msra.mxu0 0
        %974 = vmatprep.subr.bf16.mxu0 0
        %975 = vmatpush1.bf16.xpose.msra.mxu0 0
        %976 = vmatprep.mubr.bf16.mxu0 0
        %977 = vmatmul.mubr.bf16.gmra.mrb[0].mxu0 %v939
        %v978 = vpop.f32.mrb[0].mxu0
        %v979 = vadd.f32 0.0, %v978
        %v980 = vpop.f32.mrb[0].mxu0
        %v981 = vpop.f32.mrb[0].mxu0
        %v982 = vpop.f32.mrb[0].mxu0
        %983 = vdwg.mxu0
        %v985 = vsel %vm891, %v872, 0
        %v988 = vsel %vm891, %v880, 0
        %990 = vmatprep.subr.bf16.mxu0 0
        %991 = vmatpush1.bf16.xpose.msra.mxu0 %v988
        %992 = vmatprep.subr.bf16.mxu0 0
        %993 = vmatpush1.bf16.xpose.msra.mxu0 0
        %994 = vmatprep.subr.bf16.mxu0 0
        %995 = vmatpush1.bf16.xpose.msra.mxu0 0
        %996 = vmatprep.subr.bf16.mxu0 0
        %997 = vmatpush1.bf16.xpose.msra.mxu0 0
        %998 = vmatprep.subr.bf16.mxu0 0
        %999 = vmatpush1.bf16.xpose.msra.mxu0 0
        %1000 = vmatprep.subr.bf16.mxu0 0
        %1001 = vmatpush1.bf16.xpose.msra.mxu0 0
        %1002 = vmatprep.subr.bf16.mxu0 0
        %1003 = vmatpush1.bf16.xpose.msra.mxu0 0
        %1004 = vmatprep.subr.bf16.mxu0 0
        %1005 = vmatpush1.bf16.xpose.msra.mxu0 0
        %1006 = vmatprep.subr.bf16.mxu0 0
        %1007 = vmatpush1.bf16.xpose.msra.mxu0 0
        %1008 = vmatprep.subr.bf16.mxu0 0
        %1009 = vmatpush1.bf16.xpose.msra.mxu0 0
        %1010 = vmatprep.subr.bf16.mxu0 0
        %1011 = vmatpush1.bf16.xpose.msra.mxu0 0
        %1012 = vmatprep.subr.bf16.mxu0 0
        %1013 = vmatpush1.bf16.xpose.msra.mxu0 0
        %1014 = vmatprep.subr.bf16.mxu0 0
        %1015 = vmatpush1.bf16.xpose.msra.mxu0 0
        %1016 = vmatprep.subr.bf16.mxu0 0
        %1017 = vmatpush1.bf16.xpose.msra.mxu0 0
        %1018 = vmatprep.subr.bf16.mxu0 0
        %1019 = vmatpush1.bf16.xpose.msra.mxu0 0
        %1020 = vmatprep.subr.bf16.mxu0 0
        %1021 = vmatpush1.bf16.xpose.msra.mxu0 0
        %1022 = vmatprep.mubr.bf16.mxu0 0
        %1023 = vmatmul.mubr.bf16.gmra.mrb[0].mxu0 %v985
        %v1024 = vpop.f32.mrb[0].mxu0
        %v1025 = vadd.f32 0.0, %v1024
        %v1026 = vpop.f32.mrb[0].mxu0
        %v1027 = vpop.f32.mrb[0].mxu0
        %v1028 = vpop.f32.mrb[0].mxu0
        %1029 = vdwg.mxu0
        %v1031 = vsel %vm891, %v874, 0
        %v1034 = vsel %vm891, %v882, 0
        %1036 = vmatprep.subr.bf16.mxu0 0
        %1037 = vmatpush1.bf16.xpose.msra.mxu0 %v1034
        %1038 = vmatprep.subr.bf16.mxu0 0
        %1039 = vmatpush1.bf16.xpose.msra.mxu0 0
        %1040 = vmatprep.subr.bf16.mxu0 0
        %1041 = vmatpush1.bf16.xpose.msra.mxu0 0
        %1042 = vmatprep.subr.bf16.mxu0 0
        %1043 = vmatpush1.bf16.xpose.msra.mxu0 0
        %1044 = vmatprep.subr.bf16.mxu0 0
        %1045 = vmatpush1.bf16.xpose.msra.mxu0 0
        %1046 = vmatprep.subr.bf16.mxu0 0
        %1047 = vmatpush1.bf16.xpose.msra.mxu0 0
        %1048 = vmatprep.subr.bf16.mxu0 0
        %1049 = vmatpush1.bf16.xpose.msra.mxu0 0
        %1050 = vmatprep.subr.bf16.mxu0 0
        %1051 = vmatpush1.bf16.xpose.msra.mxu0 0
        %1052 = vmatprep.subr.bf16.mxu0 0
        %1053 = vmatpush1.bf16.xpose.msra.mxu0 0
        %1054 = vmatprep.subr.bf16.mxu0 0
        %1055 = vmatpush1.bf16.xpose.msra.mxu0 0
        %1056 = vmatprep.subr.bf16.mxu0 0
        %1057 = vmatpush1.bf16.xpose.msra.mxu0 0
        %1058 = vmatprep.subr.bf16.mxu0 0
        %1059 = vmatpush1.bf16.xpose.msra.mxu0 0
        %1060 = vmatprep.subr.bf16.mxu0 0
        %1061 = vmatpush1.bf16.xpose.msra.mxu0 0
        %1062 = vmatprep.subr.bf16.mxu0 0
        %1063 = vmatpush1.bf16.xpose.msra.mxu0 0
        %1064 = vmatprep.subr.bf16.mxu0 0
        %1065 = vmatpush1.bf16.xpose.msra.mxu0 0
        %1066 = vmatprep.subr.bf16.mxu0 0
        %1067 = vmatpush1.bf16.xpose.msra.mxu0 0
        %1068 = vmatprep.mubr.bf16.mxu0 0
        %1069 = vmatmul.mubr.bf16.gmra.mrb[0].mxu0 %v1031
        %v1070 = vpop.f32.mrb[0].mxu0
        %v1071 = vadd.f32 0.0, %v1070
        %v1072 = vpop.f32.mrb[0].mxu0
        %v1073 = vpop.f32.mrb[0].mxu0
        %v1074 = vpop.f32.mrb[0].mxu0
        %1075 = vdwg.mxu0
        %vm1076 = vcmask 64512
        %v1077 = vsel %vm1076, %v933, -inf
        %1078 = vmax.xlane.f32.xlu0 %v1077
        %v1079 = vpop.xlane.xlu0 %1078
        %v1080 = vsel %vm1076, %v979, -inf
        %1081 = vmax.xlane.f32.xlu0 %v1080
        %v1082 = vpop.xlane.xlu0 %1081
        %v1083 = vsel %vm1076, %v1025, -inf
        %1084 = vmax.xlane.f32.xlu0 %v1083
        %v1085 = vpop.xlane.xlu0 %1084
        %v1086 = vsel %vm1076, %v1071, -inf
        %1087 = vmax.xlane.f32.xlu0 %v1086
        %v1088 = vpop.xlane.xlu0 %1087
        %v1089 = vsub.f32 %v933, %v1079
        %v1090 = vsub.f32 %v979, %v1082
        %v1091 = vsub.f32 %v1025, %v1085
        %v1092 = vsub.f32 %v1071, %v1088
        %v1093 = vmul.f32 %v1089, 1.442695
        %v1094 = vpow.pop %v1093
        %v1095 = vmul.f32 %v1090, 1.442695
        %v1096 = vpow.pop %v1095
        %v1097 = vmul.f32 %v1091, 1.442695
        %v1098 = vpow.pop %v1097
        %v1099 = vmul.f32 %v1092, 1.442695
        %v1100 = vpow.pop %v1099
        %v1101 = vsel %vm1076, %v1094, 0.0
        %1102 = vadd.xlane.f32.xlu0 %v1101
        %v1103 = vpop.xlane.xlu0 %1102
        %v1104 = vsel %vm1076, %v1096, 0.0
        %1105 = vadd.xlane.f32.xlu0 %v1104
        %v1106 = vpop.xlane.xlu0 %1105
        %v1107 = vsel %vm1076, %v1098, 0.0
        %1108 = vadd.xlane.f32.xlu0 %v1107
        %v1109 = vpop.xlane.xlu0 %1108
        %v1110 = vsel %vm1076, %v1100, 0.0
        %1111 = vadd.xlane.f32.xlu0 %v1110
        %v1112 = vpop.xlane.xlu0 %1111
        %v1113 = vrcp.pop %v1103
        %v1114 = vrcp.pop %v1106
        %v1115 = vrcp.pop %v1109
        %v1116 = vrcp.pop %v1112
        %v1117 = vmul.f32 %v1094, %v1113
        %v1118 = vmul.f32 %v1096, %v1114
        %v1119 = vmul.f32 %v1098, %v1115
        %v1120 = vmul.f32 %v1100, %v1116
        %v1121 = vpack.c.bf16 %v1117, %v1117
        %v1122 = vpack.c.bf16 %v1118, %v1118
        %v1123 = vpack.c.bf16 %v1119, %v1119
        %v1124 = vpack.c.bf16 %v1120, %v1120
        %v1126 = vsel %vm1076, %v1121, 0
        %vm1128 = vcmask 1043456
        %v1130 = vsel %vm1128, %v883, 0
        %1132 = vmatprep.subr.bf16.mxu0 0
        %1133 = vmatpush1.bf16.msra.mxu0 %v1130
        %1134 = vmatprep.subr.bf16.mxu0 0
        %1135 = vmatpush1.bf16.msra.mxu0 0
        %1136 = vmatprep.subr.bf16.mxu0 0
        %1137 = vmatpush1.bf16.msra.mxu0 0
        %1138 = vmatprep.subr.bf16.mxu0 0
        %1139 = vmatpush1.bf16.msra.mxu0 0
        %1140 = vmatprep.subr.bf16.mxu0 0
        %1141 = vmatpush1.bf16.msra.mxu0 0
        %1142 = vmatprep.subr.bf16.mxu0 0
        %1143 = vmatpush1.bf16.msra.mxu0 0
        %1144 = vmatprep.subr.bf16.mxu0 0
        %1145 = vmatpush1.bf16.msra.mxu0 0
        %1146 = vmatprep.subr.bf16.mxu0 0
        %1147 = vmatpush1.bf16.msra.mxu0 0
        %1148 = vmatprep.subr.bf16.mxu0 0
        %1149 = vmatpush1.bf16.msra.mxu0 0
        %1150 = vmatprep.subr.bf16.mxu0 0
        %1151 = vmatpush1.bf16.msra.mxu0 0
        %1152 = vmatprep.subr.bf16.mxu0 0
        %1153 = vmatpush1.bf16.msra.mxu0 0
        %1154 = vmatprep.subr.bf16.mxu0 0
        %1155 = vmatpush1.bf16.msra.mxu0 0
        %1156 = vmatprep.subr.bf16.mxu0 0
        %1157 = vmatpush1.bf16.msra.mxu0 0
        %1158 = vmatprep.subr.bf16.mxu0 0
        %1159 = vmatpush1.bf16.msra.mxu0 0
        %1160 = vmatprep.subr.bf16.mxu0 0
        %1161 = vmatpush1.bf16.msra.mxu0 0
        %1162 = vmatprep.subr.bf16.mxu0 0
        %1163 = vmatpush1.bf16.msra.mxu0 0
        %1164 = vmatprep.mubr.bf16.mxu0 0
        %1165 = vmatmul.mubr.bf16.gmra.mrb[0].mxu0 %v1126
        %v1166 = vpop.f32.mrb[0].mxu0
        %v1167 = vadd.f32 0.0, %v1166
        %v1168 = vpop.f32.mrb[0].mxu0
        %v1169 = vpop.f32.mrb[0].mxu0
        %v1170 = vpop.f32.mrb[0].mxu0
        %1171 = vdwg.mxu0
        %v1173 = vsel %vm1076, %v1122, 0
        %v1176 = vsel %vm1128, %v886, 0
        %1178 = vmatprep.subr.bf16.mxu0 0
        %1179 = vmatpush1.bf16.msra.mxu0 %v1176
        %1180 = vmatprep.subr.bf16.mxu0 0
        %1181 = vmatpush1.bf16.msra.mxu0 0
        %1182 = vmatprep.subr.bf16.mxu0 0
        %1183 = vmatpush1.bf16.msra.mxu0 0
        %1184 = vmatprep.subr.bf16.mxu0 0
        %1185 = vmatpush1.bf16.msra.mxu0 0
        %1186 = vmatprep.subr.bf16.mxu0 0
        %1187 = vmatpush1.bf16.msra.mxu0 0
        %1188 = vmatprep.subr.bf16.mxu0 0
        %1189 = vmatpush1.bf16.msra.mxu0 0
        %1190 = vmatprep.subr.bf16.mxu0 0
        %1191 = vmatpush1.bf16.msra.mxu0 0
        %1192 = vmatprep.subr.bf16.mxu0 0
        %1193 = vmatpush1.bf16.msra.mxu0 0
        %1194 = vmatprep.subr.bf16.mxu0 0
        %1195 = vmatpush1.bf16.msra.mxu0 0
        %1196 = vmatprep.subr.bf16.mxu0 0
        %1197 = vmatpush1.bf16.msra.mxu0 0
        %1198 = vmatprep.subr.bf16.mxu0 0
        %1199 = vmatpush1.bf16.msra.mxu0 0
        %1200 = vmatprep.subr.bf16.mxu0 0
        %1201 = vmatpush1.bf16.msra.mxu0 0
        %1202 = vmatprep.subr.bf16.mxu0 0
        %1203 = vmatpush1.bf16.msra.mxu0 0
        %1204 = vmatprep.subr.bf16.mxu0 0
        %1205 = vmatpush1.bf16.msra.mxu0 0
        %1206 = vmatprep.subr.bf16.mxu0 0
        %1207 = vmatpush1.bf16.msra.mxu0 0
        %1208 = vmatprep.subr.bf16.mxu0 0
        %1209 = vmatpush1.bf16.msra.mxu0 0
        %1210 = vmatprep.mubr.bf16.mxu0 0
        %1211 = vmatmul.mubr.bf16.gmra.mrb[0].mxu0 %v1173
        %v1212 = vpop.f32.mrb[0].mxu0
        %v1213 = vadd.f32 0.0, %v1212
        %v1214 = vpop.f32.mrb[0].mxu0
        %v1215 = vpop.f32.mrb[0].mxu0
        %v1216 = vpop.f32.mrb[0].mxu0
        %1217 = vdwg.mxu0
        %v1219 = vsel %vm1076, %v1123, 0
        %v1222 = vsel %vm1128, %v888, 0
        %1224 = vmatprep.subr.bf16.mxu0 0
        %1225 = vmatpush1.bf16.msra.mxu0 %v1222
        %1226 = vmatprep.subr.bf16.mxu0 0
        %1227 = vmatpush1.bf16.msra.mxu0 0
        %1228 = vmatprep.subr.bf16.mxu0 0
        %1229 = vmatpush1.bf16.msra.mxu0 0
        %1230 = vmatprep.subr.bf16.mxu0 0
        %1231 = vmatpush1.bf16.msra.mxu0 0
        %1232 = vmatprep.subr.bf16.mxu0 0
        %1233 = vmatpush1.bf16.msra.mxu0 0
        %1234 = vmatprep.subr.bf16.mxu0 0
        %1235 = vmatpush1.bf16.msra.mxu0 0
        %1236 = vmatprep.subr.bf16.mxu0 0
        %1237 = vmatpush1.bf16.msra.mxu0 0
        %1238 = vmatprep.subr.bf16.mxu0 0
        %1239 = vmatpush1.bf16.msra.mxu0 0
        %1240 = vmatprep.subr.bf16.mxu0 0
        %1241 = vmatpush1.bf16.msra.mxu0 0
        %1242 = vmatprep.subr.bf16.mxu0 0
        %1243 = vmatpush1.bf16.msra.mxu0 0
        %1244 = vmatprep.subr.bf16.mxu0 0
        %1245 = vmatpush1.bf16.msra.mxu0 0
        %1246 = vmatprep.subr.bf16.mxu0 0
        %1247 = vmatpush1.bf16.msra.mxu0 0
        %1248 = vmatprep.subr.bf16.mxu0 0
        %1249 = vmatpush1.bf16.msra.mxu0 0
        %1250 = vmatprep.subr.bf16.mxu0 0
        %1251 = vmatpush1.bf16.msra.mxu0 0
        %1252 = vmatprep.subr.bf16.mxu0 0
        %1253 = vmatpush1.bf16.msra.mxu0 0
        %1254 = vmatprep.subr.bf16.mxu0 0
        %1255 = vmatpush1.bf16.msra.mxu0 0
        %1256 = vmatprep.mubr.bf16.mxu0 0
        %1257 = vmatmul.mubr.bf16.gmra.mrb[0].mxu0 %v1219
        %v1258 = vpop.f32.mrb[0].mxu0
        %v1259 = vadd.f32 0.0, %v1258
        %v1260 = vpop.f32.mrb[0].mxu0
        %v1261 = vpop.f32.mrb[0].mxu0
        %v1262 = vpop.f32.mrb[0].mxu0
        %1263 = vdwg.mxu0
        %v1265 = vsel %vm1076, %v1124, 0
        %v1268 = vsel %vm1128, %v890, 0
        %1270 = vmatprep.subr.bf16.mxu0 0
        %1271 = vmatpush1.bf16.msra.mxu0 %v1268
        %1272 = vmatprep.subr.bf16.mxu0 0
        %1273 = vmatpush1.bf16.msra.mxu0 0
        %1274 = vmatprep.subr.bf16.mxu0 0
        %1275 = vmatpush1.bf16.msra.mxu0 0
        %1276 = vmatprep.subr.bf16.mxu0 0
        %1277 = vmatpush1.bf16.msra.mxu0 0
        %1278 = vmatprep.subr.bf16.mxu0 0
        %1279 = vmatpush1.bf16.msra.mxu0 0
        %1280 = vmatprep.subr.bf16.mxu0 0
        %1281 = vmatpush1.bf16.msra.mxu0 0
        %1282 = vmatprep.subr.bf16.mxu0 0
        %1283 = vmatpush1.bf16.msra.mxu0 0
        %1284 = vmatprep.subr.bf16.mxu0 0
        %1285 = vmatpush1.bf16.msra.mxu0 0
        %1286 = vmatprep.subr.bf16.mxu0 0
        %1287 = vmatpush1.bf16.msra.mxu0 0
        %1288 = vmatprep.subr.bf16.mxu0 0
        %1289 = vmatpush1.bf16.msra.mxu0 0
        %1290 = vmatprep.subr.bf16.mxu0 0
        %1291 = vmatpush1.bf16.msra.mxu0 0
        %1292 = vmatprep.subr.bf16.mxu0 0
        %1293 = vmatpush1.bf16.msra.mxu0 0
        %1294 = vmatprep.subr.bf16.mxu0 0
        %1295 = vmatpush1.bf16.msra.mxu0 0
        %1296 = vmatprep.subr.bf16.mxu0 0
        %1297 = vmatpush1.bf16.msra.mxu0 0
        %1298 = vmatprep.subr.bf16.mxu0 0
        %1299 = vmatpush1.bf16.msra.mxu0 0
        %1300 = vmatprep.subr.bf16.mxu0 0
        %1301 = vmatpush1.bf16.msra.mxu0 0
        %1302 = vmatprep.mubr.bf16.mxu0 0
        %1303 = vmatmul.mubr.bf16.gmra.mrb[0].mxu0 %v1265
        %v1304 = vpop.f32.mrb[0].mxu0
        %v1305 = vadd.f32 0.0, %v1304
        %v1306 = vpop.f32.mrb[0].mxu0
        %v1307 = vpop.f32.mrb[0].mxu0
        %v1308 = vpop.f32.mrb[0].mxu0
        %1309 = vdwg.mxu0
        %1311 = vrot.lane.b32.xlu0 %v1213, 32
        %v1312 = vpop.permute.xlu0 %1311
        %1315 = vrot.lane.b32.xlu0 %v1259, 64
        %v1316 = vpop.permute.xlu0 %1315
        %1319 = vrot.lane.b32.xlu0 %v1305, 96
        %v1320 = vpop.permute.xlu0 %1319
        %v1322 = vsel %vm891, %v1167, %v1312
        %vm1323 = vcmask 523264
        %v1324 = vsel %vm1323, %v1322, %v1316
        %vm1325 = vcmask 785408
        %v1326 = vsel %vm1325, %v1324, %v1320
        %v1327 = vpack.c.bf16 %v1326, %v1326
        %1328 = vmatprep.subr.bf16.mxu0 0
        %1329 = vmatpush1.bf16.msra.mxu0 %v579
        %1330 = vmatprep.subr.bf16.mxu0 0
        %1331 = vmatpush1.bf16.msra.mxu0 %v580
        %1332 = vmatprep.subr.bf16.mxu0 0
        %1333 = vmatpush1.bf16.msra.mxu0 %v581
        %1334 = vmatprep.subr.bf16.mxu0 0
        %1335 = vmatpush1.bf16.msra.mxu0 %v582
        %1336 = vmatprep.subr.bf16.mxu0 0
        %1337 = vmatpush1.bf16.msra.mxu0 %v583
        %1338 = vmatprep.subr.bf16.mxu0 0
        %1339 = vmatpush1.bf16.msra.mxu0 %v584
        %1340 = vmatprep.subr.bf16.mxu0 0
        %1341 = vmatpush1.bf16.msra.mxu0 %v585
        %1342 = vmatprep.subr.bf16.mxu0 0
        %1343 = vmatpush1.bf16.msra.mxu0 %v586
        %1344 = vmatprep.subr.bf16.mxu0 0
        %1345 = vmatpush1.bf16.msra.mxu0 0
        %1346 = vmatprep.subr.bf16.mxu0 0
        %1347 = vmatpush1.bf16.msra.mxu0 0
        %1348 = vmatprep.subr.bf16.mxu0 0
        %1349 = vmatpush1.bf16.msra.mxu0 0
        %1350 = vmatprep.subr.bf16.mxu0 0
        %1351 = vmatpush1.bf16.msra.mxu0 0
        %1352 = vmatprep.subr.bf16.mxu0 0
        %1353 = vmatpush1.bf16.msra.mxu0 0
        %1354 = vmatprep.subr.bf16.mxu0 0
        %1355 = vmatpush1.bf16.msra.mxu0 0
        %1356 = vmatprep.subr.bf16.mxu0 0
        %1357 = vmatpush1.bf16.msra.mxu0 0
        %1358 = vmatprep.subr.bf16.mxu0 0
        %1359 = vmatpush1.bf16.msra.mxu0 0
        %1360 = vmatprep.mubr.bf16.mxu0 0
        %1361 = vmatmul.mubr.bf16.gmra.mrb[0].mxu0 %v1327
        %v1362 = vpop.f32.mrb[0].mxu0
        %v1363 = vadd.f32 0.0, %v1362
        %v1364 = vpop.f32.mrb[0].mxu0
        %v1365 = vpop.f32.mrb[0].mxu0
        %v1366 = vpop.f32.mrb[0].mxu0
        %1367 = vdwg.mxu0
        %v1368 = vadd.f32 %v691, %v1363
        %v1370 = vlaneseq
        %v1371 = vshrl.u32 %v1370, 7
        %v1372 = vsub.s32 0, %v1371
        %v1373 = vrot.slane %v587, %v1372
        %v1375 = vadd.f32 %v1368, %v1373
        %1376 = vadd.xlane.f32.xlu0 %v1375
        %v1377 = vpop.xlane.xlu0 %1376
        %v1378 = vmul.f32 %v1377, %v695
        %v1379 = vsub.f32 %v1375, %v1378
        %v1380 = vmul.f32 %v1379, %v1379
        %1381 = vadd.xlane.f32.xlu0 %v1380
        %v1382 = vpop.xlane.xlu0 %1381
        %v1383 = vmul.f32 %v1382, %v695
        %v1384 = vadd.f32 %v1383, 1e-05
        %v1385 = vrsqrt.pop %v1384
        %v1386 = vmul.f32 %v1379, %v1385
        %v1388 = vlaneseq
        %v1389 = vshrl.u32 %v1388, 7
        %v1390 = vsub.s32 0, %v1389
        %v1391 = vrot.slane %v588, %v1390
        %v1393 = vmul.f32 %v1386, %v1391
        %v1395 = vlaneseq
        %v1396 = vshrl.u32 %v1395, 7
        %v1397 = vsub.s32 0, %v1396
        %v1398 = vrot.slane %v589, %v1397
        %v1400 = vadd.f32 %v1393, %v1398
        %v1401 = vpack.c.bf16 %v1400, %v1400
        %1402 = vmatprep.subr.bf16.mxu0 %v591
        %1403 = vmatpush1.bf16.msra.mxu0 %v590
        %1404 = vmatprep.subr.bf16.mxu0 %v594
        %1405 = vmatpush1.bf16.msra.mxu0 %v593
        %1406 = vmatprep.subr.bf16.mxu0 %v597
        %1407 = vmatpush1.bf16.msra.mxu0 %v596
        %1408 = vmatprep.subr.bf16.mxu0 %v600
        %1409 = vmatpush1.bf16.msra.mxu0 %v599
        %1410 = vmatprep.subr.bf16.mxu0 %v603
        %1411 = vmatpush1.bf16.msra.mxu0 %v602
        %1412 = vmatprep.subr.bf16.mxu0 %v606
        %1413 = vmatpush1.bf16.msra.mxu0 %v605
        %1414 = vmatprep.subr.bf16.mxu0 %v609
        %1415 = vmatpush1.bf16.msra.mxu0 %v608
        %1416 = vmatprep.subr.bf16.mxu0 %v612
        %1417 = vmatpush1.bf16.msra.mxu0 %v611
        %1418 = vmatprep.subr.bf16.mxu0 0
        %1419 = vmatpush1.bf16.msra.mxu0 0
        %1420 = vmatprep.subr.bf16.mxu0 0
        %1421 = vmatpush1.bf16.msra.mxu0 0
        %1422 = vmatprep.subr.bf16.mxu0 0
        %1423 = vmatpush1.bf16.msra.mxu0 0
        %1424 = vmatprep.subr.bf16.mxu0 0
        %1425 = vmatpush1.bf16.msra.mxu0 0
        %1426 = vmatprep.subr.bf16.mxu0 0
        %1427 = vmatpush1.bf16.msra.mxu0 0
        %1428 = vmatprep.subr.bf16.mxu0 0
        %1429 = vmatpush1.bf16.msra.mxu0 0
        %1430 = vmatprep.subr.bf16.mxu0 0
        %1431 = vmatpush1.bf16.msra.mxu0 0
        %1432 = vmatprep.subr.bf16.mxu0 0
        %1433 = vmatpush1.bf16.msra.mxu0 0
        %1434 = vmatprep.mubr.bf16.mxu0 0
        %1435 = vmatmul.mubr.bf16.gmra.mrb[0].mxu0 %v1401
        %v1436 = vpop.f32.mrb[0].mxu0
        %v1437 = vadd.f32 0.0, %v1436
        %v1438 = vpop.f32.mrb[0].mxu0
        %v1439 = vadd.f32 0.0, %v1438
        %v1440 = vpop.f32.mrb[0].mxu0
        %v1441 = vpop.f32.mrb[0].mxu0
        %1442 = vdwg.mxu0
        %1443 = vmatprep.subr.bf16.mxu0 0
        %1444 = vmatpush1.bf16.msra.mxu0 %v592
        %1445 = vmatprep.subr.bf16.mxu0 0
        %1446 = vmatpush1.bf16.msra.mxu0 %v595
        %1447 = vmatprep.subr.bf16.mxu0 0
        %1448 = vmatpush1.bf16.msra.mxu0 %v598
        %1449 = vmatprep.subr.bf16.mxu0 0
        %1450 = vmatpush1.bf16.msra.mxu0 %v601
        %1451 = vmatprep.subr.bf16.mxu0 0
        %1452 = vmatpush1.bf16.msra.mxu0 %v604
        %1453 = vmatprep.subr.bf16.mxu0 0
        %1454 = vmatpush1.bf16.msra.mxu0 %v607
        %1455 = vmatprep.subr.bf16.mxu0 0
        %1456 = vmatpush1.bf16.msra.mxu0 %v610
        %1457 = vmatprep.subr.bf16.mxu0 0
        %1458 = vmatpush1.bf16.msra.mxu0 %v613
        %1459 = vmatprep.subr.bf16.mxu0 0
        %1460 = vmatpush1.bf16.msra.mxu0 0
        %1461 = vmatprep.subr.bf16.mxu0 0
        %1462 = vmatpush1.bf16.msra.mxu0 0
        %1463 = vmatprep.subr.bf16.mxu0 0
        %1464 = vmatpush1.bf16.msra.mxu0 0
        %1465 = vmatprep.subr.bf16.mxu0 0
        %1466 = vmatpush1.bf16.msra.mxu0 0
        %1467 = vmatprep.subr.bf16.mxu0 0
        %1468 = vmatpush1.bf16.msra.mxu0 0
        %1469 = vmatprep.subr.bf16.mxu0 0
        %1470 = vmatpush1.bf16.msra.mxu0 0
        %1471 = vmatprep.subr.bf16.mxu0 0
        %1472 = vmatpush1.bf16.msra.mxu0 0
        %1473 = vmatprep.subr.bf16.mxu0 0
        %1474 = vmatpush1.bf16.msra.mxu0 0
        %1475 = vmatprep.mubr.bf16.mxu0 0
        %1476 = vmatmul.mubr.bf16.gmra.mrb[0].mxu0 %v1401
        %v1477 = vpop.f32.mrb[0].mxu0
        %v1478 = vadd.f32 0.0, %v1477
        %v1479 = vpop.f32.mrb[0].mxu0
        %v1480 = vpop.f32.mrb[0].mxu0
        %v1481 = vpop.f32.mrb[0].mxu0
        %1482 = vdwg.mxu0
        %v1483 = vmul.f32 %v1437, 0.17677669
        %v1484 = vpack.c.bf16 %v1483, %v1483
        %1486 = vrot.lane.b32.xlu0 %v1484, 96
        %v1487 = vpop.permute.xlu0 %1486
        %1488 = vrot.lane.b32.xlu0 %v1484, 64
        %v1489 = vpop.permute.xlu0 %1488
        %1490 = vrot.lane.b32.xlu0 %v1484, 32
        %v1491 = vpop.permute.xlu0 %1490
        %v1492 = vpack.c.bf16 %v1439, %v1439
        %1494 = vrot.lane.b32.xlu0 %v1492, 96
        %v1495 = vpop.permute.xlu0 %1494
        %1496 = vrot.lane.b32.xlu0 %v1492, 64
        %v1497 = vpop.permute.xlu0 %1496
        %1498 = vrot.lane.b32.xlu0 %v1492, 32
        %v1499 = vpop.permute.xlu0 %1498
        %v1500 = vpack.c.bf16 %v1478, %v1478
        %1502 = vrot.lane.b32.xlu0 %v1500, 96
        %v1503 = vpop.permute.xlu0 %1502
        %1504 = vrot.lane.b32.xlu0 %v1500, 64
        %v1505 = vpop.permute.xlu0 %1504
        %1506 = vrot.lane.b32.xlu0 %v1500, 32
        %v1507 = vpop.permute.xlu0 %1506
        %v1509 = vsel %vm891, %v1484, 0
        %v1512 = vsel %vm891, %v1492, 0
        %1514 = vmatprep.subr.bf16.mxu0 0
        %1515 = vmatpush1.bf16.xpose.msra.mxu0 %v1512
        %1516 = vmatprep.subr.bf16.mxu0 0
        %1517 = vmatpush1.bf16.xpose.msra.mxu0 0
        %1518 = vmatprep.subr.bf16.mxu0 0
        %1519 = vmatpush1.bf16.xpose.msra.mxu0 0
        %1520 = vmatprep.subr.bf16.mxu0 0
        %1521 = vmatpush1.bf16.xpose.msra.mxu0 0
        %1522 = vmatprep.subr.bf16.mxu0 0
        %1523 = vmatpush1.bf16.xpose.msra.mxu0 0
        %1524 = vmatprep.subr.bf16.mxu0 0
        %1525 = vmatpush1.bf16.xpose.msra.mxu0 0
        %1526 = vmatprep.subr.bf16.mxu0 0
        %1527 = vmatpush1.bf16.xpose.msra.mxu0 0
        %1528 = vmatprep.subr.bf16.mxu0 0
        %1529 = vmatpush1.bf16.xpose.msra.mxu0 0
        %1530 = vmatprep.subr.bf16.mxu0 0
        %1531 = vmatpush1.bf16.xpose.msra.mxu0 0
        %1532 = vmatprep.subr.bf16.mxu0 0
        %1533 = vmatpush1.bf16.xpose.msra.mxu0 0
        %1534 = vmatprep.subr.bf16.mxu0 0
        %1535 = vmatpush1.bf16.xpose.msra.mxu0 0
        %1536 = vmatprep.subr.bf16.mxu0 0
        %1537 = vmatpush1.bf16.xpose.msra.mxu0 0
        %1538 = vmatprep.subr.bf16.mxu0 0
        %1539 = vmatpush1.bf16.xpose.msra.mxu0 0
        %1540 = vmatprep.subr.bf16.mxu0 0
        %1541 = vmatpush1.bf16.xpose.msra.mxu0 0
        %1542 = vmatprep.subr.bf16.mxu0 0
        %1543 = vmatpush1.bf16.xpose.msra.mxu0 0
        %1544 = vmatprep.subr.bf16.mxu0 0
        %1545 = vmatpush1.bf16.xpose.msra.mxu0 0
        %1546 = vmatprep.mubr.bf16.mxu0 0
        %1547 = vmatmul.mubr.bf16.gmra.mrb[0].mxu0 %v1509
        %v1548 = vpop.f32.mrb[0].mxu0
        %v1549 = vadd.f32 0.0, %v1548
        %v1550 = vpop.f32.mrb[0].mxu0
        %v1551 = vpop.f32.mrb[0].mxu0
        %v1552 = vpop.f32.mrb[0].mxu0
        %1553 = vdwg.mxu0
        %v1555 = vsel %vm891, %v1487, 0
        %v1558 = vsel %vm891, %v1495, 0
        %1560 = vmatprep.subr.bf16.mxu0 0
        %1561 = vmatpush1.bf16.xpose.msra.mxu0 %v1558
        %1562 = vmatprep.subr.bf16.mxu0 0
        %1563 = vmatpush1.bf16.xpose.msra.mxu0 0
        %1564 = vmatprep.subr.bf16.mxu0 0
        %1565 = vmatpush1.bf16.xpose.msra.mxu0 0
        %1566 = vmatprep.subr.bf16.mxu0 0
        %1567 = vmatpush1.bf16.xpose.msra.mxu0 0
        %1568 = vmatprep.subr.bf16.mxu0 0
        %1569 = vmatpush1.bf16.xpose.msra.mxu0 0
        %1570 = vmatprep.subr.bf16.mxu0 0
        %1571 = vmatpush1.bf16.xpose.msra.mxu0 0
        %1572 = vmatprep.subr.bf16.mxu0 0
        %1573 = vmatpush1.bf16.xpose.msra.mxu0 0
        %1574 = vmatprep.subr.bf16.mxu0 0
        %1575 = vmatpush1.bf16.xpose.msra.mxu0 0
        %1576 = vmatprep.subr.bf16.mxu0 0
        %1577 = vmatpush1.bf16.xpose.msra.mxu0 0
        %1578 = vmatprep.subr.bf16.mxu0 0
        %1579 = vmatpush1.bf16.xpose.msra.mxu0 0
        %1580 = vmatprep.subr.bf16.mxu0 0
        %1581 = vmatpush1.bf16.xpose.msra.mxu0 0
        %1582 = vmatprep.subr.bf16.mxu0 0
        %1583 = vmatpush1.bf16.xpose.msra.mxu0 0
        %1584 = vmatprep.subr.bf16.mxu0 0
        %1585 = vmatpush1.bf16.xpose.msra.mxu0 0
        %1586 = vmatprep.subr.bf16.mxu0 0
        %1587 = vmatpush1.bf16.xpose.msra.mxu0 0
        %1588 = vmatprep.subr.bf16.mxu0 0
        %1589 = vmatpush1.bf16.xpose.msra.mxu0 0
        %1590 = vmatprep.subr.bf16.mxu0 0
        %1591 = vmatpush1.bf16.xpose.msra.mxu0 0
        %1592 = vmatprep.mubr.bf16.mxu0 0
        %1593 = vmatmul.mubr.bf16.gmra.mrb[0].mxu0 %v1555
        %v1594 = vpop.f32.mrb[0].mxu0
        %v1595 = vadd.f32 0.0, %v1594
        %v1596 = vpop.f32.mrb[0].mxu0
        %v1597 = vpop.f32.mrb[0].mxu0
        %v1598 = vpop.f32.mrb[0].mxu0
        %1599 = vdwg.mxu0
        %v1601 = vsel %vm891, %v1489, 0
        %v1604 = vsel %vm891, %v1497, 0
        %1606 = vmatprep.subr.bf16.mxu0 0
        %1607 = vmatpush1.bf16.xpose.msra.mxu0 %v1604
        %1608 = vmatprep.subr.bf16.mxu0 0
        %1609 = vmatpush1.bf16.xpose.msra.mxu0 0
        %1610 = vmatprep.subr.bf16.mxu0 0
        %1611 = vmatpush1.bf16.xpose.msra.mxu0 0
        %1612 = vmatprep.subr.bf16.mxu0 0
        %1613 = vmatpush1.bf16.xpose.msra.mxu0 0
        %1614 = vmatprep.subr.bf16.mxu0 0
        %1615 = vmatpush1.bf16.xpose.msra.mxu0 0
        %1616 = vmatprep.subr.bf16.mxu0 0
        %1617 = vmatpush1.bf16.xpose.msra.mxu0 0
        %1618 = vmatprep.subr.bf16.mxu0 0
        %1619 = vmatpush1.bf16.xpose.msra.mxu0 0
        %1620 = vmatprep.subr.bf16.mxu0 0
        %1621 = vmatpush1.bf16.xpose.msra.mxu0 0
        %1622 = vmatprep.subr.bf16.mxu0 0
        %1623 = vmatpush1.bf16.xpose.msra.mxu0 0
        %1624 = vmatprep.subr.bf16.mxu0 0
        %1625 = vmatpush1.bf16.xpose.msra.mxu0 0
        %1626 = vmatprep.subr.bf16.mxu0 0
        %1627 = vmatpush1.bf16.xpose.msra.mxu0 0
        %1628 = vmatprep.subr.bf16.mxu0 0
        %1629 = vmatpush1.bf16.xpose.msra.mxu0 0
        %1630 = vmatprep.subr.bf16.mxu0 0
        %1631 = vmatpush1.bf16.xpose.msra.mxu0 0
        %1632 = vmatprep.subr.bf16.mxu0 0
        %1633 = vmatpush1.bf16.xpose.msra.mxu0 0
        %1634 = vmatprep.subr.bf16.mxu0 0
        %1635 = vmatpush1.bf16.xpose.msra.mxu0 0
        %1636 = vmatprep.subr.bf16.mxu0 0
        %1637 = vmatpush1.bf16.xpose.msra.mxu0 0
        %1638 = vmatprep.mubr.bf16.mxu0 0
        %1639 = vmatmul.mubr.bf16.gmra.mrb[0].mxu0 %v1601
        %v1640 = vpop.f32.mrb[0].mxu0
        %v1641 = vadd.f32 0.0, %v1640
        %v1642 = vpop.f32.mrb[0].mxu0
        %v1643 = vpop.f32.mrb[0].mxu0
        %v1644 = vpop.f32.mrb[0].mxu0
        %1645 = vdwg.mxu0
        %v1647 = vsel %vm891, %v1491, 0
        %v1650 = vsel %vm891, %v1499, 0
        %1652 = vmatprep.subr.bf16.mxu0 0
        %1653 = vmatpush1.bf16.xpose.msra.mxu0 %v1650
        %1654 = vmatprep.subr.bf16.mxu0 0
        %1655 = vmatpush1.bf16.xpose.msra.mxu0 0
        %1656 = vmatprep.subr.bf16.mxu0 0
        %1657 = vmatpush1.bf16.xpose.msra.mxu0 0
        %1658 = vmatprep.subr.bf16.mxu0 0
        %1659 = vmatpush1.bf16.xpose.msra.mxu0 0
        %1660 = vmatprep.subr.bf16.mxu0 0
        %1661 = vmatpush1.bf16.xpose.msra.mxu0 0
        %1662 = vmatprep.subr.bf16.mxu0 0
        %1663 = vmatpush1.bf16.xpose.msra.mxu0 0
        %1664 = vmatprep.subr.bf16.mxu0 0
        %1665 = vmatpush1.bf16.xpose.msra.mxu0 0
        %1666 = vmatprep.subr.bf16.mxu0 0
        %1667 = vmatpush1.bf16.xpose.msra.mxu0 0
        %1668 = vmatprep.subr.bf16.mxu0 0
        %1669 = vmatpush1.bf16.xpose.msra.mxu0 0
        %1670 = vmatprep.subr.bf16.mxu0 0
        %1671 = vmatpush1.bf16.xpose.msra.mxu0 0
        %1672 = vmatprep.subr.bf16.mxu0 0
        %1673 = vmatpush1.bf16.xpose.msra.mxu0 0
        %1674 = vmatprep.subr.bf16.mxu0 0
        %1675 = vmatpush1.bf16.xpose.msra.mxu0 0
        %1676 = vmatprep.subr.bf16.mxu0 0
        %1677 = vmatpush1.bf16.xpose.msra.mxu0 0
        %1678 = vmatprep.subr.bf16.mxu0 0
        %1679 = vmatpush1.bf16.xpose.msra.mxu0 0
        %1680 = vmatprep.subr.bf16.mxu0 0
        %1681 = vmatpush1.bf16.xpose.msra.mxu0 0
        %1682 = vmatprep.subr.bf16.mxu0 0
        %1683 = vmatpush1.bf16.xpose.msra.mxu0 0
        %1684 = vmatprep.mubr.bf16.mxu0 0
        %1685 = vmatmul.mubr.bf16.gmra.mrb[0].mxu0 %v1647
        %v1686 = vpop.f32.mrb[0].mxu0
        %v1687 = vadd.f32 0.0, %v1686
        %v1688 = vpop.f32.mrb[0].mxu0
        %v1689 = vpop.f32.mrb[0].mxu0
        %v1690 = vpop.f32.mrb[0].mxu0
        %1691 = vdwg.mxu0
        %v1692 = vsel %vm1076, %v1549, -inf
        %1693 = vmax.xlane.f32.xlu0 %v1692
        %v1694 = vpop.xlane.xlu0 %1693
        %v1695 = vsel %vm1076, %v1595, -inf
        %1696 = vmax.xlane.f32.xlu0 %v1695
        %v1697 = vpop.xlane.xlu0 %1696
        %v1698 = vsel %vm1076, %v1641, -inf
        %1699 = vmax.xlane.f32.xlu0 %v1698
        %v1700 = vpop.xlane.xlu0 %1699
        %v1701 = vsel %vm1076, %v1687, -inf
        %1702 = vmax.xlane.f32.xlu0 %v1701
        %v1703 = vpop.xlane.xlu0 %1702
        %v1704 = vsub.f32 %v1549, %v1694
        %v1705 = vsub.f32 %v1595, %v1697
        %v1706 = vsub.f32 %v1641, %v1700
        %v1707 = vsub.f32 %v1687, %v1703
        %v1708 = vmul.f32 %v1704, 1.442695
        %v1709 = vpow.pop %v1708
        %v1710 = vmul.f32 %v1705, 1.442695
        %v1711 = vpow.pop %v1710
        %v1712 = vmul.f32 %v1706, 1.442695
        %v1713 = vpow.pop %v1712
        %v1714 = vmul.f32 %v1707, 1.442695
        %v1715 = vpow.pop %v1714
        %v1716 = vsel %vm1076, %v1709, 0.0
        %1717 = vadd.xlane.f32.xlu0 %v1716
        %v1718 = vpop.xlane.xlu0 %1717
        %v1719 = vsel %vm1076, %v1711, 0.0
        %1720 = vadd.xlane.f32.xlu0 %v1719
        %v1721 = vpop.xlane.xlu0 %1720
        %v1722 = vsel %vm1076, %v1713, 0.0
        %1723 = vadd.xlane.f32.xlu0 %v1722
        %v1724 = vpop.xlane.xlu0 %1723
        %v1725 = vsel %vm1076, %v1715, 0.0
        %1726 = vadd.xlane.f32.xlu0 %v1725
        %v1727 = vpop.xlane.xlu0 %1726
        %v1728 = vrcp.pop %v1718
        %v1729 = vrcp.pop %v1721
        %v1730 = vrcp.pop %v1724
        %v1731 = vrcp.pop %v1727
        %v1732 = vmul.f32 %v1709, %v1728
        %v1733 = vmul.f32 %v1711, %v1729
        %v1734 = vmul.f32 %v1713, %v1730
        %v1735 = vmul.f32 %v1715, %v1731
        %v1736 = vpack.c.bf16 %v1732, %v1732
        %v1737 = vpack.c.bf16 %v1733, %v1733
        %v1738 = vpack.c.bf16 %v1734, %v1734
        %v1739 = vpack.c.bf16 %v1735, %v1735
        %v1741 = vsel %vm1076, %v1736, 0
        %v1744 = vsel %vm1128, %v1500, 0
        %1746 = vmatprep.subr.bf16.mxu0 0
        %1747 = vmatpush1.bf16.msra.mxu0 %v1744
        %1748 = vmatprep.subr.bf16.mxu0 0
        %1749 = vmatpush1.bf16.msra.mxu0 0
        %1750 = vmatprep.subr.bf16.mxu0 0
        %1751 = vmatpush1.bf16.msra.mxu0 0
        %1752 = vmatprep.subr.bf16.mxu0 0
        %1753 = vmatpush1.bf16.msra.mxu0 0
        %1754 = vmatprep.subr.bf16.mxu0 0
        %1755 = vmatpush1.bf16.msra.mxu0 0
        %1756 = vmatprep.subr.bf16.mxu0 0
        %1757 = vmatpush1.bf16.msra.mxu0 0
        %1758 = vmatprep.subr.bf16.mxu0 0
        %1759 = vmatpush1.bf16.msra.mxu0 0
        %1760 = vmatprep.subr.bf16.mxu0 0
        %1761 = vmatpush1.bf16.msra.mxu0 0
        %1762 = vmatprep.subr.bf16.mxu0 0
        %1763 = vmatpush1.bf16.msra.mxu0 0
        %1764 = vmatprep.subr.bf16.mxu0 0
        %1765 = vmatpush1.bf16.msra.mxu0 0
        %1766 = vmatprep.subr.bf16.mxu0 0
        %1767 = vmatpush1.bf16.msra.mxu0 0
        %1768 = vmatprep.subr.bf16.mxu0 0
        %1769 = vmatpush1.bf16.msra.mxu0 0
        %1770 = vmatprep.subr.bf16.mxu0 0
        %1771 = vmatpush1.bf16.msra.mxu0 0
        %1772 = vmatprep.subr.bf16.mxu0 0
        %1773 = vmatpush1.bf16.msra.mxu0 0
        %1774 = vmatprep.subr.bf16.mxu0 0
        %1775 = vmatpush1.bf16.msra.mxu0 0
        %1776 = vmatprep.subr.bf16.mxu0 0
        %1777 = vmatpush1.bf16.msra.mxu0 0
        %1778 = vmatprep.mubr.bf16.mxu0 0
        %1779 = vmatmul.mubr.bf16.gmra.mrb[0].mxu0 %v1741
        %v1780 = vpop.f32.mrb[0].mxu0
        %v1781 = vadd.f32 0.0, %v1780
        %v1782 = vpop.f32.mrb[0].mxu0
        %v1783 = vpop.f32.mrb[0].mxu0
        %v1784 = vpop.f32.mrb[0].mxu0
        %1785 = vdwg.mxu0
        %v1787 = vsel %vm1076, %v1737, 0
        %v1790 = vsel %vm1128, %v1503, 0
        %1792 = vmatprep.subr.bf16.mxu0 0
        %1793 = vmatpush1.bf16.msra.mxu0 %v1790
        %1794 = vmatprep.subr.bf16.mxu0 0
        %1795 = vmatpush1.bf16.msra.mxu0 0
        %1796 = vmatprep.subr.bf16.mxu0 0
        %1797 = vmatpush1.bf16.msra.mxu0 0
        %1798 = vmatprep.subr.bf16.mxu0 0
        %1799 = vmatpush1.bf16.msra.mxu0 0
        %1800 = vmatprep.subr.bf16.mxu0 0
        %1801 = vmatpush1.bf16.msra.mxu0 0
        %1802 = vmatprep.subr.bf16.mxu0 0
        %1803 = vmatpush1.bf16.msra.mxu0 0
        %1804 = vmatprep.subr.bf16.mxu0 0
        %1805 = vmatpush1.bf16.msra.mxu0 0
        %1806 = vmatprep.subr.bf16.mxu0 0
        %1807 = vmatpush1.bf16.msra.mxu0 0
        %1808 = vmatprep.subr.bf16.mxu0 0
        %1809 = vmatpush1.bf16.msra.mxu0 0
        %1810 = vmatprep.subr.bf16.mxu0 0
        %1811 = vmatpush1.bf16.msra.mxu0 0
        %1812 = vmatprep.subr.bf16.mxu0 0
        %1813 = vmatpush1.bf16.msra.mxu0 0
        %1814 = vmatprep.subr.bf16.mxu0 0
        %1815 = vmatpush1.bf16.msra.mxu0 0
        %1816 = vmatprep.subr.bf16.mxu0 0
        %1817 = vmatpush1.bf16.msra.mxu0 0
        %1818 = vmatprep.subr.bf16.mxu0 0
        %1819 = vmatpush1.bf16.msra.mxu0 0
        %1820 = vmatprep.subr.bf16.mxu0 0
        %1821 = vmatpush1.bf16.msra.mxu0 0
        %1822 = vmatprep.subr.bf16.mxu0 0
        %1823 = vmatpush1.bf16.msra.mxu0 0
        %1824 = vmatprep.mubr.bf16.mxu0 0
        %1825 = vmatmul.mubr.bf16.gmra.mrb[0].mxu0 %v1787
        %v1826 = vpop.f32.mrb[0].mxu0
        %v1827 = vadd.f32 0.0, %v1826
        %v1828 = vpop.f32.mrb[0].mxu0
        %v1829 = vpop.f32.mrb[0].mxu0
        %v1830 = vpop.f32.mrb[0].mxu0
        %1831 = vdwg.mxu0
        %v1833 = vsel %vm1076, %v1738, 0
        %v1836 = vsel %vm1128, %v1505, 0
        %1838 = vmatprep.subr.bf16.mxu0 0
        %1839 = vmatpush1.bf16.msra.mxu0 %v1836
        %1840 = vmatprep.subr.bf16.mxu0 0
        %1841 = vmatpush1.bf16.msra.mxu0 0
        %1842 = vmatprep.subr.bf16.mxu0 0
        %1843 = vmatpush1.bf16.msra.mxu0 0
        %1844 = vmatprep.subr.bf16.mxu0 0
        %1845 = vmatpush1.bf16.msra.mxu0 0
        %1846 = vmatprep.subr.bf16.mxu0 0
        %1847 = vmatpush1.bf16.msra.mxu0 0
        %1848 = vmatprep.subr.bf16.mxu0 0
        %1849 = vmatpush1.bf16.msra.mxu0 0
        %1850 = vmatprep.subr.bf16.mxu0 0
        %1851 = vmatpush1.bf16.msra.mxu0 0
        %1852 = vmatprep.subr.bf16.mxu0 0
        %1853 = vmatpush1.bf16.msra.mxu0 0
        %1854 = vmatprep.subr.bf16.mxu0 0
        %1855 = vmatpush1.bf16.msra.mxu0 0
        %1856 = vmatprep.subr.bf16.mxu0 0
        %1857 = vmatpush1.bf16.msra.mxu0 0
        %1858 = vmatprep.subr.bf16.mxu0 0
        %1859 = vmatpush1.bf16.msra.mxu0 0
        %1860 = vmatprep.subr.bf16.mxu0 0
        %1861 = vmatpush1.bf16.msra.mxu0 0
        %1862 = vmatprep.subr.bf16.mxu0 0
        %1863 = vmatpush1.bf16.msra.mxu0 0
        %1864 = vmatprep.subr.bf16.mxu0 0
        %1865 = vmatpush1.bf16.msra.mxu0 0
        %1866 = vmatprep.subr.bf16.mxu0 0
        %1867 = vmatpush1.bf16.msra.mxu0 0
        %1868 = vmatprep.subr.bf16.mxu0 0
        %1869 = vmatpush1.bf16.msra.mxu0 0
        %1870 = vmatprep.mubr.bf16.mxu0 0
        %1871 = vmatmul.mubr.bf16.gmra.mrb[0].mxu0 %v1833
        %v1872 = vpop.f32.mrb[0].mxu0
        %v1873 = vadd.f32 0.0, %v1872
        %v1874 = vpop.f32.mrb[0].mxu0
        %v1875 = vpop.f32.mrb[0].mxu0
        %v1876 = vpop.f32.mrb[0].mxu0
        %1877 = vdwg.mxu0
        %v1879 = vsel %vm1076, %v1739, 0
        %v1882 = vsel %vm1128, %v1507, 0
        %1884 = vmatprep.subr.bf16.mxu0 0
        %1885 = vmatpush1.bf16.msra.mxu0 %v1882
        %1886 = vmatprep.subr.bf16.mxu0 0
        %1887 = vmatpush1.bf16.msra.mxu0 0
        %1888 = vmatprep.subr.bf16.mxu0 0
        %1889 = vmatpush1.bf16.msra.mxu0 0
        %1890 = vmatprep.subr.bf16.mxu0 0
        %1891 = vmatpush1.bf16.msra.mxu0 0
        %1892 = vmatprep.subr.bf16.mxu0 0
        %1893 = vmatpush1.bf16.msra.mxu0 0
        %1894 = vmatprep.subr.bf16.mxu0 0
        %1895 = vmatpush1.bf16.msra.mxu0 0
        %1896 = vmatprep.subr.bf16.mxu0 0
        %1897 = vmatpush1.bf16.msra.mxu0 0
        %1898 = vmatprep.subr.bf16.mxu0 0
        %1899 = vmatpush1.bf16.msra.mxu0 0
        %1900 = vmatprep.subr.bf16.mxu0 0
        %1901 = vmatpush1.bf16.msra.mxu0 0
        %1902 = vmatprep.subr.bf16.mxu0 0
        %1903 = vmatpush1.bf16.msra.mxu0 0
        %1904 = vmatprep.subr.bf16.mxu0 0
        %1905 = vmatpush1.bf16.msra.mxu0 0
        %1906 = vmatprep.subr.bf16.mxu0 0
        %1907 = vmatpush1.bf16.msra.mxu0 0
        %1908 = vmatprep.subr.bf16.mxu0 0
        %1909 = vmatpush1.bf16.msra.mxu0 0
        %1910 = vmatprep.subr.bf16.mxu0 0
        %1911 = vmatpush1.bf16.msra.mxu0 0
        %1912 = vmatprep.subr.bf16.mxu0 0
        %1913 = vmatpush1.bf16.msra.mxu0 0
        %1914 = vmatprep.subr.bf16.mxu0 0
        %1915 = vmatpush1.bf16.msra.mxu0 0
        %1916 = vmatprep.mubr.bf16.mxu0 0
        %1917 = vmatmul.mubr.bf16.gmra.mrb[0].mxu0 %v1879
        %v1918 = vpop.f32.mrb[0].mxu0
        %v1919 = vadd.f32 0.0, %v1918
        %v1920 = vpop.f32.mrb[0].mxu0
        %v1921 = vpop.f32.mrb[0].mxu0
        %v1922 = vpop.f32.mrb[0].mxu0
        %1923 = vdwg.mxu0
        %1925 = vrot.lane.b32.xlu0 %v1827, 32
        %v1926 = vpop.permute.xlu0 %1925
        %1929 = vrot.lane.b32.xlu0 %v1873, 64
        %v1930 = vpop.permute.xlu0 %1929
        %1933 = vrot.lane.b32.xlu0 %v1919, 96
        %v1934 = vpop.permute.xlu0 %1933
        %v1936 = vsel %vm891, %v1781, %v1926
        %v1937 = vsel %vm1323, %v1936, %v1930
        %v1938 = vsel %vm1325, %v1937, %v1934
        %v1939 = vpack.c.bf16 %v1938, %v1938
        %1940 = vmatprep.subr.bf16.mxu0 0
        %1941 = vmatpush1.bf16.msra.mxu0 %v614
        %1942 = vmatprep.subr.bf16.mxu0 0
        %1943 = vmatpush1.bf16.msra.mxu0 %v615
        %1944 = vmatprep.subr.bf16.mxu0 0
        %1945 = vmatpush1.bf16.msra.mxu0 %v616
        %1946 = vmatprep.subr.bf16.mxu0 0
        %1947 = vmatpush1.bf16.msra.mxu0 %v617
        %1948 = vmatprep.subr.bf16.mxu0 0
        %1949 = vmatpush1.bf16.msra.mxu0 %v618
        %1950 = vmatprep.subr.bf16.mxu0 0
        %1951 = vmatpush1.bf16.msra.mxu0 %v619
        %1952 = vmatprep.subr.bf16.mxu0 0
        %1953 = vmatpush1.bf16.msra.mxu0 %v620
        %1954 = vmatprep.subr.bf16.mxu0 0
        %1955 = vmatpush1.bf16.msra.mxu0 %v621
        %1956 = vmatprep.subr.bf16.mxu0 0
        %1957 = vmatpush1.bf16.msra.mxu0 0
        %1958 = vmatprep.subr.bf16.mxu0 0
        %1959 = vmatpush1.bf16.msra.mxu0 0
        %1960 = vmatprep.subr.bf16.mxu0 0
        %1961 = vmatpush1.bf16.msra.mxu0 0
        %1962 = vmatprep.subr.bf16.mxu0 0
        %1963 = vmatpush1.bf16.msra.mxu0 0
        %1964 = vmatprep.subr.bf16.mxu0 0
        %1965 = vmatpush1.bf16.msra.mxu0 0
        %1966 = vmatprep.subr.bf16.mxu0 0
        %1967 = vmatpush1.bf16.msra.mxu0 0
        %1968 = vmatprep.subr.bf16.mxu0 0
        %1969 = vmatpush1.bf16.msra.mxu0 0
        %1970 = vmatprep.subr.bf16.mxu0 0
        %1971 = vmatpush1.bf16.msra.mxu0 0
        %1972 = vmatprep.mubr.bf16.mxu0 0
        %1973 = vmatmul.mubr.bf16.gmra.mrb[0].mxu0 %v1939
        %v1974 = vpop.f32.mrb[0].mxu0
        %v1975 = vadd.f32 0.0, %v1974
        %v1976 = vpop.f32.mrb[0].mxu0
        %v1977 = vpop.f32.mrb[0].mxu0
        %v1978 = vpop.f32.mrb[0].mxu0
        %1979 = vdwg.mxu0
        %v1980 = vadd.f32 %v1375, %v1975
        %v1982 = vlaneseq
        %v1983 = vshrl.u32 %v1982, 7
        %v1984 = vsub.s32 0, %v1983
        %v1985 = vrot.slane %v622, %v1984
        %v1987 = vadd.f32 %v1980, %v1985
        %1988 = vadd.xlane.f32.xlu0 %v1987
        %v1989 = vpop.xlane.xlu0 %1988
        %v1990 = vmul.f32 %v1989, %v695
        %v1991 = vsub.f32 %v1987, %v1990
        %v1992 = vmul.f32 %v1991, %v1991
        %1993 = vadd.xlane.f32.xlu0 %v1992
        %v1994 = vpop.xlane.xlu0 %1993
        %v1995 = vmul.f32 %v1994, %v695
        %v1996 = vadd.f32 %v1995, 1e-05
        %v1997 = vrsqrt.pop %v1996
        %v1998 = vmul.f32 %v1991, %v1997
        %v2000 = vlaneseq
        %v2001 = vshrl.u32 %v2000, 7
        %v2002 = vsub.s32 0, %v2001
        %v2003 = vrot.slane %v623, %v2002
        %v2005 = vmul.f32 %v1998, %v2003
        %v2007 = vlaneseq
        %v2008 = vshrl.u32 %v2007, 7
        %v2009 = vsub.s32 0, %v2008
        %v2010 = vrot.slane %v624, %v2009
        %v2012 = vadd.f32 %v2005, %v2010
        %v2013 = vpack.c.bf16 %v2012, %v2012
        %v2015 = vlaneseq
        %v2016 = vshrl.u32 %v2015, 7
        %v2017 = vsub.s32 0, %v2016
        %v2018 = vrot.slane %v657, %v2017
        %v2019 = vlaneseq
        %v2020 = vshrl.u32 %v2019, 7
        %v2021 = vsub.s32 1, %v2020
        %v2022 = vrot.slane %v657, %v2021
        %v2023 = vlaneseq
        %v2024 = vshrl.u32 %v2023, 7
        %v2025 = vsub.s32 2, %v2024
        %v2026 = vrot.slane %v657, %v2025
        %v2027 = vlaneseq
        %v2028 = vshrl.u32 %v2027, 7
        %v2029 = vsub.s32 3, %v2028
        %v2030 = vrot.slane %v657, %v2029
        %2035 = vmatprep.subr.bf16.mxu0 %v626
        %2036 = vmatpush1.bf16.msra.mxu0 %v625
        %2037 = vmatprep.subr.bf16.mxu0 %v630
        %2038 = vmatpush1.bf16.msra.mxu0 %v629
        %2039 = vmatprep.subr.bf16.mxu0 %v634
        %2040 = vmatpush1.bf16.msra.mxu0 %v633
        %2041 = vmatprep.subr.bf16.mxu0 %v638
        %2042 = vmatpush1.bf16.msra.mxu0 %v637
        %2043 = vmatprep.subr.bf16.mxu0 %v642
        %2044 = vmatpush1.bf16.msra.mxu0 %v641
        %2045 = vmatprep.subr.bf16.mxu0 %v646
        %2046 = vmatpush1.bf16.msra.mxu0 %v645
        %2047 = vmatprep.subr.bf16.mxu0 %v650
        %2048 = vmatpush1.bf16.msra.mxu0 %v649
        %2049 = vmatprep.subr.bf16.mxu0 %v654
        %2050 = vmatpush1.bf16.msra.mxu0 %v653
        %2051 = vmatprep.subr.bf16.mxu0 0
        %2052 = vmatpush1.bf16.msra.mxu0 0
        %2053 = vmatprep.subr.bf16.mxu0 0
        %2054 = vmatpush1.bf16.msra.mxu0 0
        %2055 = vmatprep.subr.bf16.mxu0 0
        %2056 = vmatpush1.bf16.msra.mxu0 0
        %2057 = vmatprep.subr.bf16.mxu0 0
        %2058 = vmatpush1.bf16.msra.mxu0 0
        %2059 = vmatprep.subr.bf16.mxu0 0
        %2060 = vmatpush1.bf16.msra.mxu0 0
        %2061 = vmatprep.subr.bf16.mxu0 0
        %2062 = vmatpush1.bf16.msra.mxu0 0
        %2063 = vmatprep.subr.bf16.mxu0 0
        %2064 = vmatpush1.bf16.msra.mxu0 0
        %2065 = vmatprep.subr.bf16.mxu0 0
        %2066 = vmatpush1.bf16.msra.mxu0 0
        %2067 = vmatprep.mubr.bf16.mxu0 0
        %2068 = vmatmul.mubr.bf16.gmra.mrb[0].mxu0 %v2013
        %v2069 = vpop.f32.mrb[0].mxu0
        %v2070 = vadd.f32 %v2018, %v2069
        %v2071 = vpop.f32.mrb[0].mxu0
        %v2072 = vadd.f32 %v2022, %v2071
        %v2073 = vpop.f32.mrb[0].mxu0
        %v2074 = vpop.f32.mrb[0].mxu0
        %2075 = vdwg.mxu0
        %2076 = vmatprep.subr.bf16.mxu0 %v628
        %2077 = vmatpush1.bf16.msra.mxu0 %v627
        %2078 = vmatprep.subr.bf16.mxu0 %v632
        %2079 = vmatpush1.bf16.msra.mxu0 %v631
        %2080 = vmatprep.subr.bf16.mxu0 %v636
        %2081 = vmatpush1.bf16.msra.mxu0 %v635
        %2082 = vmatprep.subr.bf16.mxu0 %v640
        %2083 = vmatpush1.bf16.msra.mxu0 %v639
        %2084 = vmatprep.subr.bf16.mxu0 %v644
        %2085 = vmatpush1.bf16.msra.mxu0 %v643
        %2086 = vmatprep.subr.bf16.mxu0 %v648
        %2087 = vmatpush1.bf16.msra.mxu0 %v647
        %2088 = vmatprep.subr.bf16.mxu0 %v652
        %2089 = vmatpush1.bf16.msra.mxu0 %v651
        %2090 = vmatprep.subr.bf16.mxu0 %v656
        %2091 = vmatpush1.bf16.msra.mxu0 %v655
        %2092 = vmatprep.subr.bf16.mxu0 0
        %2093 = vmatpush1.bf16.msra.mxu0 0
        %2094 = vmatprep.subr.bf16.mxu0 0
        %2095 = vmatpush1.bf16.msra.mxu0 0
        %2096 = vmatprep.subr.bf16.mxu0 0
        %2097 = vmatpush1.bf16.msra.mxu0 0
        %2098 = vmatprep.subr.bf16.mxu0 0
        %2099 = vmatpush1.bf16.msra.mxu0 0
        %2100 = vmatprep.subr.bf16.mxu0 0
        %2101 = vmatpush1.bf16.msra.mxu0 0
        %2102 = vmatprep.subr.bf16.mxu0 0
        %2103 = vmatpush1.bf16.msra.mxu0 0
        %2104 = vmatprep.subr.bf16.mxu0 0
        %2105 = vmatpush1.bf16.msra.mxu0 0
        %2106 = vmatprep.subr.bf16.mxu0 0
        %2107 = vmatpush1.bf16.msra.mxu0 0
        %2108 = vmatprep.mubr.bf16.mxu0 0
        %2109 = vmatmul.mubr.bf16.gmra.mrb[0].mxu0 %v2013
        %v2110 = vpop.f32.mrb[0].mxu0
        %v2111 = vadd.f32 %v2026, %v2110
        %v2112 = vpop.f32.mrb[0].mxu0
        %v2113 = vadd.f32 %v2030, %v2112
        %v2114 = vpop.f32.mrb[0].mxu0
        %v2115 = vpop.f32.mrb[0].mxu0
        %2116 = vdwg.mxu0
        %v2117 = vmul.f32 %v2070, %v2070
        %v2118 = vmul.f32 %v2072, %v2072
        %v2119 = vmul.f32 %v2111, %v2111
        %v2120 = vmul.f32 %v2113, %v2113
        %v2121 = vmul.f32 %v2070, %v2117
        %v2122 = vmul.f32 %v2072, %v2118
        %v2123 = vmul.f32 %v2111, %v2119
        %v2124 = vmul.f32 %v2113, %v2120
        %v2125 = vmul.f32 %v2121, 0.044715
        %v2126 = vmul.f32 %v2122, 0.044715
        %v2127 = vmul.f32 %v2123, 0.044715
        %v2128 = vmul.f32 %v2124, 0.044715
        %v2129 = vadd.f32 %v2070, %v2125
        %v2130 = vadd.f32 %v2072, %v2126
        %v2131 = vadd.f32 %v2111, %v2127
        %v2132 = vadd.f32 %v2113, %v2128
        %v2133 = vmul.f32 %v2129, 0.7978846
        %v2134 = vmul.f32 %v2130, 0.7978846
        %v2135 = vmul.f32 %v2131, 0.7978846
        %v2136 = vmul.f32 %v2132, 0.7978846
        %v2137 = vtanh.pop %v2133
        %v2138 = vtanh.pop %v2134
        %v2139 = vtanh.pop %v2135
        %v2140 = vtanh.pop %v2136
        %v2141 = vadd.f32 %v2137, 1.0
        %v2142 = vadd.f32 %v2138, 1.0
        %v2143 = vadd.f32 %v2139, 1.0
        %v2144 = vadd.f32 %v2140, 1.0
        %v2145 = vmul.f32 %v2141, 0.5
        %v2146 = vmul.f32 %v2142, 0.5
        %v2147 = vmul.f32 %v2143, 0.5
        %v2148 = vmul.f32 %v2144, 0.5
        %v2149 = vmul.f32 %v2070, %v2145
        %v2150 = vmul.f32 %v2072, %v2146
        %v2151 = vmul.f32 %v2111, %v2147
        %v2152 = vmul.f32 %v2113, %v2148
        %v2153 = vpack.c.bf16 %v2149, %v2149
        %v2154 = vpack.c.bf16 %v2150, %v2150
        %v2155 = vpack.c.bf16 %v2151, %v2151
        %v2156 = vpack.c.bf16 %v2152, %v2152
        %2157 = vmatprep.subr.bf16.mxu0 0
        %2158 = vmatpush1.bf16.msra.mxu0 %v658
        %2159 = vmatprep.subr.bf16.mxu0 0
        %2160 = vmatpush1.bf16.msra.mxu0 %v659
        %2161 = vmatprep.subr.bf16.mxu0 0
        %2162 = vmatpush1.bf16.msra.mxu0 %v660
        %2163 = vmatprep.subr.bf16.mxu0 0
        %2164 = vmatpush1.bf16.msra.mxu0 %v661
        %2165 = vmatprep.subr.bf16.mxu0 0
        %2166 = vmatpush1.bf16.msra.mxu0 %v662
        %2167 = vmatprep.subr.bf16.mxu0 0
        %2168 = vmatpush1.bf16.msra.mxu0 %v663
        %2169 = vmatprep.subr.bf16.mxu0 0
        %2170 = vmatpush1.bf16.msra.mxu0 %v664
        %2171 = vmatprep.subr.bf16.mxu0 0
        %2172 = vmatpush1.bf16.msra.mxu0 %v665
        %2173 = vmatprep.subr.bf16.mxu0 0
        %2174 = vmatpush1.bf16.msra.mxu0 %v666
        %2175 = vmatprep.subr.bf16.mxu0 0
        %2176 = vmatpush1.bf16.msra.mxu0 %v667
        %2177 = vmatprep.subr.bf16.mxu0 0
        %2178 = vmatpush1.bf16.msra.mxu0 %v668
        %2179 = vmatprep.subr.bf16.mxu0 0
        %2180 = vmatpush1.bf16.msra.mxu0 %v669
        %2181 = vmatprep.subr.bf16.mxu0 0
        %2182 = vmatpush1.bf16.msra.mxu0 %v670
        %2183 = vmatprep.subr.bf16.mxu0 0
        %2184 = vmatpush1.bf16.msra.mxu0 %v671
        %2185 = vmatprep.subr.bf16.mxu0 0
        %2186 = vmatpush1.bf16.msra.mxu0 %v672
        %2187 = vmatprep.subr.bf16.mxu0 0
        %2188 = vmatpush1.bf16.msra.mxu0 %v673
        %2189 = vmatprep.mubr.bf16.mxu0 %v2154
        %2190 = vmatmul.mubr.bf16.gmra.mrb[0].mxu0 %v2153
        %v2191 = vpop.f32.mrb[0].mxu0
        %v2192 = vadd.f32 0.0, %v2191
        %v2193 = vpop.f32.mrb[0].mxu0
        %v2194 = vpop.f32.mrb[0].mxu0
        %v2195 = vpop.f32.mrb[0].mxu0
        %2196 = vdwg.mxu0
        %2197 = vmatprep.subr.bf16.mxu0 0
        %2198 = vmatpush1.bf16.msra.mxu0 %v674
        %2199 = vmatprep.subr.bf16.mxu0 0
        %2200 = vmatpush1.bf16.msra.mxu0 %v675
        %2201 = vmatprep.subr.bf16.mxu0 0
        %2202 = vmatpush1.bf16.msra.mxu0 %v676
        %2203 = vmatprep.subr.bf16.mxu0 0
        %2204 = vmatpush1.bf16.msra.mxu0 %v677
        %2205 = vmatprep.subr.bf16.mxu0 0
        %2206 = vmatpush1.bf16.msra.mxu0 %v678
        %2207 = vmatprep.subr.bf16.mxu0 0
        %2208 = vmatpush1.bf16.msra.mxu0 %v679
        %2209 = vmatprep.subr.bf16.mxu0 0
        %2210 = vmatpush1.bf16.msra.mxu0 %v680
        %2211 = vmatprep.subr.bf16.mxu0 0
        %2212 = vmatpush1.bf16.msra.mxu0 %v681
        %2213 = vmatprep.subr.bf16.mxu0 0
        %2214 = vmatpush1.bf16.msra.mxu0 %v682
        %2215 = vmatprep.subr.bf16.mxu0 0
        %2216 = vmatpush1.bf16.msra.mxu0 %v683
        %2217 = vmatprep.subr.bf16.mxu0 0
        %2218 = vmatpush1.bf16.msra.mxu0 %v684
        %2219 = vmatprep.subr.bf16.mxu0 0
        %2220 = vmatpush1.bf16.msra.mxu0 %v685
        %2221 = vmatprep.subr.bf16.mxu0 0
        %2222 = vmatpush1.bf16.msra.mxu0 %v686
        %2223 = vmatprep.subr.bf16.mxu0 0
        %2224 = vmatpush1.bf16.msra.mxu0 %v687
        %2225 = vmatprep.subr.bf16.mxu0 0
        %2226 = vmatpush1.bf16.msra.mxu0 %v688
        %2227 = vmatprep.subr.bf16.mxu0 0
        %2228 = vmatpush1.bf16.msra.mxu0 %v689
        %2229 = vmatprep.mubr.bf16.mxu0 %v2156
        %2230 = vmatmul.mubr.bf16.gmra.mrb[0].mxu0 %v2155
        %v2231 = vpop.f32.mrb[0].mxu0
        %v2232 = vadd.f32 %v2192, %v2231
        %v2233 = vpop.f32.mrb[0].mxu0
        %v2234 = vpop.f32.mrb[0].mxu0
        %v2235 = vpop.f32.mrb[0].mxu0
        %2236 = vdwg.mxu0
        %v2237 = vadd.f32 %v1987, %v2232
        %v2239 = vlaneseq
        %v2240 = vshrl.u32 %v2239, 7
        %v2241 = vsub.s32 0, %v2240
        %v2242 = vrot.slane %v690, %v2241
        %v2244 = vadd.f32 %v2237, %v2242
        %2245 = vst [vmem:[%s215] sm:$0xff] %v2244
        %s2246 = sand.u32 %s102, 1
        %s2247 = scalar_lea.sflag [#allocation25], %s2246
        %s2248 = sand.u32 %s102, 1
        %s2249 = smul.addr %s2248, 8
        %s2250 = scalar_lea.vmem [#allocation28], %s2249
        // Predicated region
        $region109: #{tpu_custom_call.1} parent=27 // pred_check
          %p2251 = pneg %p112
        $region110: #{tpu_custom_call.1} parent=27 // pred_check_branch
          %2253 = sbr.rel (%p2251) target = $region112
        $region111: #{tpu_custom_call.1} parent=27 // pred_region
          %s2255 = ssub.s32 128, 128
          %2256 = vsyncadd %s2247, %s2255
          %s2257 = smul.addr %s42, 128
          %s2258 = scalar_lea.hbm %s22, %s2257
          %s2260 = sshll.u32 %s2250, 4
          %s2261 = int_to_ptr.vmem [resolvable:$true] %s2260
          %2263 = dma.vmem_to_hbm [thread:$0]  %s2261, 128, %s2258, %s2247
        $region112: #{tpu_custom_call.1} parent=27 // pred_fallthru
          _
      $region28: #{tpu_custom_call.1} parent=5 // pred_fallthru
        _
      %p2264 = scmp.le.s32.totalorder 2, %s37
      // Predicated region
      $region113: #{tpu_custom_call.1} parent=5 // pred_check
        %p2265 = pneg %p2264
      $region114: #{tpu_custom_call.1} parent=5 // pred_check_branch
        %2267 = sbr.rel (%p2265) target = $region116
      $region115: #{tpu_custom_call.1} parent=5 // pred_region
        %s2268 = ssub.s32 %s37, 2
        // Predicated region
        $region117: #{tpu_custom_call.1} parent=115 // pred_check
          %p2269 = pneg %p118
        $region118: #{tpu_custom_call.1} parent=115 // pred_check_branch
          %2271 = sbr.rel (%p2269) target = $region120
        $region119: #{tpu_custom_call.1} parent=115 // pred_region
          %s2272 = sand.u32 %s103, 1
          %s2273 = scalar_lea.sflag [#allocation25], %s2272
          %s2274 = sand.u32 %s103, 1
          %s2275 = smul.addr %s2274, 8
          %s2276 = scalar_lea.vmem [#allocation28], %s2275
          %2277 = dma.done %s2273, 128
        $region120: #{tpu_custom_call.1} parent=115 // pred_fallthru
          _
      $region116: #{tpu_custom_call.1} parent=5 // pred_fallthru
        _
    $region6: #{tpu_custom_call.1} parent=1 // loop_footer
      %s41 = sadd.s32 1, %s37
    $region7: #{tpu_custom_call.1} parent=1 // loop_footer_branch
      %36 = sbr.rel target = $region3
    $region8: #{tpu_custom_call.1} parent=1 // loop_exit
      _
    %2278 = vsyncpa [#allocation24], 1
    %s2279 = scalar_lea.sflag [#allocation24], 1
    %2280 = vsyncpa %s2279, 1
    %2281 = vsyncpa [#allocation27], 1
    %s2282 = scalar_lea.sflag [#allocation27], 1
    %2283 = vsyncpa %s2282, 1
    %2284 = vsyncpa [#allocation25], 1
    %s2285 = scalar_lea.sflag [#allocation25], 1
    %2286 = vsyncpa %s2285, 1
  %2287 = vsyncmov [#allocation22]
  %s2288 = vpop.sfrf %2287
  %p2289 = scmp.eq.s32.totalorder %s2288, 0
  %p2290 = pneg %p2289
  %2292 = shalt.err (%p2290)
  %s2293 = scalar_lea.sflag [#allocation22], 1
  %2294 = vsyncmov %s2293
  %s2295 = vpop.sfrf %2294
  %p2296 = scmp.eq.s32.totalorder %s2295, 0
  %p2297 = pneg %p2296
  %2299 = shalt.err (%p2297)
  %s2300 = scalar_lea.sflag [#allocation22], 2
  %2301 = vsyncmov %s2300
  %s2302 = vpop.sfrf %2301
  %p2303 = scmp.eq.s32.totalorder %s2302, 0
  %p2304 = pneg %p2303
  %2306 = shalt.err (%p2304)
  %s2307 = scalar_lea.sflag [#allocation22], 3
  %2308 = vsyncmov %s2307
  %s2309 = vpop.sfrf %2308
  %p2310 = scmp.eq.s32.totalorder %s2309, 0
  %p2311 = pneg %p2310
  %2313 = shalt.err (%p2311)
  %s2314 = scalar_lea.sflag [#allocation22], 4
  %2315 = vsyncmov %s2314
  %s2316 = vpop.sfrf %2315
  %p2317 = scmp.eq.s32.totalorder %s2316, 0
  %p2318 = pneg %p2317
  %2320 = shalt.err (%p2318)
  %s2321 = scalar_lea.sflag [#allocation22], 5
  %2322 = vsyncmov %s2321
  %s2323 = vpop.sfrf %2322
  %p2324 = scmp.eq.s32.totalorder %s2323, 0
  %p2325 = pneg %p2324
  %2327 = shalt.err (%p2325)
  %s2328 = scalar_lea.sflag [#allocation22], 6
  %2329 = vsyncmov %s2328
  %s2330 = vpop.sfrf %2329
  %p2331 = scmp.eq.s32.totalorder %s2330, 0
  %p2332 = pneg %p2331
  %2334 = shalt.err (%p2332)
  %s2335 = scalar_lea.sflag [#allocation22], 7
  %2336 = vsyncmov %s2335
  %s2337 = vpop.sfrf %2336
  %p2338 = scmp.eq.s32.totalorder %s2337, 0
  %p2339 = pneg %p2338
  %2341 = shalt.err (%p2339)
  %s2342 = scalar_lea.sflag [#allocation22], 8
  %2343 = vsyncmov %s2342
  %s2344 = vpop.sfrf %2343
  %p2345 = scmp.eq.s32.totalorder %s2344, 0
  %p2346 = pneg %p2345
  %2348 = shalt.err (%p2346)
  %s2349 = scalar_lea.sflag [#allocation22], 9
  %2350 = vsyncmov %s2349
  %s2351 = vpop.sfrf %2350
  %p2352 = scmp.eq.s32.totalorder %s2351, 0
  %p2353 = pneg %p2352
  %2355 = shalt.err (%p2353)
  %s2356 = scalar_lea.sflag [#allocation22], 10
  %2357 = vsyncmov %s2356
  %s2358 = vpop.sfrf %2357
  %p2359 = scmp.eq.s32.totalorder %s2358, 0
  %p2360 = pneg %p2359
  %2362 = shalt.err (%p2360)
  %s2363 = scalar_lea.sflag [#allocation22], 11
  %2364 = vsyncmov %s2363
  %s2365 = vpop.sfrf %2364
  %p2366 = scmp.eq.s32.totalorder %s2365, 0
  %p2367 = pneg %p2366
  %2369 = shalt.err (%p2367)
  %s2370 = scalar_lea.sflag [#allocation22], 12
  %2371 = vsyncmov %s2370
  %s2372 = vpop.sfrf %2371
  %p2373 = scmp.eq.s32.totalorder %s2372, 0
  %p2374 = pneg %p2373
  %2376 = shalt.err (%p2374)
  %s2377 = scalar_lea.sflag [#allocation22], 13
  %2378 = vsyncmov %s2377
  %s2379 = vpop.sfrf %2378
  %p2380 = scmp.eq.s32.totalorder %s2379, 0
  %p2381 = pneg %p2380
  %2383 = shalt.err (%p2381)
  %s2384 = scalar_lea.sflag [#allocation22], 14
  %2385 = vsyncmov %s2384
  %s2386 = vpop.sfrf %2385
  %p2387 = scmp.eq.s32.totalorder %s2386, 0
  %p2388 = pneg %p2387
  %2390 = shalt.err (%p2388)
  %s2391 = scalar_lea.sflag [#allocation22], 15
  %2392 = vsyncmov %s2391
  %s2393 = vpop.sfrf %2392
  %p2394 = scmp.eq.s32.totalorder %s2393, 0
  %p2395 = pneg %p2394
  %2397 = shalt.err (%p2395)
  %s2398 = scalar_lea.sflag [#allocation22], 16
  %2399 = vsyncmov %s2398
  %s2400 = vpop.sfrf %2399
  %p2401 = scmp.eq.s32.totalorder %s2400, 0
  %p2402 = pneg %p2401
  %2404 = shalt.err (%p2402)
  %s2405 = scalar_lea.sflag [#allocation22], 17
  %2406 = vsyncmov %s2405
  %s2407 = vpop.sfrf %2406
  %p2408 = scmp.eq.s32.totalorder %s2407, 0
  %p2409 = pneg %p2408
  %2411 = shalt.err (%p2409)
  %s2412 = scalar_lea.sflag [#allocation22], 18
  %2413 = vsyncmov %s2412
  %s2414 = vpop.sfrf %2413
  %p2415 = scmp.eq.s32.totalorder %s2414, 0
  %p2416 = pneg %p2415
  %2418 = shalt.err (%p2416)
  %s2419 = scalar_lea.sflag [#allocation22], 19
  %2420 = vsyncmov %s2419
  %s2421 = vpop.sfrf %2420
  %p2422 = scmp.eq.s32.totalorder %s2421, 0
  %p2423 = pneg %p2422
  %2425 = shalt.err (%p2423)

</llo_original>
